<compile_context>
chip_gen: v6e
topology: v6e:2x2x1
jax: 0.10.0
libtpu: 0.0.40
codegen_flags: <defaults>
</compile_context>

<pallas_src>
import functools

import jax
import jax.numpy as jnp
from jax.experimental import pallas as pl
from jax.experimental.pallas import tpu as pltpu


def _layer_norm(x, gamma, beta, eps=1e-5):
    mu = jnp.mean(x, axis=-1, keepdims=True)
    var = jnp.mean(jnp.square(x - mu), axis=-1, keepdims=True)
    return (x - mu) * jax.lax.rsqrt(var + eps) * gamma + beta


def _encoder_layer_kernel(
    src_ref, pos_ref,
    wqk_ref, bqk_ref,          # (E, 2E) bf16, (1, 2E) f32   fused Q|K in-projection (q-scale folded)
    wv_ref, bv_ref,            # (E, E)  bf16, (1, E)  f32   V in-projection
    wo_ref, bo_ref,            # (E, E)  bf16, (1, E)  f32   MHA out-projection
    w1_ref, b1_ref,            # (E, F)  bf16, (1, F)  f32   linear1
    w2_ref, b2_ref,            # (F, E)  bf16, (1, E)  f32   linear2
    g1_ref, be1_ref,           # (1, E), (1, E) f32          norm1
    g2_ref, be2_ref,           # (1, E), (1, E) f32          norm2
    *refs,                     # outputs: out [, ats]; scratch: q_sc, kT_sc, v_sc
    nhead, tq, need_weights,
):
    bf16 = jnp.bfloat16
    out_ref = refs[0]
    ats_ref = refs[1] if need_weights else None
    q_sc, kT_sc, v_sc = refs[-3], refs[-2], refs[-1]

    L, E = src_ref.shape[1], src_ref.shape[2]
    Dh = E // nhead
    qi = pl.program_id(1)

    # ---- per-sequence Q / K^T / V projections: compute once (first q-tile), cache in VMEM ----
    @pl.when(qi == 0)
    def _():
        x_all = src_ref[0]                                        # (L, E) f32
        qk_in = x_all.astype(bf16) + pos_ref[0].astype(bf16)      # q = k = with_pos_embed(src, pos)
        qk = jnp.dot(qk_in, wqk_ref[...], preferred_element_type=jnp.float32) + bqk_ref[0]
        v = jnp.dot(x_all.astype(bf16), wv_ref[...], preferred_element_type=jnp.float32) + bv_ref[0]
        q_sc[...] = qk[:, 0:E].astype(bf16)
        kT_sc[...] = jnp.transpose(qk[:, E:2 * E]).astype(bf16)   # one (L,E)->(E,L) transpose / sequence
        v_sc[...] = v.astype(bf16)

    row0 = pl.multiple_of(qi * tq, tq)
    x = src_ref[0, pl.ds(row0, tq), :]            # (Tq, E) f32 residual rows of this q-tile
    q_t = q_sc[pl.ds(row0, tq), :]                # (Tq, E) bf16
    kT = kT_sc[...]                               # (E, L)  bf16
    v_bf = v_sc[...]                              # (L, E)  bf16

    # ---- attention for this q-tile (K/V fully resident -> plain full-row softmax) ----
    src2 = jnp.zeros((tq, E), jnp.float32)
    ats_sum = jnp.zeros((tq, L), jnp.float32) if need_weights else None
    for h in range(nhead):                        # static loop; nhead is small
        lo = h * Dh
        s = jnp.dot(q_t[:, lo:lo + Dh], kT[lo:lo + Dh, :],
                    preferred_element_type=jnp.float32)            # (Tq, L) scores
        s = s - jnp.max(s, axis=-1, keepdims=True)
        e = jnp.exp(s)
        p = e * pl.reciprocal(jnp.sum(e, axis=-1, keepdims=True))  # exact: rows sum to 1
        # attention dropout: identity in eval mode
        if need_weights:
            ats_sum = ats_sum + p
        o_h = jnp.dot(p.astype(bf16), v_bf[:, lo:lo + Dh],
                      preferred_element_type=jnp.float32)          # (Tq, Dh)
        # Fold the out-projection into the head loop: lane-dense (Tq, E) accumulate,
        # no sub-128-lane column stores into scratch.
        src2 = src2 + jnp.dot(o_h.astype(bf16), wo_ref[lo:lo + Dh, :],
                              preferred_element_type=jnp.float32)
    src2 = src2 + bo_ref[0]

    # residual + norm1  (dropout1 = identity)
    y = _layer_norm(x + src2, g1_ref[0], be1_ref[0])

    # FFN: linear1 -> relu (bf16) -> (dropout = identity) -> linear2
    h1 = jnp.dot(y.astype(bf16), w1_ref[...], preferred_element_type=jnp.float32) + b1_ref[0]
    h1 = jnp.maximum(h1.astype(bf16), 0)          # bf16 ReLU halves the live (Tq, F) slab
    h2 = jnp.dot(h1, w2_ref[...], preferred_element_type=jnp.float32) + b2_ref[0]

    # residual + norm2  (dropout2 = identity)
    out = _layer_norm(y + h2, g2_ref[0], be2_ref[0])
    out_ref[0] = out.astype(out_ref.dtype)
    if need_weights:
        ats_ref[0] = (ats_sum * (1.0 / nhead)).astype(ats_ref.dtype)  # head-averaged weights


def prepare_params(params, nhead, compute_dtype=jnp.bfloat16):
    """One-time prep: fold q-scale, pre-transpose to contraction-major, cast MXU weights bf16."""
    E = params["out_w"].shape[0]
    assert E % nhead == 0
    Dh = E // nhead
    scale = Dh ** -0.5
    f32 = jnp.float32
    Wq, Wk, Wv = jnp.split(params["in_w"], 3, axis=0)          # each (E, E), PyTorch layout
    bq, bk, bv = jnp.split(params["in_b"].reshape(-1), 3)
    return dict(
        wqk=jnp.concatenate([Wq * scale, Wk], axis=0).T.astype(compute_dtype),   # (E, 2E)
        bqk=jnp.concatenate([bq * scale, bk]).reshape(1, 2 * E).astype(f32),
        wv=Wv.T.astype(compute_dtype),                                            # (E, E)
        bv=bv.reshape(1, E).astype(f32),
        wo=params["out_w"].T.astype(compute_dtype),                               # (E, E)
        bo=params["out_b"].reshape(1, E).astype(f32),
        w1=params["w1"].T.astype(compute_dtype),                                  # (E, F)
        b1=params["b1"].reshape(1, -1).astype(f32),
        w2=params["w2"].T.astype(compute_dtype),                                  # (F, E)
        b2=params["b2"].reshape(1, E).astype(f32),
        g1=params["g1"].reshape(1, E).astype(f32),
        be1=params["be1"].reshape(1, E).astype(f32),
        g2=params["g2"].reshape(1, E).astype(f32),
        be2=params["be2"].reshape(1, E).astype(f32),
    )


def _pick_q_tile(L, target=256):
    """Largest q-tile <= target that divides L (multiple of 8 when tiling)."""
    if L <= target:
        return L
    for t in range(target, 7, -1):
        if L % t == 0 and t % 8 == 0:
            return t
    # TODO(synk): pad ragged L instead of falling back to a single full-length tile.
    return L


def _vmem_limit_bytes():
    """Per-generation limit: ~75% of physical VMEM (96 MiB v5e/v6e, 48 MiB v7x)."""
    try:
        phys = getattr(pltpu.get_tpu_info(), "vmem_capacity_bytes", None)
        if phys:
            return int(phys) * 3 // 4
    except Exception:
        pass
    return 48 * 1024 * 1024


def _run(src_nle, pos_nle, prepped, nhead, need_weights, single_buffer_weights):
    N, L, E = src_nle.shape
    tq = _pick_q_tile(L)
    n_q_tiles = L // tq

    weight_args = (prepped["wqk"], prepped["bqk"], prepped["wv"], prepped["bv"],
                   prepped["wo"], prepped["bo"], prepped["w1"], prepped["b1"],
                   prepped["w2"], prepped["b2"], prepped["g1"], prepped["be1"],
                   prepped["g2"], prepped["be2"])

    def const_map(ndim):
        return lambda n, qi: (0,) * ndim

    def weight_spec(a):
        # Weights never change across the grid: single-buffer to halve their VMEM footprint.
        if single_buffer_weights:
            return pl.BlockSpec(a.shape, const_map(a.ndim), pipeline_mode=pl.Buffered(1))
        return pl.BlockSpec(a.shape, const_map(a.ndim))

    out_shapes = [jax.ShapeDtypeStruct((N, L, E), jnp.float32)]
    out_specs = [pl.BlockSpec((1, tq, E), lambda n, qi: (n, qi, 0))]
    if need_weights:
        out_shapes.append(jax.ShapeDtypeStruct((N, L, L), jnp.float32))
        out_specs.append(pl.BlockSpec((1, tq, L), lambda n, qi: (n, qi, 0)))

    kernel = functools.partial(_encoder_layer_kernel, nhead=nhead, tq=tq,
                               need_weights=need_weights)

    res = pl.pallas_call(
        kernel,
        out_shape=tuple(out_shapes),
        grid_spec=pltpu.PrefetchScalarGridSpec(
            num_scalar_prefetch=0,
            grid=(N, n_q_tiles),
            in_specs=[pl.BlockSpec((1, L, E), lambda n, qi: (n, 0, 0)),   # src (full seq)
                      pl.BlockSpec((1, L, E), lambda n, qi: (n, 0, 0)),   # pos (full seq)
                      ] + [weight_spec(a) for a in weight_args],
            out_specs=tuple(out_specs),
            scratch_shapes=[pltpu.VMEM((L, E), jnp.bfloat16),    # q  (post-scale)
                            pltpu.VMEM((E, L), jnp.bfloat16),    # K^T
                            pltpu.VMEM((L, E), jnp.bfloat16)],   # V
        ),
        compiler_params=pltpu.CompilerParams(
            # n: parallel (megacore); q-tile axis carries the per-sequence K/V scratch -> arbitrary.
            dimension_semantics=("parallel", "arbitrary"),
            vmem_limit_bytes=_vmem_limit_bytes(),
        ),
    )(src_nle, pos_nle, *weight_args)

    if need_weights:
        return res
    return res[0] if isinstance(res, (tuple, list)) else res


def encoder_layer_batch_first(src_nle, pos_nle, prepped, nhead, need_weights=True):
    """src_nle, pos_nle: (N, L, E) f32. Returns (out (N,L,E), ats (N,L,L)) or out only."""
    try:
        res = _run(src_nle, pos_nle, prepped, nhead, need_weights, single_buffer_weights=True)
        return jax.block_until_ready(res)
    except Exception:
        # pl.Buffered(1) single-buffering not supported by this jax/Mosaic build:
        # fall back to default double-buffered weight BlockSpecs.
        res = _run(src_nle, pos_nle, prepped, nhead, need_weights, single_buffer_weights=False)
        return jax.block_until_ready(res)


def transformer_encoder_layer(src, pos, params, nhead, batch_first=False, need_weights=True):
    """PyTorch-parity entry point.

    Default layout is seq-first (L, N, E) like nn.MultiheadAttention; pass batch_first=True
    with (N, L, E) inputs/outputs to skip the layout transposes.  Returns (out, ats) when
    need_weights (module default), else out only.
    """
    prepped = prepare_params(params, nhead)
    if batch_first:
        src_nle, pos_nle = src, pos
    else:
        src_nle = jnp.transpose(src, (1, 0, 2))
        pos_nle = jnp.transpose(pos, (1, 0, 2))
    res = encoder_layer_batch_first(src_nle, pos_nle, prepped, nhead, need_weights)
    if need_weights:
        out_nle, ats = res
    else:
        out_nle, ats = res, None
    out = out_nle if batch_first else jnp.transpose(out_nle, (1, 0, 2))
    return (out, ats) if need_weights else out


def _reference(src, pos, params, nhead):
    """Pure-JAX f32 reference mirroring PyTorch semantics (eval mode)."""
    L, N, E = src.shape
    Dh = E // nhead
    qk = src + pos
    Wq, Wk, Wv = jnp.split(params["in_w"], 3, axis=0)
    bq, bk, bv = jnp.split(params["in_b"][0], 3)
    q = (qk @ Wq.T + bq) * (Dh ** -0.5)
    k = qk @ Wk.T + bk
    v = src @ Wv.T + bv
    r = lambda t: t.reshape(L, N, nhead, Dh).transpose(1, 2, 0, 3)
    qh, kh, vh = r(q), r(k), r(v)
    s = jnp.einsum("nhld,nhmd->nhlm", qh, kh)
    p = jax.nn.softmax(s, axis=-1)
    o = jnp.einsum("nhlm,nhmd->nhld", p, vh)
    o = o.transpose(2, 0, 1, 3).reshape(L, N, E)
    src2 = o @ params["out_w"].T + params["out_b"][0]
    ats = p.mean(axis=1)

    def ln(x, g, b):
        mu = x.mean(-1, keepdims=True)
        var = ((x - mu) ** 2).mean(-1, keepdims=True)
        return (x - mu) / jnp.sqrt(var + 1e-5) * g[0] + b[0]

    y = ln(src + src2, params["g1"], params["be1"])
    h = jnp.maximum(y @ params["w1"].T + params["b1"][0], 0.0)
    h = h @ params["w2"].T + params["b2"][0]
    out = ln(y + h, params["g2"], params["be2"])
    return out, ats


if __name__ == "__main__":
    # small shapes: seq L=8, batch N=2, d_model E=32, nhead=4, dim_feedforward=64
    L, N, E, H, FF = 8, 2, 32, 4, 64

    key = jax.random.PRNGKey(0)
    ks = jax.random.split(key, 10)
    params = {
        "in_w":  0.05 * jax.random.normal(ks[0], (3 * E, E), jnp.float32),
        "in_b":  0.01 * jax.random.normal(ks[1], (1, 3 * E), jnp.float32),
        "out_w": 0.05 * jax.random.normal(ks[2], (E, E), jnp.float32),
        "out_b": 0.01 * jax.random.normal(ks[3], (1, E), jnp.float32),
        "w1":    0.05 * jax.random.normal(ks[4], (FF, E), jnp.float32),
        "b1":    0.01 * jax.random.normal(ks[5], (1, FF), jnp.float32),
        "w2":    0.05 * jax.random.normal(ks[6], (E, FF), jnp.float32),
        "b2":    0.01 * jax.random.normal(ks[7], (1, E), jnp.float32),
        "g1":    jnp.ones((1, E), jnp.float32),
        "be1":   jnp.zeros((1, E), jnp.float32),
        "g2":    jnp.ones((1, E), jnp.float32),
        "be2":   jnp.zeros((1, E), jnp.float32),
    }

    src = jax.random.normal(ks[8], (L, N, E), jnp.float32)
    pos = jax.random.normal(ks[9], (L, N, E), jnp.float32)

    out, ats = transformer_encoder_layer(src, pos, params, H)
    out, ats = jax.block_until_ready(out), jax.block_until_ready(ats)

    ref_out, ref_ats = _reference(src, pos, params, H)
    assert out.shape == (L, N, E) and ats.shape == (N, L, L)
    # bf16 MXU operands with f32 accumulation -> mixed-precision tolerance vs f32 ref
    assert jnp.allclose(out, ref_out, atol=2e-2, rtol=2e-2), \
        float(jnp.max(jnp.abs(out - ref_out)))
    assert jnp.allclose(ats, ref_ats, atol=5e-3, rtol=5e-3), \
        float(jnp.max(jnp.abs(ats - ref_ats)))

    print("KERNEL_OK")
</pallas_src>

<mosaic_0001>
module attributes {stable_mosaic.version = 11 : i64} {
  func.func @_encoder_layer_kernel(%arg0: i32, %arg1: i32, %arg2: memref<1x8x32xf32, #tpu.memory_space<vmem>>, %arg3: memref<1x8x32xf32, #tpu.memory_space<vmem>>, %arg4: memref<32x64xbf16, #tpu.memory_space<vmem>>, %arg5: memref<1x64xf32, #tpu.memory_space<vmem>>, %arg6: memref<32x32xbf16, #tpu.memory_space<vmem>>, %arg7: memref<1x32xf32, #tpu.memory_space<vmem>>, %arg8: memref<32x32xbf16, #tpu.memory_space<vmem>>, %arg9: memref<1x32xf32, #tpu.memory_space<vmem>>, %arg10: memref<32x64xbf16, #tpu.memory_space<vmem>>, %arg11: memref<1x64xf32, #tpu.memory_space<vmem>>, %arg12: memref<64x32xbf16, #tpu.memory_space<vmem>>, %arg13: memref<1x32xf32, #tpu.memory_space<vmem>>, %arg14: memref<1x32xf32, #tpu.memory_space<vmem>>, %arg15: memref<1x32xf32, #tpu.memory_space<vmem>>, %arg16: memref<1x32xf32, #tpu.memory_space<vmem>>, %arg17: memref<1x32xf32, #tpu.memory_space<vmem>>, %arg18: memref<1x8x32xf32, #tpu.memory_space<vmem>>, %arg19: memref<1x8x8xf32, #tpu.memory_space<vmem>>, %arg20: memref<8x32xbf16, #tpu.memory_space<vmem>>, %arg21: memref<32x8xbf16, #tpu.memory_space<vmem>>, %arg22: memref<8x32xbf16, #tpu.memory_space<vmem>>) attributes {dimension_semantics = [#tpu.dimension_semantics<parallel>, #tpu.dimension_semantics<arbitrary>], iteration_bounds = array<i64: 2, 1>, scalar_prefetch = 0 : i64, scratch_operands = 3 : i64, tpu.core_type = #tpu.core_type<tc>, window_params = [{transform_indices = @transform_0, window_bounds = array<i64: 1, 8, 32>}, {transform_indices = @transform_1, window_bounds = array<i64: 1, 8, 32>}, {pipeline_mode = #tpu.pipeline_mode<synchronous>, transform_indices = @transform_2, window_bounds = array<i64: 32, 64>}, {pipeline_mode = #tpu.pipeline_mode<synchronous>, transform_indices = @transform_3, window_bounds = array<i64: 1, 64>}, {pipeline_mode = #tpu.pipeline_mode<synchronous>, transform_indices = @transform_4, window_bounds = array<i64: 32, 32>}, {pipeline_mode = #tpu.pipeline_mode<synchronous>, transform_indices = @transform_5, window_bounds = array<i64: 1, 32>}, {pipeline_mode = #tpu.pipeline_mode<synchronous>, transform_indices = @transform_6, window_bounds = array<i64: 32, 32>}, {pipeline_mode = #tpu.pipeline_mode<synchronous>, transform_indices = @transform_7, window_bounds = array<i64: 1, 32>}, {pipeline_mode = #tpu.pipeline_mode<synchronous>, transform_indices = @transform_8, window_bounds = array<i64: 32, 64>}, {pipeline_mode = #tpu.pipeline_mode<synchronous>, transform_indices = @transform_9, window_bounds = array<i64: 1, 64>}, {pipeline_mode = #tpu.pipeline_mode<synchronous>, transform_indices = @transform_10, window_bounds = array<i64: 64, 32>}, {pipeline_mode = #tpu.pipeline_mode<synchronous>, transform_indices = @transform_11, window_bounds = array<i64: 1, 32>}, {pipeline_mode = #tpu.pipeline_mode<synchronous>, transform_indices = @transform_12, window_bounds = array<i64: 1, 32>}, {pipeline_mode = #tpu.pipeline_mode<synchronous>, transform_indices = @transform_13, window_bounds = array<i64: 1, 32>}, {pipeline_mode = #tpu.pipeline_mode<synchronous>, transform_indices = @transform_14, window_bounds = array<i64: 1, 32>}, {pipeline_mode = #tpu.pipeline_mode<synchronous>, transform_indices = @transform_15, window_bounds = array<i64: 1, 32>}, {transform_indices = @transform_16, window_bounds = array<i64: 1, 8, 32>}, {transform_indices = @transform_17, window_bounds = array<i64: 1, 8, 8>}]} {
    %c0_i32 = arith.constant 0 : i32
    %0 = arith.cmpi eq, %arg1, %c0_i32 : i32
    %1 = arith.extui %0 : i1 to i32
    %c0_i32_0 = arith.constant 0 : i32
    %2 = arith.cmpi ne, %1, %c0_i32_0 : i32
    scf.if %2 {
      %c0_71 = arith.constant 0 : index
      %c0_72 = arith.constant 0 : index
      %c0_73 = arith.constant 0 : index
      %187 = vector.load %arg2[%c0_71, %c0_72, %c0_73] : memref<1x8x32xf32, #tpu.memory_space<vmem>>, vector<1x8x32xf32>
      %188 = vector.shape_cast %187 : vector<1x8x32xf32> to vector<8x32xf32>
      %189 = arith.truncf %188 : vector<8x32xf32> to vector<8x32xbf16>
      %c0_74 = arith.constant 0 : index
      %c0_75 = arith.constant 0 : index
      %c0_76 = arith.constant 0 : index
      %190 = vector.load %arg3[%c0_74, %c0_75, %c0_76] : memref<1x8x32xf32, #tpu.memory_space<vmem>>, vector<1x8x32xf32>
      %191 = vector.shape_cast %190 : vector<1x8x32xf32> to vector<8x32xf32>
      %192 = arith.truncf %191 : vector<8x32xf32> to vector<8x32xbf16>
      %193 = arith.addf %189, %192 : vector<8x32xbf16>
      %c0_77 = arith.constant 0 : index
      %c0_78 = arith.constant 0 : index
      %194 = vector.load %arg4[%c0_77, %c0_78] : memref<32x64xbf16, #tpu.memory_space<vmem>>, vector<32x64xbf16>
      %cst_79 = arith.constant dense<0.000000e+00> : vector<8x64xf32>
      %195 = tpu.matmul %193, %194, %cst_79 {dimension_numbers = #tpu.dot_dimension_numbers<[1], [0], [0], [1], [0, 0, 1, 1], [], []>} : vector<8x32xbf16>, vector<32x64xbf16>, vector<8x64xf32> -> vector<8x64xf32>
      %c0_80 = arith.constant 0 : index
      %c0_81 = arith.constant 0 : index
      %196 = vector.load %arg5[%c0_80, %c0_81] : memref<1x64xf32, #tpu.memory_space<vmem>>, vector<1x64xf32>
      %197 = vector.shape_cast %196 : vector<1x64xf32> to vector<64xf32>
      %198 = vector.shape_cast %197 : vector<64xf32> to vector<1x64xf32>
      %199 = vector.broadcast %198 : vector<1x64xf32> to vector<8x64xf32>
      %200 = arith.addf %195, %199 : vector<8x64xf32>
      %201 = arith.truncf %188 : vector<8x32xf32> to vector<8x32xbf16>
      %c0_82 = arith.constant 0 : index
      %c0_83 = arith.constant 0 : index
      %202 = vector.load %arg6[%c0_82, %c0_83] : memref<32x32xbf16, #tpu.memory_space<vmem>>, vector<32x32xbf16>
      %cst_84 = arith.constant dense<0.000000e+00> : vector<8x32xf32>
      %203 = tpu.matmul %201, %202, %cst_84 {dimension_numbers = #tpu.dot_dimension_numbers<[1], [0], [0], [1], [0, 0, 1, 1], [], []>} : vector<8x32xbf16>, vector<32x32xbf16>, vector<8x32xf32> -> vector<8x32xf32>
      %c0_85 = arith.constant 0 : index
      %c0_86 = arith.constant 0 : index
      %204 = vector.load %arg7[%c0_85, %c0_86] : memref<1x32xf32, #tpu.memory_space<vmem>>, vector<1x32xf32>
      %205 = vector.shape_cast %204 : vector<1x32xf32> to vector<32xf32>
      %206 = vector.shape_cast %205 : vector<32xf32> to vector<1x32xf32>
      %207 = vector.broadcast %206 : vector<1x32xf32> to vector<8x32xf32>
      %208 = arith.addf %203, %207 : vector<8x32xf32>
      %209 = vector.extract_strided_slice %200 {offsets = [0, 0], sizes = [8, 32], strides = [1, 1]} : vector<8x64xf32> to vector<8x32xf32>
      %210 = arith.truncf %209 : vector<8x32xf32> to vector<8x32xbf16>
      %c0_87 = arith.constant 0 : index
      %c0_88 = arith.constant 0 : index
      %211 = vector.load %arg20[%c0_87, %c0_88] : memref<8x32xbf16, #tpu.memory_space<vmem>>, vector<8x32xbf16>
      tpu.vector_store %arg20[%c0_87, %c0_88], %210 {strides = array<i32>} : memref<8x32xbf16, #tpu.memory_space<vmem>>, vector<8x32xbf16>,
      %212 = vector.extract_strided_slice %200 {offsets = [0, 32], sizes = [8, 32], strides = [1, 1]} : vector<8x64xf32> to vector<8x32xf32>
      %213 = tpu.transpose %212, [1, 0] : vector<8x32xf32> -> vector<32x8xf32>
      %214 = arith.truncf %213 : vector<32x8xf32> to vector<32x8xbf16>
      %c0_89 = arith.constant 0 : index
      %c0_90 = arith.constant 0 : index
      %215 = vector.load %arg21[%c0_89, %c0_90] : memref<32x8xbf16, #tpu.memory_space<vmem>>, vector<32x8xbf16>
      tpu.vector_store %arg21[%c0_89, %c0_90], %214 {strides = array<i32>} : memref<32x8xbf16, #tpu.memory_space<vmem>>, vector<32x8xbf16>,
      %216 = arith.truncf %208 : vector<8x32xf32> to vector<8x32xbf16>
      %c0_91 = arith.constant 0 : index
      %c0_92 = arith.constant 0 : index
      %217 = vector.load %arg22[%c0_91, %c0_92] : memref<8x32xbf16, #tpu.memory_space<vmem>>, vector<8x32xbf16>
      tpu.vector_store %arg22[%c0_91, %c0_92], %216 {strides = array<i32>} : memref<8x32xbf16, #tpu.memory_space<vmem>>, vector<8x32xbf16>,
    } else {
    }
    %c8_i32 = arith.constant 8 : i32
    %3 = arith.muli %arg1, %c8_i32 : i32
    %4 = tpu.assume_multiple %3, 8 : i32
    %c0 = arith.constant 0 : index
    %5 = arith.index_cast %4 : i32 to index
    %c0_1 = arith.constant 0 : index
    %6 = vector.load %arg2[%c0, %5, %c0_1] : memref<1x8x32xf32, #tpu.memory_space<vmem>>, vector<1x8x32xf32>
    %7 = vector.shape_cast %6 : vector<1x8x32xf32> to vector<8x32xf32>
    %8 = arith.index_cast %4 : i32 to index
    %c0_2 = arith.constant 0 : index
    %9 = vector.load %arg20[%8, %c0_2] : memref<8x32xbf16, #tpu.memory_space<vmem>>, vector<8x32xbf16>
    %c0_3 = arith.constant 0 : index
    %c0_4 = arith.constant 0 : index
    %10 = vector.load %arg21[%c0_3, %c0_4] : memref<32x8xbf16, #tpu.memory_space<vmem>>, vector<32x8xbf16>
    %c0_5 = arith.constant 0 : index
    %c0_6 = arith.constant 0 : index
    %11 = vector.load %arg22[%c0_5, %c0_6] : memref<8x32xbf16, #tpu.memory_space<vmem>>, vector<8x32xbf16>
    %cst = arith.constant 0.000000e+00 : f32
    %12 = vector.broadcast %cst : f32 to vector<8x32xf32>
    %cst_7 = arith.constant 0.000000e+00 : f32
    %13 = vector.broadcast %cst_7 : f32 to vector<8x8xf32>
    %14 = vector.extract_strided_slice %9 {offsets = [0, 0], sizes = [8, 8], strides = [1, 1]} : vector<8x32xbf16> to vector<8x8xbf16>
    %15 = vector.extract_strided_slice %10 {offsets = [0, 0], sizes = [8, 8], strides = [1, 1]} : vector<32x8xbf16> to vector<8x8xbf16>
    %cst_8 = arith.constant dense<0.000000e+00> : vector<8x8xf32>
    %16 = tpu.matmul %14, %15, %cst_8 {dimension_numbers = #tpu.dot_dimension_numbers<[1], [0], [0], [1], [0, 0, 1, 1], [], []>} : vector<8x8xbf16>, vector<8x8xbf16>, vector<8x8xf32> -> vector<8x8xf32>
    %cst_9 = arith.constant dense<0xFF800000> : vector<8xf32>
    %17 = vector.multi_reduction <maximumf>, %16, %cst_9 [1] : vector<8x8xf32> to vector<8xf32>
    %18 = vector.shape_cast %17 : vector<8xf32> to vector<8x1xf32>
    %19 = vector.broadcast %18 : vector<8x1xf32> to vector<8x8xf32>
    %20 = arith.subf %16, %19 : vector<8x8xf32>
    %21 = math.exp %20 : vector<8x8xf32>
    %cst_10 = arith.constant dense<0.000000e+00> : vector<8xf32>
    %22 = vector.multi_reduction <add>, %21, %cst_10 [1] : vector<8x8xf32> to vector<8xf32>
    %23 = vector.shape_cast %22 : vector<8xf32> to vector<8x1xf32>
    %24 = tpu.reciprocal %23 : vector<8x1xf32> -> vector<8x1xf32>
    %25 = vector.broadcast %24 : vector<8x1xf32> to vector<8x8xf32>
    %26 = arith.mulf %21, %25 : vector<8x8xf32>
    %27 = arith.addf %13, %26 : vector<8x8xf32>
    %28 = arith.truncf %26 : vector<8x8xf32> to vector<8x8xbf16>
    %29 = vector.extract_strided_slice %11 {offsets = [0, 0], sizes = [8, 8], strides = [1, 1]} : vector<8x32xbf16> to vector<8x8xbf16>
    %cst_11 = arith.constant dense<0.000000e+00> : vector<8x8xf32>
    %30 = tpu.matmul %28, %29, %cst_11 {dimension_numbers = #tpu.dot_dimension_numbers<[1], [0], [0], [1], [0, 0, 1, 1], [], []>} : vector<8x8xbf16>, vector<8x8xbf16>, vector<8x8xf32> -> vector<8x8xf32>
    %31 = arith.truncf %30 : vector<8x8xf32> to vector<8x8xbf16>
    %c0_12 = arith.constant 0 : index
    %c0_13 = arith.constant 0 : index
    %32 = vector.load %arg8[%c0_12, %c0_13] : memref<32x32xbf16, #tpu.memory_space<vmem>>, vector<8x32xbf16>
    %cst_14 = arith.constant dense<0.000000e+00> : vector<8x32xf32>
    %33 = tpu.matmul %31, %32, %cst_14 {dimension_numbers = #tpu.dot_dimension_numbers<[1], [0], [0], [1], [0, 0, 1, 1], [], []>} : vector<8x8xbf16>, vector<8x32xbf16>, vector<8x32xf32> -> vector<8x32xf32>
    %34 = arith.addf %12, %33 : vector<8x32xf32>
    %35 = vector.extract_strided_slice %9 {offsets = [0, 8], sizes = [8, 8], strides = [1, 1]} : vector<8x32xbf16> to vector<8x8xbf16>
    %36 = vector.extract_strided_slice %10 {offsets = [8, 0], sizes = [8, 8], strides = [1, 1]} : vector<32x8xbf16> to vector<8x8xbf16>
    %cst_15 = arith.constant dense<0.000000e+00> : vector<8x8xf32>
    %37 = tpu.matmul %35, %36, %cst_15 {dimension_numbers = #tpu.dot_dimension_numbers<[1], [0], [0], [1], [0, 0, 1, 1], [], []>} : vector<8x8xbf16>, vector<8x8xbf16>, vector<8x8xf32> -> vector<8x8xf32>
    %cst_16 = arith.constant dense<0xFF800000> : vector<8xf32>
    %38 = vector.multi_reduction <maximumf>, %37, %cst_16 [1] : vector<8x8xf32> to vector<8xf32>
    %39 = vector.shape_cast %38 : vector<8xf32> to vector<8x1xf32>
    %40 = vector.broadcast %39 : vector<8x1xf32> to vector<8x8xf32>
    %41 = arith.subf %37, %40 : vector<8x8xf32>
    %42 = math.exp %41 : vector<8x8xf32>
    %cst_17 = arith.constant dense<0.000000e+00> : vector<8xf32>
    %43 = vector.multi_reduction <add>, %42, %cst_17 [1] : vector<8x8xf32> to vector<8xf32>
    %44 = vector.shape_cast %43 : vector<8xf32> to vector<8x1xf32>
    %45 = tpu.reciprocal %44 : vector<8x1xf32> -> vector<8x1xf32>
    %46 = vector.broadcast %45 : vector<8x1xf32> to vector<8x8xf32>
    %47 = arith.mulf %42, %46 : vector<8x8xf32>
    %48 = arith.addf %27, %47 : vector<8x8xf32>
    %49 = arith.truncf %47 : vector<8x8xf32> to vector<8x8xbf16>
    %50 = vector.extract_strided_slice %11 {offsets = [0, 8], sizes = [8, 8], strides = [1, 1]} : vector<8x32xbf16> to vector<8x8xbf16>
    %cst_18 = arith.constant dense<0.000000e+00> : vector<8x8xf32>
    %51 = tpu.matmul %49, %50, %cst_18 {dimension_numbers = #tpu.dot_dimension_numbers<[1], [0], [0], [1], [0, 0, 1, 1], [], []>} : vector<8x8xbf16>, vector<8x8xbf16>, vector<8x8xf32> -> vector<8x8xf32>
    %52 = arith.truncf %51 : vector<8x8xf32> to vector<8x8xbf16>
    %c8 = arith.constant 8 : index
    %c0_19 = arith.constant 0 : index
    %53 = vector.load %arg8[%c8, %c0_19] : memref<32x32xbf16, #tpu.memory_space<vmem>>, vector<8x32xbf16>
    %cst_20 = arith.constant dense<0.000000e+00> : vector<8x32xf32>
    %54 = tpu.matmul %52, %53, %cst_20 {dimension_numbers = #tpu.dot_dimension_numbers<[1], [0], [0], [1], [0, 0, 1, 1], [], []>} : vector<8x8xbf16>, vector<8x32xbf16>, vector<8x32xf32> -> vector<8x32xf32>
    %55 = arith.addf %34, %54 : vector<8x32xf32>
    %56 = vector.extract_strided_slice %9 {offsets = [0, 16], sizes = [8, 8], strides = [1, 1]} : vector<8x32xbf16> to vector<8x8xbf16>
    %57 = vector.extract_strided_slice %10 {offsets = [16, 0], sizes = [8, 8], strides = [1, 1]} : vector<32x8xbf16> to vector<8x8xbf16>
    %cst_21 = arith.constant dense<0.000000e+00> : vector<8x8xf32>
    %58 = tpu.matmul %56, %57, %cst_21 {dimension_numbers = #tpu.dot_dimension_numbers<[1], [0], [0], [1], [0, 0, 1, 1], [], []>} : vector<8x8xbf16>, vector<8x8xbf16>, vector<8x8xf32> -> vector<8x8xf32>
    %cst_22 = arith.constant dense<0xFF800000> : vector<8xf32>
    %59 = vector.multi_reduction <maximumf>, %58, %cst_22 [1] : vector<8x8xf32> to vector<8xf32>
    %60 = vector.shape_cast %59 : vector<8xf32> to vector<8x1xf32>
    %61 = vector.broadcast %60 : vector<8x1xf32> to vector<8x8xf32>
    %62 = arith.subf %58, %61 : vector<8x8xf32>
    %63 = math.exp %62 : vector<8x8xf32>
    %cst_23 = arith.constant dense<0.000000e+00> : vector<8xf32>
    %64 = vector.multi_reduction <add>, %63, %cst_23 [1] : vector<8x8xf32> to vector<8xf32>
    %65 = vector.shape_cast %64 : vector<8xf32> to vector<8x1xf32>
    %66 = tpu.reciprocal %65 : vector<8x1xf32> -> vector<8x1xf32>
    %67 = vector.broadcast %66 : vector<8x1xf32> to vector<8x8xf32>
    %68 = arith.mulf %63, %67 : vector<8x8xf32>
    %69 = arith.addf %48, %68 : vector<8x8xf32>
    %70 = arith.truncf %68 : vector<8x8xf32> to vector<8x8xbf16>
    %71 = vector.extract_strided_slice %11 {offsets = [0, 16], sizes = [8, 8], strides = [1, 1]} : vector<8x32xbf16> to vector<8x8xbf16>
    %cst_24 = arith.constant dense<0.000000e+00> : vector<8x8xf32>
    %72 = tpu.matmul %70, %71, %cst_24 {dimension_numbers = #tpu.dot_dimension_numbers<[1], [0], [0], [1], [0, 0, 1, 1], [], []>} : vector<8x8xbf16>, vector<8x8xbf16>, vector<8x8xf32> -> vector<8x8xf32>
    %73 = arith.truncf %72 : vector<8x8xf32> to vector<8x8xbf16>
    %c16 = arith.constant 16 : index
    %c0_25 = arith.constant 0 : index
    %74 = vector.load %arg8[%c16, %c0_25] : memref<32x32xbf16, #tpu.memory_space<vmem>>, vector<8x32xbf16>
    %cst_26 = arith.constant dense<0.000000e+00> : vector<8x32xf32>
    %75 = tpu.matmul %73, %74, %cst_26 {dimension_numbers = #tpu.dot_dimension_numbers<[1], [0], [0], [1], [0, 0, 1, 1], [], []>} : vector<8x8xbf16>, vector<8x32xbf16>, vector<8x32xf32> -> vector<8x32xf32>
    %76 = arith.addf %55, %75 : vector<8x32xf32>
    %77 = vector.extract_strided_slice %9 {offsets = [0, 24], sizes = [8, 8], strides = [1, 1]} : vector<8x32xbf16> to vector<8x8xbf16>
    %78 = vector.extract_strided_slice %10 {offsets = [24, 0], sizes = [8, 8], strides = [1, 1]} : vector<32x8xbf16> to vector<8x8xbf16>
    %cst_27 = arith.constant dense<0.000000e+00> : vector<8x8xf32>
    %79 = tpu.matmul %77, %78, %cst_27 {dimension_numbers = #tpu.dot_dimension_numbers<[1], [0], [0], [1], [0, 0, 1, 1], [], []>} : vector<8x8xbf16>, vector<8x8xbf16>, vector<8x8xf32> -> vector<8x8xf32>
    %cst_28 = arith.constant dense<0xFF800000> : vector<8xf32>
    %80 = vector.multi_reduction <maximumf>, %79, %cst_28 [1] : vector<8x8xf32> to vector<8xf32>
    %81 = vector.shape_cast %80 : vector<8xf32> to vector<8x1xf32>
    %82 = vector.broadcast %81 : vector<8x1xf32> to vector<8x8xf32>
    %83 = arith.subf %79, %82 : vector<8x8xf32>
    %84 = math.exp %83 : vector<8x8xf32>
    %cst_29 = arith.constant dense<0.000000e+00> : vector<8xf32>
    %85 = vector.multi_reduction <add>, %84, %cst_29 [1] : vector<8x8xf32> to vector<8xf32>
    %86 = vector.shape_cast %85 : vector<8xf32> to vector<8x1xf32>
    %87 = tpu.reciprocal %86 : vector<8x1xf32> -> vector<8x1xf32>
    %88 = vector.broadcast %87 : vector<8x1xf32> to vector<8x8xf32>
    %89 = arith.mulf %84, %88 : vector<8x8xf32>
    %90 = arith.addf %69, %89 : vector<8x8xf32>
    %91 = arith.truncf %89 : vector<8x8xf32> to vector<8x8xbf16>
    %92 = vector.extract_strided_slice %11 {offsets = [0, 24], sizes = [8, 8], strides = [1, 1]} : vector<8x32xbf16> to vector<8x8xbf16>
    %cst_30 = arith.constant dense<0.000000e+00> : vector<8x8xf32>
    %93 = tpu.matmul %91, %92, %cst_30 {dimension_numbers = #tpu.dot_dimension_numbers<[1], [0], [0], [1], [0, 0, 1, 1], [], []>} : vector<8x8xbf16>, vector<8x8xbf16>, vector<8x8xf32> -> vector<8x8xf32>
    %94 = arith.truncf %93 : vector<8x8xf32> to vector<8x8xbf16>
    %c24 = arith.constant 24 : index
    %c0_31 = arith.constant 0 : index
    %95 = vector.load %arg8[%c24, %c0_31] : memref<32x32xbf16, #tpu.memory_space<vmem>>, vector<8x32xbf16>
    %cst_32 = arith.constant dense<0.000000e+00> : vector<8x32xf32>
    %96 = tpu.matmul %94, %95, %cst_32 {dimension_numbers = #tpu.dot_dimension_numbers<[1], [0], [0], [1], [0, 0, 1, 1], [], []>} : vector<8x8xbf16>, vector<8x32xbf16>, vector<8x32xf32> -> vector<8x32xf32>
    %97 = arith.addf %76, %96 : vector<8x32xf32>
    %c0_33 = arith.constant 0 : index
    %c0_34 = arith.constant 0 : index
    %98 = vector.load %arg9[%c0_33, %c0_34] : memref<1x32xf32, #tpu.memory_space<vmem>>, vector<1x32xf32>
    %99 = vector.shape_cast %98 : vector<1x32xf32> to vector<32xf32>
    %100 = vector.shape_cast %99 : vector<32xf32> to vector<1x32xf32>
    %101 = vector.broadcast %100 : vector<1x32xf32> to vector<8x32xf32>
    %102 = arith.addf %97, %101 : vector<8x32xf32>
    %103 = arith.addf %7, %102 : vector<8x32xf32>
    %c0_35 = arith.constant 0 : index
    %c0_36 = arith.constant 0 : index
    %104 = vector.load %arg14[%c0_35, %c0_36] : memref<1x32xf32, #tpu.memory_space<vmem>>, vector<1x32xf32>
    %105 = vector.shape_cast %104 : vector<1x32xf32> to vector<32xf32>
    %c0_37 = arith.constant 0 : index
    %c0_38 = arith.constant 0 : index
    %106 = vector.load %arg15[%c0_37, %c0_38] : memref<1x32xf32, #tpu.memory_space<vmem>>, vector<1x32xf32>
    %107 = vector.shape_cast %106 : vector<1x32xf32> to vector<32xf32>
    %cst_39 = arith.constant dense<0.000000e+00> : vector<8xf32>
    %108 = vector.multi_reduction <add>, %103, %cst_39 [1] : vector<8x32xf32> to vector<8xf32>
    %109 = vector.shape_cast %108 : vector<8xf32> to vector<8x1xf32>
    %cst_40 = arith.constant 3.200000e+01 : f32
    %110 = vector.broadcast %cst_40 : f32 to vector<8x1xf32>
    %111 = arith.divf %109, %110 : vector<8x1xf32>
    %112 = vector.broadcast %111 : vector<8x1xf32> to vector<8x32xf32>
    %113 = arith.subf %103, %112 : vector<8x32xf32>
    %114 = arith.mulf %113, %113 : vector<8x32xf32>
    %cst_41 = arith.constant dense<0.000000e+00> : vector<8xf32>
    %115 = vector.multi_reduction <add>, %114, %cst_41 [1] : vector<8x32xf32> to vector<8xf32>
    %116 = vector.shape_cast %115 : vector<8xf32> to vector<8x1xf32>
    %cst_42 = arith.constant 3.200000e+01 : f32
    %117 = vector.broadcast %cst_42 : f32 to vector<8x1xf32>
    %118 = arith.divf %116, %117 : vector<8x1xf32>
    %119 = vector.broadcast %111 : vector<8x1xf32> to vector<8x32xf32>
    %120 = arith.subf %103, %119 : vector<8x32xf32>
    %cst_43 = arith.constant 9.99999974E-6 : f32
    %121 = vector.broadcast %cst_43 : f32 to vector<8x1xf32>
    %122 = arith.addf %118, %121 : vector<8x1xf32>
    %123 = math.rsqrt %122 : vector<8x1xf32>
    %124 = vector.broadcast %123 : vector<8x1xf32> to vector<8x32xf32>
    %125 = arith.mulf %120, %124 : vector<8x32xf32>
    %126 = vector.shape_cast %105 : vector<32xf32> to vector<1x32xf32>
    %127 = vector.broadcast %126 : vector<1x32xf32> to vector<8x32xf32>
    %128 = arith.mulf %125, %127 : vector<8x32xf32>
    %129 = vector.shape_cast %107 : vector<32xf32> to vector<1x32xf32>
    %130 = vector.broadcast %129 : vector<1x32xf32> to vector<8x32xf32>
    %131 = arith.addf %128, %130 : vector<8x32xf32>
    %132 = arith.truncf %131 : vector<8x32xf32> to vector<8x32xbf16>
    %c0_44 = arith.constant 0 : index
    %c0_45 = arith.constant 0 : index
    %133 = vector.load %arg10[%c0_44, %c0_45] : memref<32x64xbf16, #tpu.memory_space<vmem>>, vector<32x64xbf16>
    %cst_46 = arith.constant dense<0.000000e+00> : vector<8x64xf32>
    %134 = tpu.matmul %132, %133, %cst_46 {dimension_numbers = #tpu.dot_dimension_numbers<[1], [0], [0], [1], [0, 0, 1, 1], [], []>} : vector<8x32xbf16>, vector<32x64xbf16>, vector<8x64xf32> -> vector<8x64xf32>
    %c0_47 = arith.constant 0 : index
    %c0_48 = arith.constant 0 : index
    %135 = vector.load %arg11[%c0_47, %c0_48] : memref<1x64xf32, #tpu.memory_space<vmem>>, vector<1x64xf32>
    %136 = vector.shape_cast %135 : vector<1x64xf32> to vector<64xf32>
    %137 = vector.shape_cast %136 : vector<64xf32> to vector<1x64xf32>
    %138 = vector.broadcast %137 : vector<1x64xf32> to vector<8x64xf32>
    %139 = arith.addf %134, %138 : vector<8x64xf32>
    %140 = arith.truncf %139 : vector<8x64xf32> to vector<8x64xbf16>
    %cst_49 = arith.constant 0.000000e+00 : bf16
    %141 = vector.broadcast %cst_49 : bf16 to vector<8x64xbf16>
    %142 = arith.maximumf %140, %141 : vector<8x64xbf16>
    %c0_50 = arith.constant 0 : index
    %c0_51 = arith.constant 0 : index
    %143 = vector.load %arg12[%c0_50, %c0_51] : memref<64x32xbf16, #tpu.memory_space<vmem>>, vector<64x32xbf16>
    %cst_52 = arith.constant dense<0.000000e+00> : vector<8x32xf32>
    %144 = tpu.matmul %142, %143, %cst_52 {dimension_numbers = #tpu.dot_dimension_numbers<[1], [0], [0], [1], [0, 0, 1, 1], [], []>} : vector<8x64xbf16>, vector<64x32xbf16>, vector<8x32xf32> -> vector<8x32xf32>
    %c0_53 = arith.constant 0 : index
    %c0_54 = arith.constant 0 : index
    %145 = vector.load %arg13[%c0_53, %c0_54] : memref<1x32xf32, #tpu.memory_space<vmem>>, vector<1x32xf32>
    %146 = vector.shape_cast %145 : vector<1x32xf32> to vector<32xf32>
    %147 = vector.shape_cast %146 : vector<32xf32> to vector<1x32xf32>
    %148 = vector.broadcast %147 : vector<1x32xf32> to vector<8x32xf32>
    %149 = arith.addf %144, %148 : vector<8x32xf32>
    %150 = arith.addf %131, %149 : vector<8x32xf32>
    %c0_55 = arith.constant 0 : index
    %c0_56 = arith.constant 0 : index
    %151 = vector.load %arg16[%c0_55, %c0_56] : memref<1x32xf32, #tpu.memory_space<vmem>>, vector<1x32xf32>
    %152 = vector.shape_cast %151 : vector<1x32xf32> to vector<32xf32>
    %c0_57 = arith.constant 0 : index
    %c0_58 = arith.constant 0 : index
    %153 = vector.load %arg17[%c0_57, %c0_58] : memref<1x32xf32, #tpu.memory_space<vmem>>, vector<1x32xf32>
    %154 = vector.shape_cast %153 : vector<1x32xf32> to vector<32xf32>
    %cst_59 = arith.constant dense<0.000000e+00> : vector<8xf32>
    %155 = vector.multi_reduction <add>, %150, %cst_59 [1] : vector<8x32xf32> to vector<8xf32>
    %156 = vector.shape_cast %155 : vector<8xf32> to vector<8x1xf32>
    %cst_60 = arith.constant 3.200000e+01 : f32
    %157 = vector.broadcast %cst_60 : f32 to vector<8x1xf32>
    %158 = arith.divf %156, %157 : vector<8x1xf32>
    %159 = vector.broadcast %158 : vector<8x1xf32> to vector<8x32xf32>
    %160 = arith.subf %150, %159 : vector<8x32xf32>
    %161 = arith.mulf %160, %160 : vector<8x32xf32>
    %cst_61 = arith.constant dense<0.000000e+00> : vector<8xf32>
    %162 = vector.multi_reduction <add>, %161, %cst_61 [1] : vector<8x32xf32> to vector<8xf32>
    %163 = vector.shape_cast %162 : vector<8xf32> to vector<8x1xf32>
    %cst_62 = arith.constant 3.200000e+01 : f32
    %164 = vector.broadcast %cst_62 : f32 to vector<8x1xf32>
    %165 = arith.divf %163, %164 : vector<8x1xf32>
    %166 = vector.broadcast %158 : vector<8x1xf32> to vector<8x32xf32>
    %167 = arith.subf %150, %166 : vector<8x32xf32>
    %cst_63 = arith.constant 9.99999974E-6 : f32
    %168 = vector.broadcast %cst_63 : f32 to vector<8x1xf32>
    %169 = arith.addf %165, %168 : vector<8x1xf32>
    %170 = math.rsqrt %169 : vector<8x1xf32>
    %171 = vector.broadcast %170 : vector<8x1xf32> to vector<8x32xf32>
    %172 = arith.mulf %167, %171 : vector<8x32xf32>
    %173 = vector.shape_cast %152 : vector<32xf32> to vector<1x32xf32>
    %174 = vector.broadcast %173 : vector<1x32xf32> to vector<8x32xf32>
    %175 = arith.mulf %172, %174 : vector<8x32xf32>
    %176 = vector.shape_cast %154 : vector<32xf32> to vector<1x32xf32>
    %177 = vector.broadcast %176 : vector<1x32xf32> to vector<8x32xf32>
    %178 = arith.addf %175, %177 : vector<8x32xf32>
    %c0_64 = arith.constant 0 : index
    %c0_65 = arith.constant 0 : index
    %c0_66 = arith.constant 0 : index
    %179 = vector.load %arg18[%c0_64, %c0_65, %c0_66] : memref<1x8x32xf32, #tpu.memory_space<vmem>>, vector<1x8x32xf32>
    %180 = vector.shape_cast %179 : vector<1x8x32xf32> to vector<8x32xf32>
    %181 = vector.shape_cast %178 : vector<8x32xf32> to vector<1x8x32xf32>
    tpu.vector_store %arg18[%c0_64, %c0_65, %c0_66], %181 {strides = array<i32>} : memref<1x8x32xf32, #tpu.memory_space<vmem>>, vector<1x8x32xf32>,
    %cst_67 = arith.constant 2.500000e-01 : f32
    %182 = vector.broadcast %cst_67 : f32 to vector<8x8xf32>
    %183 = arith.mulf %90, %182 : vector<8x8xf32>
    %c0_68 = arith.constant 0 : index
    %c0_69 = arith.constant 0 : index
    %c0_70 = arith.constant 0 : index
    %184 = vector.load %arg19[%c0_68, %c0_69, %c0_70] : memref<1x8x8xf32, #tpu.memory_space<vmem>>, vector<1x8x8xf32>
    %185 = vector.shape_cast %184 : vector<1x8x8xf32> to vector<8x8xf32>
    %186 = vector.shape_cast %183 : vector<8x8xf32> to vector<1x8x8xf32>
    tpu.vector_store %arg19[%c0_68, %c0_69, %c0_70], %186 {strides = array<i32>} : memref<1x8x8xf32, #tpu.memory_space<vmem>>, vector<1x8x8xf32>,
    return
  }
  func.func @transform_0(%arg0: i32, %arg1: i32) -> (i32, i32, i32) {
    %c0_i32 = arith.constant 0 : i32
    %c0_i32_0 = arith.constant 0 : i32
    %c0_i32_1 = arith.constant 0 : i32
    return %arg0, %c0_i32, %c0_i32_0 : i32, i32, i32
  }
  func.func @transform_1(%arg0: i32, %arg1: i32) -> (i32, i32, i32) {
    %c0_i32 = arith.constant 0 : i32
    %c0_i32_0 = arith.constant 0 : i32
    %c0_i32_1 = arith.constant 0 : i32
    return %arg0, %c0_i32, %c0_i32_0 : i32, i32, i32
  }
  func.func @transform_2(%arg0: i32, %arg1: i32) -> (i32, i32) {
    %c0_i32 = arith.constant 0 : i32
    %c0_i32_0 = arith.constant 0 : i32
    %c0_i32_1 = arith.constant 0 : i32
    return %c0_i32, %c0_i32_0 : i32, i32
  }
  func.func @transform_3(%arg0: i32, %arg1: i32) -> (i32, i32) {
    %c0_i32 = arith.constant 0 : i32
    %c0_i32_0 = arith.constant 0 : i32
    %c0_i32_1 = arith.constant 0 : i32
    return %c0_i32, %c0_i32_0 : i32, i32
  }
  func.func @transform_4(%arg0: i32, %arg1: i32) -> (i32, i32) {
    %c0_i32 = arith.constant 0 : i32
    %c0_i32_0 = arith.constant 0 : i32
    %c0_i32_1 = arith.constant 0 : i32
    return %c0_i32, %c0_i32_0 : i32, i32
  }
  func.func @transform_5(%arg0: i32, %arg1: i32) -> (i32, i32) {
    %c0_i32 = arith.constant 0 : i32
    %c0_i32_0 = arith.constant 0 : i32
    %c0_i32_1 = arith.constant 0 : i32
    return %c0_i32, %c0_i32_0 : i32, i32
  }
  func.func @transform_6(%arg0: i32, %arg1: i32) -> (i32, i32) {
    %c0_i32 = arith.constant 0 : i32
    %c0_i32_0 = arith.constant 0 : i32
    %c0_i32_1 = arith.constant 0 : i32
    return %c0_i32, %c0_i32_0 : i32, i32
  }
  func.func @transform_7(%arg0: i32, %arg1: i32) -> (i32, i32) {
    %c0_i32 = arith.constant 0 : i32
    %c0_i32_0 = arith.constant 0 : i32
    %c0_i32_1 = arith.constant 0 : i32
    return %c0_i32, %c0_i32_0 : i32, i32
  }
  func.func @transform_8(%arg0: i32, %arg1: i32) -> (i32, i32) {
    %c0_i32 = arith.constant 0 : i32
    %c0_i32_0 = arith.constant 0 : i32
    %c0_i32_1 = arith.constant 0 : i32
    return %c0_i32, %c0_i32_0 : i32, i32
  }
  func.func @transform_9(%arg0: i32, %arg1: i32) -> (i32, i32) {
    %c0_i32 = arith.constant 0 : i32
    %c0_i32_0 = arith.constant 0 : i32
    %c0_i32_1 = arith.constant 0 : i32
    return %c0_i32, %c0_i32_0 : i32, i32
  }
  func.func @transform_10(%arg0: i32, %arg1: i32) -> (i32, i32) {
    %c0_i32 = arith.constant 0 : i32
    %c0_i32_0 = arith.constant 0 : i32
    %c0_i32_1 = arith.constant 0 : i32
    return %c0_i32, %c0_i32_0 : i32, i32
  }
  func.func @transform_11(%arg0: i32, %arg1: i32) -> (i32, i32) {
    %c0_i32 = arith.constant 0 : i32
    %c0_i32_0 = arith.constant 0 : i32
    %c0_i32_1 = arith.constant 0 : i32
    return %c0_i32, %c0_i32_0 : i32, i32
  }
  func.func @transform_12(%arg0: i32, %arg1: i32) -> (i32, i32) {
    %c0_i32 = arith.constant 0 : i32
    %c0_i32_0 = arith.constant 0 : i32
    %c0_i32_1 = arith.constant 0 : i32
    return %c0_i32, %c0_i32_0 : i32, i32
  }
  func.func @transform_13(%arg0: i32, %arg1: i32) -> (i32, i32) {
    %c0_i32 = arith.constant 0 : i32
    %c0_i32_0 = arith.constant 0 : i32
    %c0_i32_1 = arith.constant 0 : i32
    return %c0_i32, %c0_i32_0 : i32, i32
  }
  func.func @transform_14(%arg0: i32, %arg1: i32) -> (i32, i32) {
    %c0_i32 = arith.constant 0 : i32
    %c0_i32_0 = arith.constant 0 : i32
    %c0_i32_1 = arith.constant 0 : i32
    return %c0_i32, %c0_i32_0 : i32, i32
  }
  func.func @transform_15(%arg0: i32, %arg1: i32) -> (i32, i32) {
    %c0_i32 = arith.constant 0 : i32
    %c0_i32_0 = arith.constant 0 : i32
    %c0_i32_1 = arith.constant 0 : i32
    return %c0_i32, %c0_i32_0 : i32, i32
  }
  func.func @transform_16(%arg0: i32, %arg1: i32) -> (i32, i32, i32) {
    %c0_i32 = arith.constant 0 : i32
    %c0_i32_0 = arith.constant 0 : i32
    return %arg0, %arg1, %c0_i32 : i32, i32, i32
  }
  func.func @transform_17(%arg0: i32, %arg1: i32) -> (i32, i32, i32) {
    %c0_i32 = arith.constant 0 : i32
    %c0_i32_0 = arith.constant 0 : i32
    return %arg0, %arg1, %c0_i32 : i32, i32, i32
  }
}

module attributes {stable_mosaic.version = 11 : i64} {
  func.func @_encoder_layer_kernel(%arg0: i32, %arg1: i32, %arg2: memref<1x8x32xf32, #tpu.memory_space<vmem>>, %arg3: memref<1x8x32xf32, #tpu.memory_space<vmem>>, %arg4: memref<32x64xbf16, #tpu.memory_space<vmem>>, %arg5: memref<1x64xf32, #tpu.memory_space<vmem>>, %arg6: memref<32x32xbf16, #tpu.memory_space<vmem>>, %arg7: memref<1x32xf32, #tpu.memory_space<vmem>>, %arg8: memref<32x32xbf16, #tpu.memory_space<vmem>>, %arg9: memref<1x32xf32, #tpu.memory_space<vmem>>, %arg10: memref<32x64xbf16, #tpu.memory_space<vmem>>, %arg11: memref<1x64xf32, #tpu.memory_space<vmem>>, %arg12: memref<64x32xbf16, #tpu.memory_space<vmem>>, %arg13: memref<1x32xf32, #tpu.memory_space<vmem>>, %arg14: memref<1x32xf32, #tpu.memory_space<vmem>>, %arg15: memref<1x32xf32, #tpu.memory_space<vmem>>, %arg16: memref<1x32xf32, #tpu.memory_space<vmem>>, %arg17: memref<1x32xf32, #tpu.memory_space<vmem>>, %arg18: memref<1x8x32xf32, #tpu.memory_space<vmem>>, %arg19: memref<1x8x8xf32, #tpu.memory_space<vmem>>, %arg20: memref<8x32xbf16, #tpu.memory_space<vmem>>, %arg21: memref<32x8xbf16, #tpu.memory_space<vmem>>, %arg22: memref<8x32xbf16, #tpu.memory_space<vmem>>) attributes {dimension_semantics = [#tpu.dimension_semantics<parallel>, #tpu.dimension_semantics<arbitrary>], iteration_bounds = array<i64: 2, 1>, scalar_prefetch = 0 : i64, scratch_operands = 3 : i64, tpu.core_type = #tpu.core_type<tc>, window_params = [{transform_indices = @transform_0, window_bounds = array<i64: 1, 8, 32>}, {transform_indices = @transform_1, window_bounds = array<i64: 1, 8, 32>}, {pipeline_mode = #tpu.pipeline_mode<synchronous>, transform_indices = @transform_2, window_bounds = array<i64: 32, 64>}, {pipeline_mode = #tpu.pipeline_mode<synchronous>, transform_indices = @transform_3, window_bounds = array<i64: 1, 64>}, {pipeline_mode = #tpu.pipeline_mode<synchronous>, transform_indices = @transform_4, window_bounds = array<i64: 32, 32>}, {pipeline_mode = #tpu.pipeline_mode<synchronous>, transform_indices = @transform_5, window_bounds = array<i64: 1, 32>}, {pipeline_mode = #tpu.pipeline_mode<synchronous>, transform_indices = @transform_6, window_bounds = array<i64: 32, 32>}, {pipeline_mode = #tpu.pipeline_mode<synchronous>, transform_indices = @transform_7, window_bounds = array<i64: 1, 32>}, {pipeline_mode = #tpu.pipeline_mode<synchronous>, transform_indices = @transform_8, window_bounds = array<i64: 32, 64>}, {pipeline_mode = #tpu.pipeline_mode<synchronous>, transform_indices = @transform_9, window_bounds = array<i64: 1, 64>}, {pipeline_mode = #tpu.pipeline_mode<synchronous>, transform_indices = @transform_10, window_bounds = array<i64: 64, 32>}, {pipeline_mode = #tpu.pipeline_mode<synchronous>, transform_indices = @transform_11, window_bounds = array<i64: 1, 32>}, {pipeline_mode = #tpu.pipeline_mode<synchronous>, transform_indices = @transform_12, window_bounds = array<i64: 1, 32>}, {pipeline_mode = #tpu.pipeline_mode<synchronous>, transform_indices = @transform_13, window_bounds = array<i64: 1, 32>}, {pipeline_mode = #tpu.pipeline_mode<synchronous>, transform_indices = @transform_14, window_bounds = array<i64: 1, 32>}, {pipeline_mode = #tpu.pipeline_mode<synchronous>, transform_indices = @transform_15, window_bounds = array<i64: 1, 32>}, {transform_indices = @transform_16, window_bounds = array<i64: 1, 8, 32>}, {transform_indices = @transform_17, window_bounds = array<i64: 1, 8, 8>}]} {
    %c0_i32 = arith.constant 0 : i32
    %0 = arith.cmpi eq, %arg1, %c0_i32 : i32
    %1 = arith.extui %0 : i1 to i32
    %c0_i32_0 = arith.constant 0 : i32
    %2 = arith.cmpi ne, %1, %c0_i32_0 : i32
    scf.if %2 {
      %c0_71 = arith.constant 0 : index
      %c0_72 = arith.constant 0 : index
      %c0_73 = arith.constant 0 : index
      %187 = vector.load %arg2[%c0_71, %c0_72, %c0_73] : memref<1x8x32xf32, #tpu.memory_space<vmem>>, vector<1x8x32xf32>
      %188 = vector.shape_cast %187 : vector<1x8x32xf32> to vector<8x32xf32>
      %189 = arith.truncf %188 : vector<8x32xf32> to vector<8x32xbf16>
      %c0_74 = arith.constant 0 : index
      %c0_75 = arith.constant 0 : index
      %c0_76 = arith.constant 0 : index
      %190 = vector.load %arg3[%c0_74, %c0_75, %c0_76] : memref<1x8x32xf32, #tpu.memory_space<vmem>>, vector<1x8x32xf32>
      %191 = vector.shape_cast %190 : vector<1x8x32xf32> to vector<8x32xf32>
      %192 = arith.truncf %191 : vector<8x32xf32> to vector<8x32xbf16>
      %193 = arith.addf %189, %192 : vector<8x32xbf16>
      %c0_77 = arith.constant 0 : index
      %c0_78 = arith.constant 0 : index
      %194 = vector.load %arg4[%c0_77, %c0_78] : memref<32x64xbf16, #tpu.memory_space<vmem>>, vector<32x64xbf16>
      %cst_79 = arith.constant dense<0.000000e+00> : vector<8x64xf32>
      %195 = tpu.matmul %193, %194, %cst_79 {dimension_numbers = #tpu.dot_dimension_numbers<[1], [0], [0], [1], [0, 0, 1, 1], [], []>} : vector<8x32xbf16>, vector<32x64xbf16>, vector<8x64xf32> -> vector<8x64xf32>
      %c0_80 = arith.constant 0 : index
      %c0_81 = arith.constant 0 : index
      %196 = vector.load %arg5[%c0_80, %c0_81] : memref<1x64xf32, #tpu.memory_space<vmem>>, vector<1x64xf32>
      %197 = vector.shape_cast %196 : vector<1x64xf32> to vector<64xf32>
      %198 = vector.shape_cast %197 : vector<64xf32> to vector<1x64xf32>
      %199 = vector.broadcast %198 : vector<1x64xf32> to vector<8x64xf32>
      %200 = arith.addf %195, %199 : vector<8x64xf32>
      %201 = arith.truncf %188 : vector<8x32xf32> to vector<8x32xbf16>
      %c0_82 = arith.constant 0 : index
      %c0_83 = arith.constant 0 : index
      %202 = vector.load %arg6[%c0_82, %c0_83] : memref<32x32xbf16, #tpu.memory_space<vmem>>, vector<32x32xbf16>
      %cst_84 = arith.constant dense<0.000000e+00> : vector<8x32xf32>
      %203 = tpu.matmul %201, %202, %cst_84 {dimension_numbers = #tpu.dot_dimension_numbers<[1], [0], [0], [1], [0, 0, 1, 1], [], []>} : vector<8x32xbf16>, vector<32x32xbf16>, vector<8x32xf32> -> vector<8x32xf32>
      %c0_85 = arith.constant 0 : index
      %c0_86 = arith.constant 0 : index
      %204 = vector.load %arg7[%c0_85, %c0_86] : memref<1x32xf32, #tpu.memory_space<vmem>>, vector<1x32xf32>
      %205 = vector.shape_cast %204 : vector<1x32xf32> to vector<32xf32>
      %206 = vector.shape_cast %205 : vector<32xf32> to vector<1x32xf32>
      %207 = vector.broadcast %206 : vector<1x32xf32> to vector<8x32xf32>
      %208 = arith.addf %203, %207 : vector<8x32xf32>
      %209 = vector.extract_strided_slice %200 {offsets = [0, 0], sizes = [8, 32], strides = [1, 1]} : vector<8x64xf32> to vector<8x32xf32>
      %210 = arith.truncf %209 : vector<8x32xf32> to vector<8x32xbf16>
      %c0_87 = arith.constant 0 : index
      %c0_88 = arith.constant 0 : index
      %211 = vector.load %arg20[%c0_87, %c0_88] : memref<8x32xbf16, #tpu.memory_space<vmem>>, vector<8x32xbf16>
      tpu.vector_store %arg20[%c0_87, %c0_88], %210 {strides = array<i32>} : memref<8x32xbf16, #tpu.memory_space<vmem>>, vector<8x32xbf16>,
      %212 = vector.extract_strided_slice %200 {offsets = [0, 32], sizes = [8, 32], strides = [1, 1]} : vector<8x64xf32> to vector<8x32xf32>
      %213 = tpu.transpose %212, [1, 0] : vector<8x32xf32> -> vector<32x8xf32>
      %214 = arith.truncf %213 : vector<32x8xf32> to vector<32x8xbf16>
      %c0_89 = arith.constant 0 : index
      %c0_90 = arith.constant 0 : index
      %215 = vector.load %arg21[%c0_89, %c0_90] : memref<32x8xbf16, #tpu.memory_space<vmem>>, vector<32x8xbf16>
      tpu.vector_store %arg21[%c0_89, %c0_90], %214 {strides = array<i32>} : memref<32x8xbf16, #tpu.memory_space<vmem>>, vector<32x8xbf16>,
      %216 = arith.truncf %208 : vector<8x32xf32> to vector<8x32xbf16>
      %c0_91 = arith.constant 0 : index
      %c0_92 = arith.constant 0 : index
      %217 = vector.load %arg22[%c0_91, %c0_92] : memref<8x32xbf16, #tpu.memory_space<vmem>>, vector<8x32xbf16>
      tpu.vector_store %arg22[%c0_91, %c0_92], %216 {strides = array<i32>} : memref<8x32xbf16, #tpu.memory_space<vmem>>, vector<8x32xbf16>,
    } else {
    }
    %c8_i32 = arith.constant 8 : i32
    %3 = arith.muli %arg1, %c8_i32 : i32
    %4 = tpu.assume_multiple %3, 8 : i32
    %c0 = arith.constant 0 : index
    %5 = arith.index_cast %4 : i32 to index
    %c0_1 = arith.constant 0 : index
    %6 = vector.load %arg2[%c0, %5, %c0_1] : memref<1x8x32xf32, #tpu.memory_space<vmem>>, vector<1x8x32xf32>
    %7 = vector.shape_cast %6 : vector<1x8x32xf32> to vector<8x32xf32>
    %8 = arith.index_cast %4 : i32 to index
    %c0_2 = arith.constant 0 : index
    %9 = vector.load %arg20[%8, %c0_2] : memref<8x32xbf16, #tpu.memory_space<vmem>>, vector<8x32xbf16>
    %c0_3 = arith.constant 0 : index
    %c0_4 = arith.constant 0 : index
    %10 = vector.load %arg21[%c0_3, %c0_4] : memref<32x8xbf16, #tpu.memory_space<vmem>>, vector<32x8xbf16>
    %c0_5 = arith.constant 0 : index
    %c0_6 = arith.constant 0 : index
    %11 = vector.load %arg22[%c0_5, %c0_6] : memref<8x32xbf16, #tpu.memory_space<vmem>>, vector<8x32xbf16>
    %cst = arith.constant 0.000000e+00 : f32
    %12 = vector.broadcast %cst : f32 to vector<8x32xf32>
    %cst_7 = arith.constant 0.000000e+00 : f32
    %13 = vector.broadcast %cst_7 : f32 to vector<8x8xf32>
    %14 = vector.extract_strided_slice %9 {offsets = [0, 0], sizes = [8, 8], strides = [1, 1]} : vector<8x32xbf16> to vector<8x8xbf16>
    %15 = vector.extract_strided_slice %10 {offsets = [0, 0], sizes = [8, 8], strides = [1, 1]} : vector<32x8xbf16> to vector<8x8xbf16>
    %cst_8 = arith.constant dense<0.000000e+00> : vector<8x8xf32>
    %16 = tpu.matmul %14, %15, %cst_8 {dimension_numbers = #tpu.dot_dimension_numbers<[1], [0], [0], [1], [0, 0, 1, 1], [], []>} : vector<8x8xbf16>, vector<8x8xbf16>, vector<8x8xf32> -> vector<8x8xf32>
    %cst_9 = arith.constant dense<0xFF800000> : vector<8xf32>
    %17 = vector.multi_reduction <maximumf>, %16, %cst_9 [1] : vector<8x8xf32> to vector<8xf32>
    %18 = vector.shape_cast %17 : vector<8xf32> to vector<8x1xf32>
    %19 = vector.broadcast %18 : vector<8x1xf32> to vector<8x8xf32>
    %20 = arith.subf %16, %19 : vector<8x8xf32>
    %21 = math.exp %20 : vector<8x8xf32>
    %cst_10 = arith.constant dense<0.000000e+00> : vector<8xf32>
    %22 = vector.multi_reduction <add>, %21, %cst_10 [1] : vector<8x8xf32> to vector<8xf32>
    %23 = vector.shape_cast %22 : vector<8xf32> to vector<8x1xf32>
    %24 = tpu.reciprocal %23 : vector<8x1xf32> -> vector<8x1xf32>
    %25 = vector.broadcast %24 : vector<8x1xf32> to vector<8x8xf32>
    %26 = arith.mulf %21, %25 : vector<8x8xf32>
    %27 = arith.addf %13, %26 : vector<8x8xf32>
    %28 = arith.truncf %26 : vector<8x8xf32> to vector<8x8xbf16>
    %29 = vector.extract_strided_slice %11 {offsets = [0, 0], sizes = [8, 8], strides = [1, 1]} : vector<8x32xbf16> to vector<8x8xbf16>
    %cst_11 = arith.constant dense<0.000000e+00> : vector<8x8xf32>
    %30 = tpu.matmul %28, %29, %cst_11 {dimension_numbers = #tpu.dot_dimension_numbers<[1], [0], [0], [1], [0, 0, 1, 1], [], []>} : vector<8x8xbf16>, vector<8x8xbf16>, vector<8x8xf32> -> vector<8x8xf32>
    %31 = arith.truncf %30 : vector<8x8xf32> to vector<8x8xbf16>
    %c0_12 = arith.constant 0 : index
    %c0_13 = arith.constant 0 : index
    %32 = vector.load %arg8[%c0_12, %c0_13] : memref<32x32xbf16, #tpu.memory_space<vmem>>, vector<8x32xbf16>
    %cst_14 = arith.constant dense<0.000000e+00> : vector<8x32xf32>
    %33 = tpu.matmul %31, %32, %cst_14 {dimension_numbers = #tpu.dot_dimension_numbers<[1], [0], [0], [1], [0, 0, 1, 1], [], []>} : vector<8x8xbf16>, vector<8x32xbf16>, vector<8x32xf32> -> vector<8x32xf32>
    %34 = arith.addf %12, %33 : vector<8x32xf32>
    %35 = vector.extract_strided_slice %9 {offsets = [0, 8], sizes = [8, 8], strides = [1, 1]} : vector<8x32xbf16> to vector<8x8xbf16>
    %36 = vector.extract_strided_slice %10 {offsets = [8, 0], sizes = [8, 8], strides = [1, 1]} : vector<32x8xbf16> to vector<8x8xbf16>
    %cst_15 = arith.constant dense<0.000000e+00> : vector<8x8xf32>
    %37 = tpu.matmul %35, %36, %cst_15 {dimension_numbers = #tpu.dot_dimension_numbers<[1], [0], [0], [1], [0, 0, 1, 1], [], []>} : vector<8x8xbf16>, vector<8x8xbf16>, vector<8x8xf32> -> vector<8x8xf32>
    %cst_16 = arith.constant dense<0xFF800000> : vector<8xf32>
    %38 = vector.multi_reduction <maximumf>, %37, %cst_16 [1] : vector<8x8xf32> to vector<8xf32>
    %39 = vector.shape_cast %38 : vector<8xf32> to vector<8x1xf32>
    %40 = vector.broadcast %39 : vector<8x1xf32> to vector<8x8xf32>
    %41 = arith.subf %37, %40 : vector<8x8xf32>
    %42 = math.exp %41 : vector<8x8xf32>
    %cst_17 = arith.constant dense<0.000000e+00> : vector<8xf32>
    %43 = vector.multi_reduction <add>, %42, %cst_17 [1] : vector<8x8xf32> to vector<8xf32>
    %44 = vector.shape_cast %43 : vector<8xf32> to vector<8x1xf32>
    %45 = tpu.reciprocal %44 : vector<8x1xf32> -> vector<8x1xf32>
    %46 = vector.broadcast %45 : vector<8x1xf32> to vector<8x8xf32>
    %47 = arith.mulf %42, %46 : vector<8x8xf32>
    %48 = arith.addf %27, %47 : vector<8x8xf32>
    %49 = arith.truncf %47 : vector<8x8xf32> to vector<8x8xbf16>
    %50 = vector.extract_strided_slice %11 {offsets = [0, 8], sizes = [8, 8], strides = [1, 1]} : vector<8x32xbf16> to vector<8x8xbf16>
    %cst_18 = arith.constant dense<0.000000e+00> : vector<8x8xf32>
    %51 = tpu.matmul %49, %50, %cst_18 {dimension_numbers = #tpu.dot_dimension_numbers<[1], [0], [0], [1], [0, 0, 1, 1], [], []>} : vector<8x8xbf16>, vector<8x8xbf16>, vector<8x8xf32> -> vector<8x8xf32>
    %52 = arith.truncf %51 : vector<8x8xf32> to vector<8x8xbf16>
    %c8 = arith.constant 8 : index
    %c0_19 = arith.constant 0 : index
    %53 = vector.load %arg8[%c8, %c0_19] : memref<32x32xbf16, #tpu.memory_space<vmem>>, vector<8x32xbf16>
    %cst_20 = arith.constant dense<0.000000e+00> : vector<8x32xf32>
    %54 = tpu.matmul %52, %53, %cst_20 {dimension_numbers = #tpu.dot_dimension_numbers<[1], [0], [0], [1], [0, 0, 1, 1], [], []>} : vector<8x8xbf16>, vector<8x32xbf16>, vector<8x32xf32> -> vector<8x32xf32>
    %55 = arith.addf %34, %54 : vector<8x32xf32>
    %56 = vector.extract_strided_slice %9 {offsets = [0, 16], sizes = [8, 8], strides = [1, 1]} : vector<8x32xbf16> to vector<8x8xbf16>
    %57 = vector.extract_strided_slice %10 {offsets = [16, 0], sizes = [8, 8], strides = [1, 1]} : vector<32x8xbf16> to vector<8x8xbf16>
    %cst_21 = arith.constant dense<0.000000e+00> : vector<8x8xf32>
    %58 = tpu.matmul %56, %57, %cst_21 {dimension_numbers = #tpu.dot_dimension_numbers<[1], [0], [0], [1], [0, 0, 1, 1], [], []>} : vector<8x8xbf16>, vector<8x8xbf16>, vector<8x8xf32> -> vector<8x8xf32>
    %cst_22 = arith.constant dense<0xFF800000> : vector<8xf32>
    %59 = vector.multi_reduction <maximumf>, %58, %cst_22 [1] : vector<8x8xf32> to vector<8xf32>
    %60 = vector.shape_cast %59 : vector<8xf32> to vector<8x1xf32>
    %61 = vector.broadcast %60 : vector<8x1xf32> to vector<8x8xf32>
    %62 = arith.subf %58, %61 : vector<8x8xf32>
    %63 = math.exp %62 : vector<8x8xf32>
    %cst_23 = arith.constant dense<0.000000e+00> : vector<8xf32>
    %64 = vector.multi_reduction <add>, %63, %cst_23 [1] : vector<8x8xf32> to vector<8xf32>
    %65 = vector.shape_cast %64 : vector<8xf32> to vector<8x1xf32>
    %66 = tpu.reciprocal %65 : vector<8x1xf32> -> vector<8x1xf32>
    %67 = vector.broadcast %66 : vector<8x1xf32> to vector<8x8xf32>
    %68 = arith.mulf %63, %67 : vector<8x8xf32>
    %69 = arith.addf %48, %68 : vector<8x8xf32>
    %70 = arith.truncf %68 : vector<8x8xf32> to vector<8x8xbf16>
    %71 = vector.extract_strided_slice %11 {offsets = [0, 16], sizes = [8, 8], strides = [1, 1]} : vector<8x32xbf16> to vector<8x8xbf16>
    %cst_24 = arith.constant dense<0.000000e+00> : vector<8x8xf32>
    %72 = tpu.matmul %70, %71, %cst_24 {dimension_numbers = #tpu.dot_dimension_numbers<[1], [0], [0], [1], [0, 0, 1, 1], [], []>} : vector<8x8xbf16>, vector<8x8xbf16>, vector<8x8xf32> -> vector<8x8xf32>
    %73 = arith.truncf %72 : vector<8x8xf32> to vector<8x8xbf16>
    %c16 = arith.constant 16 : index
    %c0_25 = arith.constant 0 : index
    %74 = vector.load %arg8[%c16, %c0_25] : memref<32x32xbf16, #tpu.memory_space<vmem>>, vector<8x32xbf16>
    %cst_26 = arith.constant dense<0.000000e+00> : vector<8x32xf32>
    %75 = tpu.matmul %73, %74, %cst_26 {dimension_numbers = #tpu.dot_dimension_numbers<[1], [0], [0], [1], [0, 0, 1, 1], [], []>} : vector<8x8xbf16>, vector<8x32xbf16>, vector<8x32xf32> -> vector<8x32xf32>
    %76 = arith.addf %55, %75 : vector<8x32xf32>
    %77 = vector.extract_strided_slice %9 {offsets = [0, 24], sizes = [8, 8], strides = [1, 1]} : vector<8x32xbf16> to vector<8x8xbf16>
    %78 = vector.extract_strided_slice %10 {offsets = [24, 0], sizes = [8, 8], strides = [1, 1]} : vector<32x8xbf16> to vector<8x8xbf16>
    %cst_27 = arith.constant dense<0.000000e+00> : vector<8x8xf32>
    %79 = tpu.matmul %77, %78, %cst_27 {dimension_numbers = #tpu.dot_dimension_numbers<[1], [0], [0], [1], [0, 0, 1, 1], [], []>} : vector<8x8xbf16>, vector<8x8xbf16>, vector<8x8xf32> -> vector<8x8xf32>
    %cst_28 = arith.constant dense<0xFF800000> : vector<8xf32>
    %80 = vector.multi_reduction <maximumf>, %79, %cst_28 [1] : vector<8x8xf32> to vector<8xf32>
    %81 = vector.shape_cast %80 : vector<8xf32> to vector<8x1xf32>
    %82 = vector.broadcast %81 : vector<8x1xf32> to vector<8x8xf32>
    %83 = arith.subf %79, %82 : vector<8x8xf32>
    %84 = math.exp %83 : vector<8x8xf32>
    %cst_29 = arith.constant dense<0.000000e+00> : vector<8xf32>
    %85 = vector.multi_reduction <add>, %84, %cst_29 [1] : vector<8x8xf32> to vector<8xf32>
    %86 = vector.shape_cast %85 : vector<8xf32> to vector<8x1xf32>
    %87 = tpu.reciprocal %86 : vector<8x1xf32> -> vector<8x1xf32>
    %88 = vector.broadcast %87 : vector<8x1xf32> to vector<8x8xf32>
    %89 = arith.mulf %84, %88 : vector<8x8xf32>
    %90 = arith.addf %69, %89 : vector<8x8xf32>
    %91 = arith.truncf %89 : vector<8x8xf32> to vector<8x8xbf16>
    %92 = vector.extract_strided_slice %11 {offsets = [0, 24], sizes = [8, 8], strides = [1, 1]} : vector<8x32xbf16> to vector<8x8xbf16>
    %cst_30 = arith.constant dense<0.000000e+00> : vector<8x8xf32>
    %93 = tpu.matmul %91, %92, %cst_30 {dimension_numbers = #tpu.dot_dimension_numbers<[1], [0], [0], [1], [0, 0, 1, 1], [], []>} : vector<8x8xbf16>, vector<8x8xbf16>, vector<8x8xf32> -> vector<8x8xf32>
    %94 = arith.truncf %93 : vector<8x8xf32> to vector<8x8xbf16>
    %c24 = arith.constant 24 : index
    %c0_31 = arith.constant 0 : index
    %95 = vector.load %arg8[%c24, %c0_31] : memref<32x32xbf16, #tpu.memory_space<vmem>>, vector<8x32xbf16>
    %cst_32 = arith.constant dense<0.000000e+00> : vector<8x32xf32>
    %96 = tpu.matmul %94, %95, %cst_32 {dimension_numbers = #tpu.dot_dimension_numbers<[1], [0], [0], [1], [0, 0, 1, 1], [], []>} : vector<8x8xbf16>, vector<8x32xbf16>, vector<8x32xf32> -> vector<8x32xf32>
    %97 = arith.addf %76, %96 : vector<8x32xf32>
    %c0_33 = arith.constant 0 : index
    %c0_34 = arith.constant 0 : index
    %98 = vector.load %arg9[%c0_33, %c0_34] : memref<1x32xf32, #tpu.memory_space<vmem>>, vector<1x32xf32>
    %99 = vector.shape_cast %98 : vector<1x32xf32> to vector<32xf32>
    %100 = vector.shape_cast %99 : vector<32xf32> to vector<1x32xf32>
    %101 = vector.broadcast %100 : vector<1x32xf32> to vector<8x32xf32>
    %102 = arith.addf %97, %101 : vector<8x32xf32>
    %103 = arith.addf %7, %102 : vector<8x32xf32>
    %c0_35 = arith.constant 0 : index
    %c0_36 = arith.constant 0 : index
    %104 = vector.load %arg14[%c0_35, %c0_36] : memref<1x32xf32, #tpu.memory_space<vmem>>, vector<1x32xf32>
    %105 = vector.shape_cast %104 : vector<1x32xf32> to vector<32xf32>
    %c0_37 = arith.constant 0 : index
    %c0_38 = arith.constant 0 : index
    %106 = vector.load %arg15[%c0_37, %c0_38] : memref<1x32xf32, #tpu.memory_space<vmem>>, vector<1x32xf32>
    %107 = vector.shape_cast %106 : vector<1x32xf32> to vector<32xf32>
    %cst_39 = arith.constant dense<0.000000e+00> : vector<8xf32>
    %108 = vector.multi_reduction <add>, %103, %cst_39 [1] : vector<8x32xf32> to vector<8xf32>
    %109 = vector.shape_cast %108 : vector<8xf32> to vector<8x1xf32>
    %cst_40 = arith.constant 3.200000e+01 : f32
    %110 = vector.broadcast %cst_40 : f32 to vector<8x1xf32>
    %111 = arith.divf %109, %110 : vector<8x1xf32>
    %112 = vector.broadcast %111 : vector<8x1xf32> to vector<8x32xf32>
    %113 = arith.subf %103, %112 : vector<8x32xf32>
    %114 = arith.mulf %113, %113 : vector<8x32xf32>
    %cst_41 = arith.constant dense<0.000000e+00> : vector<8xf32>
    %115 = vector.multi_reduction <add>, %114, %cst_41 [1] : vector<8x32xf32> to vector<8xf32>
    %116 = vector.shape_cast %115 : vector<8xf32> to vector<8x1xf32>
    %cst_42 = arith.constant 3.200000e+01 : f32
    %117 = vector.broadcast %cst_42 : f32 to vector<8x1xf32>
    %118 = arith.divf %116, %117 : vector<8x1xf32>
    %119 = vector.broadcast %111 : vector<8x1xf32> to vector<8x32xf32>
    %120 = arith.subf %103, %119 : vector<8x32xf32>
    %cst_43 = arith.constant 9.99999974E-6 : f32
    %121 = vector.broadcast %cst_43 : f32 to vector<8x1xf32>
    %122 = arith.addf %118, %121 : vector<8x1xf32>
    %123 = math.rsqrt %122 : vector<8x1xf32>
    %124 = vector.broadcast %123 : vector<8x1xf32> to vector<8x32xf32>
    %125 = arith.mulf %120, %124 : vector<8x32xf32>
    %126 = vector.shape_cast %105 : vector<32xf32> to vector<1x32xf32>
    %127 = vector.broadcast %126 : vector<1x32xf32> to vector<8x32xf32>
    %128 = arith.mulf %125, %127 : vector<8x32xf32>
    %129 = vector.shape_cast %107 : vector<32xf32> to vector<1x32xf32>
    %130 = vector.broadcast %129 : vector<1x32xf32> to vector<8x32xf32>
    %131 = arith.addf %128, %130 : vector<8x32xf32>
    %132 = arith.truncf %131 : vector<8x32xf32> to vector<8x32xbf16>
    %c0_44 = arith.constant 0 : index
    %c0_45 = arith.constant 0 : index
    %133 = vector.load %arg10[%c0_44, %c0_45] : memref<32x64xbf16, #tpu.memory_space<vmem>>, vector<32x64xbf16>
    %cst_46 = arith.constant dense<0.000000e+00> : vector<8x64xf32>
    %134 = tpu.matmul %132, %133, %cst_46 {dimension_numbers = #tpu.dot_dimension_numbers<[1], [0], [0], [1], [0, 0, 1, 1], [], []>} : vector<8x32xbf16>, vector<32x64xbf16>, vector<8x64xf32> -> vector<8x64xf32>
    %c0_47 = arith.constant 0 : index
    %c0_48 = arith.constant 0 : index
    %135 = vector.load %arg11[%c0_47, %c0_48] : memref<1x64xf32, #tpu.memory_space<vmem>>, vector<1x64xf32>
    %136 = vector.shape_cast %135 : vector<1x64xf32> to vector<64xf32>
    %137 = vector.shape_cast %136 : vector<64xf32> to vector<1x64xf32>
    %138 = vector.broadcast %137 : vector<1x64xf32> to vector<8x64xf32>
    %139 = arith.addf %134, %138 : vector<8x64xf32>
    %140 = arith.truncf %139 : vector<8x64xf32> to vector<8x64xbf16>
    %cst_49 = arith.constant 0.000000e+00 : bf16
    %141 = vector.broadcast %cst_49 : bf16 to vector<8x64xbf16>
    %142 = arith.maximumf %140, %141 : vector<8x64xbf16>
    %c0_50 = arith.constant 0 : index
    %c0_51 = arith.constant 0 : index
    %143 = vector.load %arg12[%c0_50, %c0_51] : memref<64x32xbf16, #tpu.memory_space<vmem>>, vector<64x32xbf16>
    %cst_52 = arith.constant dense<0.000000e+00> : vector<8x32xf32>
    %144 = tpu.matmul %142, %143, %cst_52 {dimension_numbers = #tpu.dot_dimension_numbers<[1], [0], [0], [1], [0, 0, 1, 1], [], []>} : vector<8x64xbf16>, vector<64x32xbf16>, vector<8x32xf32> -> vector<8x32xf32>
    %c0_53 = arith.constant 0 : index
    %c0_54 = arith.constant 0 : index
    %145 = vector.load %arg13[%c0_53, %c0_54] : memref<1x32xf32, #tpu.memory_space<vmem>>, vector<1x32xf32>
    %146 = vector.shape_cast %145 : vector<1x32xf32> to vector<32xf32>
    %147 = vector.shape_cast %146 : vector<32xf32> to vector<1x32xf32>
    %148 = vector.broadcast %147 : vector<1x32xf32> to vector<8x32xf32>
    %149 = arith.addf %144, %148 : vector<8x32xf32>
    %150 = arith.addf %131, %149 : vector<8x32xf32>
    %c0_55 = arith.constant 0 : index
    %c0_56 = arith.constant 0 : index
    %151 = vector.load %arg16[%c0_55, %c0_56] : memref<1x32xf32, #tpu.memory_space<vmem>>, vector<1x32xf32>
    %152 = vector.shape_cast %151 : vector<1x32xf32> to vector<32xf32>
    %c0_57 = arith.constant 0 : index
    %c0_58 = arith.constant 0 : index
    %153 = vector.load %arg17[%c0_57, %c0_58] : memref<1x32xf32, #tpu.memory_space<vmem>>, vector<1x32xf32>
    %154 = vector.shape_cast %153 : vector<1x32xf32> to vector<32xf32>
    %cst_59 = arith.constant dense<0.000000e+00> : vector<8xf32>
    %155 = vector.multi_reduction <add>, %150, %cst_59 [1] : vector<8x32xf32> to vector<8xf32>
    %156 = vector.shape_cast %155 : vector<8xf32> to vector<8x1xf32>
    %cst_60 = arith.constant 3.200000e+01 : f32
    %157 = vector.broadcast %cst_60 : f32 to vector<8x1xf32>
    %158 = arith.divf %156, %157 : vector<8x1xf32>
    %159 = vector.broadcast %158 : vector<8x1xf32> to vector<8x32xf32>
    %160 = arith.subf %150, %159 : vector<8x32xf32>
    %161 = arith.mulf %160, %160 : vector<8x32xf32>
    %cst_61 = arith.constant dense<0.000000e+00> : vector<8xf32>
    %162 = vector.multi_reduction <add>, %161, %cst_61 [1] : vector<8x32xf32> to vector<8xf32>
    %163 = vector.shape_cast %162 : vector<8xf32> to vector<8x1xf32>
    %cst_62 = arith.constant 3.200000e+01 : f32
    %164 = vector.broadcast %cst_62 : f32 to vector<8x1xf32>
    %165 = arith.divf %163, %164 : vector<8x1xf32>
    %166 = vector.broadcast %158 : vector<8x1xf32> to vector<8x32xf32>
    %167 = arith.subf %150, %166 : vector<8x32xf32>
    %cst_63 = arith.constant 9.99999974E-6 : f32
    %168 = vector.broadcast %cst_63 : f32 to vector<8x1xf32>
    %169 = arith.addf %165, %168 : vector<8x1xf32>
    %170 = math.rsqrt %169 : vector<8x1xf32>
    %171 = vector.broadcast %170 : vector<8x1xf32> to vector<8x32xf32>
    %172 = arith.mulf %167, %171 : vector<8x32xf32>
    %173 = vector.shape_cast %152 : vector<32xf32> to vector<1x32xf32>
    %174 = vector.broadcast %173 : vector<1x32xf32> to vector<8x32xf32>
    %175 = arith.mulf %172, %174 : vector<8x32xf32>
    %176 = vector.shape_cast %154 : vector<32xf32> to vector<1x32xf32>
    %177 = vector.broadcast %176 : vector<1x32xf32> to vector<8x32xf32>
    %178 = arith.addf %175, %177 : vector<8x32xf32>
    %c0_64 = arith.constant 0 : index
    %c0_65 = arith.constant 0 : index
    %c0_66 = arith.constant 0 : index
    %179 = vector.load %arg18[%c0_64, %c0_65, %c0_66] : memref<1x8x32xf32, #tpu.memory_space<vmem>>, vector<1x8x32xf32>
    %180 = vector.shape_cast %179 : vector<1x8x32xf32> to vector<8x32xf32>
    %181 = vector.shape_cast %178 : vector<8x32xf32> to vector<1x8x32xf32>
    tpu.vector_store %arg18[%c0_64, %c0_65, %c0_66], %181 {strides = array<i32>} : memref<1x8x32xf32, #tpu.memory_space<vmem>>, vector<1x8x32xf32>,
    %cst_67 = arith.constant 2.500000e-01 : f32
    %182 = vector.broadcast %cst_67 : f32 to vector<8x8xf32>
    %183 = arith.mulf %90, %182 : vector<8x8xf32>
    %c0_68 = arith.constant 0 : index
    %c0_69 = arith.constant 0 : index
    %c0_70 = arith.constant 0 : index
    %184 = vector.load %arg19[%c0_68, %c0_69, %c0_70] : memref<1x8x8xf32, #tpu.memory_space<vmem>>, vector<1x8x8xf32>
    %185 = vector.shape_cast %184 : vector<1x8x8xf32> to vector<8x8xf32>
    %186 = vector.shape_cast %183 : vector<8x8xf32> to vector<1x8x8xf32>
    tpu.vector_store %arg19[%c0_68, %c0_69, %c0_70], %186 {strides = array<i32>} : memref<1x8x8xf32, #tpu.memory_space<vmem>>, vector<1x8x8xf32>,
    return
  }
  func.func @transform_0(%arg0: i32, %arg1: i32) -> (i32, i32, i32) {
    %c0_i32 = arith.constant 0 : i32
    %c0_i32_0 = arith.constant 0 : i32
    %c0_i32_1 = arith.constant 0 : i32
    return %arg0, %c0_i32, %c0_i32_0 : i32, i32, i32
  }
  func.func @transform_1(%arg0: i32, %arg1: i32) -> (i32, i32, i32) {
    %c0_i32 = arith.constant 0 : i32
    %c0_i32_0 = arith.constant 0 : i32
    %c0_i32_1 = arith.constant 0 : i32
    return %arg0, %c0_i32, %c0_i32_0 : i32, i32, i32
  }
  func.func @transform_2(%arg0: i32, %arg1: i32) -> (i32, i32) {
    %c0_i32 = arith.constant 0 : i32
    %c0_i32_0 = arith.constant 0 : i32
    %c0_i32_1 = arith.constant 0 : i32
    return %c0_i32, %c0_i32_0 : i32, i32
  }
  func.func @transform_3(%arg0: i32, %arg1: i32) -> (i32, i32) {
    %c0_i32 = arith.constant 0 : i32
    %c0_i32_0 = arith.constant 0 : i32
    %c0_i32_1 = arith.constant 0 : i32
    return %c0_i32, %c0_i32_0 : i32, i32
  }
  func.func @transform_4(%arg0: i32, %arg1: i32) -> (i32, i32) {
    %c0_i32 = arith.constant 0 : i32
    %c0_i32_0 = arith.constant 0 : i32
    %c0_i32_1 = arith.constant 0 : i32
    return %c0_i32, %c0_i32_0 : i32, i32
  }
  func.func @transform_5(%arg0: i32, %arg1: i32) -> (i32, i32) {
    %c0_i32 = arith.constant 0 : i32
    %c0_i32_0 = arith.constant 0 : i32
    %c0_i32_1 = arith.constant 0 : i32
    return %c0_i32, %c0_i32_0 : i32, i32
  }
  func.func @transform_6(%arg0: i32, %arg1: i32) -> (i32, i32) {
    %c0_i32 = arith.constant 0 : i32
    %c0_i32_0 = arith.constant 0 : i32
    %c0_i32_1 = arith.constant 0 : i32
    return %c0_i32, %c0_i32_0 : i32, i32
  }
  func.func @transform_7(%arg0: i32, %arg1: i32) -> (i32, i32) {
    %c0_i32 = arith.constant 0 : i32
    %c0_i32_0 = arith.constant 0 : i32
    %c0_i32_1 = arith.constant 0 : i32
    return %c0_i32, %c0_i32_0 : i32, i32
  }
  func.func @transform_8(%arg0: i32, %arg1: i32) -> (i32, i32) {
    %c0_i32 = arith.constant 0 : i32
    %c0_i32_0 = arith.constant 0 : i32
    %c0_i32_1 = arith.constant 0 : i32
    return %c0_i32, %c0_i32_0 : i32, i32
  }
  func.func @transform_9(%arg0: i32, %arg1: i32) -> (i32, i32) {
    %c0_i32 = arith.constant 0 : i32
    %c0_i32_0 = arith.constant 0 : i32
    %c0_i32_1 = arith.constant 0 : i32
    return %c0_i32, %c0_i32_0 : i32, i32
  }
  func.func @transform_10(%arg0: i32, %arg1: i32) -> (i32, i32) {
    %c0_i32 = arith.constant 0 : i32
    %c0_i32_0 = arith.constant 0 : i32
    %c0_i32_1 = arith.constant 0 : i32
    return %c0_i32, %c0_i32_0 : i32, i32
  }
  func.func @transform_11(%arg0: i32, %arg1: i32) -> (i32, i32) {
    %c0_i32 = arith.constant 0 : i32
    %c0_i32_0 = arith.constant 0 : i32
    %c0_i32_1 = arith.constant 0 : i32
    return %c0_i32, %c0_i32_0 : i32, i32
  }
  func.func @transform_12(%arg0: i32, %arg1: i32) -> (i32, i32) {
    %c0_i32 = arith.constant 0 : i32
    %c0_i32_0 = arith.constant 0 : i32
    %c0_i32_1 = arith.constant 0 : i32
    return %c0_i32, %c0_i32_0 : i32, i32
  }
  func.func @transform_13(%arg0: i32, %arg1: i32) -> (i32, i32) {
    %c0_i32 = arith.constant 0 : i32
    %c0_i32_0 = arith.constant 0 : i32
    %c0_i32_1 = arith.constant 0 : i32
    return %c0_i32, %c0_i32_0 : i32, i32
  }
  func.func @transform_14(%arg0: i32, %arg1: i32) -> (i32, i32) {
    %c0_i32 = arith.constant 0 : i32
    %c0_i32_0 = arith.constant 0 : i32
    %c0_i32_1 = arith.constant 0 : i32
    return %c0_i32, %c0_i32_0 : i32, i32
  }
  func.func @transform_15(%arg0: i32, %arg1: i32) -> (i32, i32) {
    %c0_i32 = arith.constant 0 : i32
    %c0_i32_0 = arith.constant 0 : i32
    %c0_i32_1 = arith.constant 0 : i32
    return %c0_i32, %c0_i32_0 : i32, i32
  }
  func.func @transform_16(%arg0: i32, %arg1: i32) -> (i32, i32, i32) {
    %c0_i32 = arith.constant 0 : i32
    %c0_i32_0 = arith.constant 0 : i32
    return %arg0, %arg1, %c0_i32 : i32, i32, i32
  }
  func.func @transform_17(%arg0: i32, %arg1: i32) -> (i32, i32, i32) {
    %c0_i32 = arith.constant 0 : i32
    %c0_i32_0 = arith.constant 0 : i32
    return %arg0, %arg1, %c0_i32 : i32, i32, i32
  }
}

</mosaic_0001>

<llo_original>
// kernel: tpu_custom_call.1
$region0: #{tpu_custom_call.1}
  #allocation0 [shape = 'u32[]', space=smem, size = 0x4, offset = 0x4, fixed_abs, tag = 'smem constant byte address 0x4 - core index']
  #allocation1 [shape = 'u32[144,128]{1,0:T(1,128)}', space=vmem, size = 0x12000, scoped, tag = 'internal scratch']
  #allocation2 [shape = 'bf16[8,32]{1,0:T(8,128)(2,1)}', space=vmem, size = 0x800, scoped, tag = 'scratch operand']
  #allocation3 [shape = 'bf16[32,8]{1,0:T(8,128)(2,1)}', space=vmem, size = 0x2000, scoped, tag = 'scratch operand']
  #allocation4 [shape = 'bf16[8,32]{1,0:T(8,128)(2,1)}', space=vmem, size = 0x800, scoped, tag = 'scratch operand']
  %s0 = inlined_call_operand.vmem [shape: f32[2,8,32], index: 0, kind: input, shape index: {}]
  %s1 = inlined_call_operand.vmem [shape: f32[2,8,32], index: 1, kind: input, shape index: {}]
  %s2 = inlined_call_operand.vmem [shape: bf16[32,64], index: 2, kind: input, shape index: {}]
  %s3 = inlined_call_operand.vmem [shape: f32[1,64], index: 3, kind: input, shape index: {}]
  %s4 = inlined_call_operand.hbm [shape: bf16[32,32], index: 4, kind: input, shape index: {}]
  %s5 = inlined_call_operand.vmem [shape: f32[1,32], index: 5, kind: input, shape index: {}]
  %s6 = inlined_call_operand.hbm [shape: bf16[32,32], index: 6, kind: input, shape index: {}]
  %s7 = inlined_call_operand.hbm [shape: f32[1,32], index: 7, kind: input, shape index: {}]
  %s8 = inlined_call_operand.hbm [shape: bf16[32,64], index: 8, kind: input, shape index: {}]
  %s9 = inlined_call_operand.hbm [shape: f32[1,64], index: 9, kind: input, shape index: {}]
  %s10 = inlined_call_operand.vmem [shape: bf16[64,32], index: 10, kind: input, shape index: {}]
  %s11 = inlined_call_operand.vmem [shape: f32[1,32], index: 11, kind: input, shape index: {}]
  %s12 = inlined_call_operand.vmem [shape: f32[1,32], index: 12, kind: input, shape index: {}]
  %s13 = inlined_call_operand.vmem [shape: f32[1,32], index: 13, kind: input, shape index: {}]
  %s14 = inlined_call_operand.vmem [shape: f32[1,32], index: 14, kind: input, shape index: {}]
  %s15 = inlined_call_operand.vmem [shape: f32[1,32], index: 15, kind: input, shape index: {}]
  %s16 = inlined_call_operand.hbm [shape: f32[2,8,32], index: 16, kind: output, shape index: {0}]
  %s17 = inlined_call_operand.hbm [shape: f32[2,8,8], index: 17, kind: output, shape index: {1}]
  %18 = xla_tuple %s16, %s17
  %s19 = sld [smem:[#allocation0]]
  $region129: #{tpu_custom_call.1} parent=0
    _
  %s21 = ssub.s32 1, %s19
  %s22 = scalar_select 0, %s21, %s19
  $region1: #{tpu_custom_call.1} parent=0
    #allocation5 [shape = 'u8[8192]{0}', space=vmem, size = 0x2000, scoped, tag = 'input window, operand 4, single buffered']
    #allocation6 [shape = 's32[2]{0}', space=sflag, size = 0x8, scoped, tag = 'scoped memory for tpu_custom_call.1']
    #allocation7 [shape = 's32[2]{0}', space=sflag, size = 0x8, scoped, tag = 'scoped memory for tpu_custom_call.1']
    #allocation8 [shape = 'u8[8192]{0}', space=vmem, size = 0x2000, scoped, tag = 'input window, operand 6, single buffered']
    #allocation9 [shape = 's32[1]{0}', space=sflag, size = 0x4, scoped, tag = 'scoped memory for tpu_custom_call.1']
    #allocation10 [shape = 'u8[512]{0}', space=vmem, size = 0x400, scoped, tag = 'input window, operand 7, single buffered']
    #allocation11 [shape = 'u8[8192]{0}', space=vmem, size = 0x2000, scoped, tag = 'input window, operand 8, single buffered']
    #allocation12 [shape = 's32[1]{0}', space=sflag, size = 0x4, scoped, tag = 'scoped memory for tpu_custom_call.1']
    #allocation13 [shape = 'u8[512]{0}', space=vmem, size = 0x400, scoped, tag = 'input window, operand 9, single buffered']
    #allocation14 [shape = 'u8[8192]{0}', space=vmem, size = 0x2000, scoped, tag = 'output window, operand 0']
    #allocation15 [shape = 'u8[8192]{0}', space=vmem, size = 0x2000, scoped, tag = 'output window, operand 1']
    #allocation16 [shape = 's32[2]{0}', space=sflag, size = 0x8, scoped, tag = 'scoped memory for tpu_custom_call.1']
    %23 = vsyncpa [#allocation6], 0
    %24 = vsyncpa [#allocation9], 0
    %25 = vsyncpa [#allocation12], 0
    %26 = vsyncpa [#allocation7], 0
    %s27 = scalar_lea.sflag [#allocation7], 1
    %28 = vsyncpa %s27, 0
    %29 = vsyncpa [#allocation16], 0
    %s30 = scalar_lea.sflag [#allocation16], 1
    %31 = vsyncpa %s30, 0
    loop: start=0, step=1, limit=4
    $region2: #{tpu_custom_call.1} parent=1 // loop_pre_header
      _
    $region3: #{tpu_custom_call.1} parent=1 // loop_header
      %s33 = sphi 0, %s37
      %p34 = scmp.ge.s32.totalorder %s33, 4
      %s40 = sphi 0, %s52
      %s41 = sphi 0, %s48
      %s42 = sphi 0, %s40
      %s43 = sphi 0, %s41
      %s44 = sphi 0, %s42
      %s45 = sphi 0, %s43
      %s55 = sphi 0, %s57
      %s58 = sphi 0, %s55
      %s59 = sphi 0, %s58
      %s75 = sphi 0, %s59
      %s81 = sphi 0, %s83
      %s84 = sphi 0, %s81
      %s85 = sphi 0, %s84
      %s101 = sphi 0, %s85
      %s105 = sphi 0, %s105
      %s107 = sphi 0, %s105
      %s108 = sphi 0, %s107
      %s122 = sphi 0, %s108
      %s126 = sphi 0, %s126
      %s128 = sphi 0, %s126
      %s129 = sphi 0, %s128
      %s143 = sphi 0, %s129
      %s147 = sphi 0, %s147
      %s149 = sphi 0, %s147
      %s150 = sphi 0, %s149
      %s164 = sphi 0, %s150
      %s168 = sphi 0, %s168
      %s170 = sphi 0, %s168
      %s171 = sphi 0, %s170
      %s185 = sphi 0, %s171
      %s189 = sphi 0, %s189
      %s191 = sphi 0, %s189
      %s192 = sphi 0, %s191
      %s206 = sphi 0, %s192
      %s210 = sphi 0, %s210
      %s212 = sphi 0, %s210
      %s213 = sphi 0, %s212
      %s227 = sphi 0, %s213
      %s231 = sphi 0, %s231
      %s233 = sphi 0, %s231
      %s234 = sphi 0, %s233
      %s248 = sphi 0, %s234
      %s252 = sphi 0, %s252
      %s254 = sphi 0, %s252
      %s255 = sphi 0, %s254
      %s269 = sphi 0, %s255
      %s273 = sphi 0, %s273
      %s275 = sphi 0, %s273
      %s276 = sphi 0, %s275
      %s290 = sphi 0, %s276
      %s294 = sphi 0, %s294
      %s296 = sphi 0, %s294
      %s297 = sphi 0, %s296
      %s311 = sphi 0, %s297
      %s315 = sphi 0, %s315
      %s317 = sphi 0, %s315
      %s318 = sphi 0, %s317
      %s332 = sphi 0, %s318
      %s336 = sphi 0, %s336
      %s338 = sphi 0, %s336
      %s339 = sphi 0, %s338
      %s353 = sphi 0, %s339
      %s357 = sphi 0, %s357
      %s359 = sphi 0, %s357
      %s360 = sphi 0, %s359
      %s374 = sphi 0, %s360
      %s378 = sphi 0, %s378
      %s380 = sphi 0, %s378
      %s381 = sphi 0, %s380
      %s395 = sphi 0, %s381
      %s403 = sphi 0, %s405
      %s406 = sphi 0, %s403
      %s407 = sphi 0, %s406
      %s423 = sphi 0, %s407
      %s431 = sphi 0, %s433
      %s434 = sphi 0, %s431
      %s435 = sphi 0, %s434
      %s451 = sphi 0, %s435
    $region4: #{tpu_custom_call.1} parent=1 // loop_header_branch
      %36 = sbr.rel (%p34) target = $region8
    $region5: #{tpu_custom_call.1} parent=1 // loop_body
      %s38 = ssub.s32 %s33, 1
      %s39 = ssub.s32 %s33, 2
      %s46 = sadd.s32 1, %s41
      %p47 = scmp.ge.s32.totalorder %s46, 1
      %s48 = scalar_select %p47, 0, %s46
      %s49 = sadd.s32 1, %s40
      %s50 = scalar_select %p47, %s49, %s40
      %p51 = scmp.ge.s32.totalorder %s50, 2
      %s52 = scalar_select %p51, 0, %s50
      %s53 = ssub.s32 %s40, %s52
      %p54 = scmp.eq.s32.totalorder %s53, 0
      %s56 = sadd.s32 %s55, 1
      %s57 = scalar_select %p54, %s55, %s56
      %p60 = pneg %p54
      %p61 = scmp.eq.s32.totalorder %s33, 1
      %p62 = por %p60, %p61
      %p63 = scmp.ne.s32.totalorder %s55, %s58
      %p64 = scmp.eq.s32.totalorder %s33, 0
      %p65 = por %p63, %p64
      %p66 = scmp.ne.s32.totalorder %s55, %s58
      %p67 = scmp.eq.s32.totalorder %s38, 1
      %p68 = por %p66, %p67
      %p69 = scmp.ne.s32.totalorder %s58, %s59
      %p70 = scmp.eq.s32.totalorder %s38, 0
      %p71 = por %p69, %p70
      %p72 = scmp.ne.s32.totalorder %s58, %s59
      %p73 = scmp.eq.s32.totalorder %s39, 1
      %p74 = por %p72, %p73
      %p76 = scmp.ne.s32.totalorder %s59, %s75
      %p77 = scmp.eq.s32.totalorder %s39, 0
      %p78 = por %p76, %p77
      %s79 = ssub.s32 %s40, %s52
      %p80 = scmp.eq.s32.totalorder %s79, 0
      %s82 = sadd.s32 %s81, 1
      %s83 = scalar_select %p80, %s81, %s82
      %p86 = pneg %p80
      %p87 = scmp.eq.s32.totalorder %s33, 1
      %p88 = por %p86, %p87
      %p89 = scmp.ne.s32.totalorder %s81, %s84
      %p90 = scmp.eq.s32.totalorder %s33, 0
      %p91 = por %p89, %p90
      %p92 = scmp.ne.s32.totalorder %s81, %s84
      %p93 = scmp.eq.s32.totalorder %s38, 1
      %p94 = por %p92, %p93
      %p95 = scmp.ne.s32.totalorder %s84, %s85
      %p96 = scmp.eq.s32.totalorder %s38, 0
      %p97 = por %p95, %p96
      %p98 = scmp.ne.s32.totalorder %s84, %s85
      %p99 = scmp.eq.s32.totalorder %s39, 1
      %p100 = por %p98, %p99
      %p102 = scmp.ne.s32.totalorder %s85, %s101
      %p103 = scmp.eq.s32.totalorder %s39, 0
      %p104 = por %p102, %p103
      %s106 = sadd.s32 %s105, 1
      %p109 = scmp.eq.s32.totalorder %s33, 1
      %p110 = scmp.ne.s32.totalorder %s105, %s107
      %p111 = scmp.eq.s32.totalorder %s33, 0
      %p112 = por %p110, %p111
      %p113 = scmp.ne.s32.totalorder %s105, %s107
      %p114 = scmp.eq.s32.totalorder %s38, 1
      %p115 = por %p113, %p114
      %p116 = scmp.ne.s32.totalorder %s107, %s108
      %p117 = scmp.eq.s32.totalorder %s38, 0
      %p118 = por %p116, %p117
      %p119 = scmp.ne.s32.totalorder %s107, %s108
      %p120 = scmp.eq.s32.totalorder %s39, 1
      %p121 = por %p119, %p120
      %p123 = scmp.ne.s32.totalorder %s108, %s122
      %p124 = scmp.eq.s32.totalorder %s39, 0
      %p125 = por %p123, %p124
      %s127 = sadd.s32 %s126, 1
      %p130 = scmp.eq.s32.totalorder %s33, 1
      %p131 = scmp.ne.s32.totalorder %s126, %s128
      %p132 = scmp.eq.s32.totalorder %s33, 0
      %p133 = por %p131, %p132
      %p134 = scmp.ne.s32.totalorder %s126, %s128
      %p135 = scmp.eq.s32.totalorder %s38, 1
      %p136 = por %p134, %p135
      %p137 = scmp.ne.s32.totalorder %s128, %s129
      %p138 = scmp.eq.s32.totalorder %s38, 0
      %p139 = por %p137, %p138
      %p140 = scmp.ne.s32.totalorder %s128, %s129
      %p141 = scmp.eq.s32.totalorder %s39, 1
      %p142 = por %p140, %p141
      %p144 = scmp.ne.s32.totalorder %s129, %s143
      %p145 = scmp.eq.s32.totalorder %s39, 0
      %p146 = por %p144, %p145
      %s148 = sadd.s32 %s147, 1
      %p151 = scmp.eq.s32.totalorder %s33, 1
      %p152 = scmp.ne.s32.totalorder %s147, %s149
      %p153 = scmp.eq.s32.totalorder %s33, 0
      %p154 = por %p152, %p153
      %p155 = scmp.ne.s32.totalorder %s147, %s149
      %p156 = scmp.eq.s32.totalorder %s38, 1
      %p157 = por %p155, %p156
      %p158 = scmp.ne.s32.totalorder %s149, %s150
      %p159 = scmp.eq.s32.totalorder %s38, 0
      %p160 = por %p158, %p159
      %p161 = scmp.ne.s32.totalorder %s149, %s150
      %p162 = scmp.eq.s32.totalorder %s39, 1
      %p163 = por %p161, %p162
      %p165 = scmp.ne.s32.totalorder %s150, %s164
      %p166 = scmp.eq.s32.totalorder %s39, 0
      %p167 = por %p165, %p166
      %s169 = sadd.s32 %s168, 1
      %p172 = scmp.eq.s32.totalorder %s33, 1
      %p173 = scmp.ne.s32.totalorder %s168, %s170
      %p174 = scmp.eq.s32.totalorder %s33, 0
      %p175 = por %p173, %p174
      %p176 = scmp.ne.s32.totalorder %s168, %s170
      %p177 = scmp.eq.s32.totalorder %s38, 1
      %p178 = por %p176, %p177
      %p179 = scmp.ne.s32.totalorder %s170, %s171
      %p180 = scmp.eq.s32.totalorder %s38, 0
      %p181 = por %p179, %p180
      %p182 = scmp.ne.s32.totalorder %s170, %s171
      %p183 = scmp.eq.s32.totalorder %s39, 1
      %p184 = por %p182, %p183
      %p186 = scmp.ne.s32.totalorder %s171, %s185
      %p187 = scmp.eq.s32.totalorder %s39, 0
      %p188 = por %p186, %p187
      %s190 = sadd.s32 %s189, 1
      %p193 = scmp.eq.s32.totalorder %s33, 1
      %p194 = scmp.ne.s32.totalorder %s189, %s191
      %p195 = scmp.eq.s32.totalorder %s33, 0
      %p196 = por %p194, %p195
      %p197 = scmp.ne.s32.totalorder %s189, %s191
      %p198 = scmp.eq.s32.totalorder %s38, 1
      %p199 = por %p197, %p198
      %p200 = scmp.ne.s32.totalorder %s191, %s192
      %p201 = scmp.eq.s32.totalorder %s38, 0
      %p202 = por %p200, %p201
      %p203 = scmp.ne.s32.totalorder %s191, %s192
      %p204 = scmp.eq.s32.totalorder %s39, 1
      %p205 = por %p203, %p204
      %p207 = scmp.ne.s32.totalorder %s192, %s206
      %p208 = scmp.eq.s32.totalorder %s39, 0
      %p209 = por %p207, %p208
      %s211 = sadd.s32 %s210, 1
      %p214 = scmp.eq.s32.totalorder %s33, 1
      %p215 = scmp.ne.s32.totalorder %s210, %s212
      %p216 = scmp.eq.s32.totalorder %s33, 0
      %p217 = por %p215, %p216
      %p218 = scmp.ne.s32.totalorder %s210, %s212
      %p219 = scmp.eq.s32.totalorder %s38, 1
      %p220 = por %p218, %p219
      %p221 = scmp.ne.s32.totalorder %s212, %s213
      %p222 = scmp.eq.s32.totalorder %s38, 0
      %p223 = por %p221, %p222
      %p224 = scmp.ne.s32.totalorder %s212, %s213
      %p225 = scmp.eq.s32.totalorder %s39, 1
      %p226 = por %p224, %p225
      %p228 = scmp.ne.s32.totalorder %s213, %s227
      %p229 = scmp.eq.s32.totalorder %s39, 0
      %p230 = por %p228, %p229
      %s232 = sadd.s32 %s231, 1
      %p235 = scmp.eq.s32.totalorder %s33, 1
      %p236 = scmp.ne.s32.totalorder %s231, %s233
      %p237 = scmp.eq.s32.totalorder %s33, 0
      %p238 = por %p236, %p237
      %p239 = scmp.ne.s32.totalorder %s231, %s233
      %p240 = scmp.eq.s32.totalorder %s38, 1
      %p241 = por %p239, %p240
      %p242 = scmp.ne.s32.totalorder %s233, %s234
      %p243 = scmp.eq.s32.totalorder %s38, 0
      %p244 = por %p242, %p243
      %p245 = scmp.ne.s32.totalorder %s233, %s234
      %p246 = scmp.eq.s32.totalorder %s39, 1
      %p247 = por %p245, %p246
      %p249 = scmp.ne.s32.totalorder %s234, %s248
      %p250 = scmp.eq.s32.totalorder %s39, 0
      %p251 = por %p249, %p250
      %s253 = sadd.s32 %s252, 1
      %p256 = scmp.eq.s32.totalorder %s33, 1
      %p257 = scmp.ne.s32.totalorder %s252, %s254
      %p258 = scmp.eq.s32.totalorder %s33, 0
      %p259 = por %p257, %p258
      %p260 = scmp.ne.s32.totalorder %s252, %s254
      %p261 = scmp.eq.s32.totalorder %s38, 1
      %p262 = por %p260, %p261
      %p263 = scmp.ne.s32.totalorder %s254, %s255
      %p264 = scmp.eq.s32.totalorder %s38, 0
      %p265 = por %p263, %p264
      %p266 = scmp.ne.s32.totalorder %s254, %s255
      %p267 = scmp.eq.s32.totalorder %s39, 1
      %p268 = por %p266, %p267
      %p270 = scmp.ne.s32.totalorder %s255, %s269
      %p271 = scmp.eq.s32.totalorder %s39, 0
      %p272 = por %p270, %p271
      %s274 = sadd.s32 %s273, 1
      %p277 = scmp.eq.s32.totalorder %s33, 1
      %p278 = scmp.ne.s32.totalorder %s273, %s275
      %p279 = scmp.eq.s32.totalorder %s33, 0
      %p280 = por %p278, %p279
      %p281 = scmp.ne.s32.totalorder %s273, %s275
      %p282 = scmp.eq.s32.totalorder %s38, 1
      %p283 = por %p281, %p282
      %p284 = scmp.ne.s32.totalorder %s275, %s276
      %p285 = scmp.eq.s32.totalorder %s38, 0
      %p286 = por %p284, %p285
      %p287 = scmp.ne.s32.totalorder %s275, %s276
      %p288 = scmp.eq.s32.totalorder %s39, 1
      %p289 = por %p287, %p288
      %p291 = scmp.ne.s32.totalorder %s276, %s290
      %p292 = scmp.eq.s32.totalorder %s39, 0
      %p293 = por %p291, %p292
      %s295 = sadd.s32 %s294, 1
      %p298 = scmp.eq.s32.totalorder %s33, 1
      %p299 = scmp.ne.s32.totalorder %s294, %s296
      %p300 = scmp.eq.s32.totalorder %s33, 0
      %p301 = por %p299, %p300
      %p302 = scmp.ne.s32.totalorder %s294, %s296
      %p303 = scmp.eq.s32.totalorder %s38, 1
      %p304 = por %p302, %p303
      %p305 = scmp.ne.s32.totalorder %s296, %s297
      %p306 = scmp.eq.s32.totalorder %s38, 0
      %p307 = por %p305, %p306
      %p308 = scmp.ne.s32.totalorder %s296, %s297
      %p309 = scmp.eq.s32.totalorder %s39, 1
      %p310 = por %p308, %p309
      %p312 = scmp.ne.s32.totalorder %s297, %s311
      %p313 = scmp.eq.s32.totalorder %s39, 0
      %p314 = por %p312, %p313
      %s316 = sadd.s32 %s315, 1
      %p319 = scmp.eq.s32.totalorder %s33, 1
      %p320 = scmp.ne.s32.totalorder %s315, %s317
      %p321 = scmp.eq.s32.totalorder %s33, 0
      %p322 = por %p320, %p321
      %p323 = scmp.ne.s32.totalorder %s315, %s317
      %p324 = scmp.eq.s32.totalorder %s38, 1
      %p325 = por %p323, %p324
      %p326 = scmp.ne.s32.totalorder %s317, %s318
      %p327 = scmp.eq.s32.totalorder %s38, 0
      %p328 = por %p326, %p327
      %p329 = scmp.ne.s32.totalorder %s317, %s318
      %p330 = scmp.eq.s32.totalorder %s39, 1
      %p331 = por %p329, %p330
      %p333 = scmp.ne.s32.totalorder %s318, %s332
      %p334 = scmp.eq.s32.totalorder %s39, 0
      %p335 = por %p333, %p334
      %s337 = sadd.s32 %s336, 1
      %p340 = scmp.eq.s32.totalorder %s33, 1
      %p341 = scmp.ne.s32.totalorder %s336, %s338
      %p342 = scmp.eq.s32.totalorder %s33, 0
      %p343 = por %p341, %p342
      %p344 = scmp.ne.s32.totalorder %s336, %s338
      %p345 = scmp.eq.s32.totalorder %s38, 1
      %p346 = por %p344, %p345
      %p347 = scmp.ne.s32.totalorder %s338, %s339
      %p348 = scmp.eq.s32.totalorder %s38, 0
      %p349 = por %p347, %p348
      %p350 = scmp.ne.s32.totalorder %s338, %s339
      %p351 = scmp.eq.s32.totalorder %s39, 1
      %p352 = por %p350, %p351
      %p354 = scmp.ne.s32.totalorder %s339, %s353
      %p355 = scmp.eq.s32.totalorder %s39, 0
      %p356 = por %p354, %p355
      %s358 = sadd.s32 %s357, 1
      %p361 = scmp.eq.s32.totalorder %s33, 1
      %p362 = scmp.ne.s32.totalorder %s357, %s359
      %p363 = scmp.eq.s32.totalorder %s33, 0
      %p364 = por %p362, %p363
      %p365 = scmp.ne.s32.totalorder %s357, %s359
      %p366 = scmp.eq.s32.totalorder %s38, 1
      %p367 = por %p365, %p366
      %p368 = scmp.ne.s32.totalorder %s359, %s360
      %p369 = scmp.eq.s32.totalorder %s38, 0
      %p370 = por %p368, %p369
      %p371 = scmp.ne.s32.totalorder %s359, %s360
      %p372 = scmp.eq.s32.totalorder %s39, 1
      %p373 = por %p371, %p372
      %p375 = scmp.ne.s32.totalorder %s360, %s374
      %p376 = scmp.eq.s32.totalorder %s39, 0
      %p377 = por %p375, %p376
      %s379 = sadd.s32 %s378, 1
      %p382 = scmp.eq.s32.totalorder %s33, 1
      %p383 = scmp.ne.s32.totalorder %s378, %s380
      %p384 = scmp.eq.s32.totalorder %s33, 0
      %p385 = por %p383, %p384
      %p386 = scmp.ne.s32.totalorder %s378, %s380
      %p387 = scmp.eq.s32.totalorder %s38, 1
      %p388 = por %p386, %p387
      %p389 = scmp.ne.s32.totalorder %s380, %s381
      %p390 = scmp.eq.s32.totalorder %s38, 0
      %p391 = por %p389, %p390
      %p392 = scmp.ne.s32.totalorder %s380, %s381
      %p393 = scmp.eq.s32.totalorder %s39, 1
      %p394 = por %p392, %p393
      %p396 = scmp.ne.s32.totalorder %s381, %s395
      %p397 = scmp.eq.s32.totalorder %s39, 0
      %p398 = por %p396, %p397
      %s399 = ssub.s32 %s40, %s52
      %s400 = ssub.s32 %s41, %s48
      %s401 = sor.u32 %s399, %s400
      %p402 = scmp.eq.s32.totalorder %s401, 0
      %s404 = sadd.s32 %s403, 1
      %s405 = scalar_select %p402, %s403, %s404
      %p408 = pneg %p402
      %p409 = scmp.eq.s32.totalorder %s33, 1
      %p410 = por %p408, %p409
      %p411 = scmp.ne.s32.totalorder %s403, %s406
      %p412 = scmp.eq.s32.totalorder %s33, 0
      %p413 = por %p411, %p412
      %p414 = scmp.ne.s32.totalorder %s403, %s406
      %p415 = scmp.eq.s32.totalorder %s38, 1
      %p416 = por %p414, %p415
      %p417 = scmp.ne.s32.totalorder %s406, %s407
      %p418 = scmp.eq.s32.totalorder %s38, 0
      %p419 = por %p417, %p418
      %p420 = scmp.ne.s32.totalorder %s406, %s407
      %p421 = scmp.eq.s32.totalorder %s39, 1
      %p422 = por %p420, %p421
      %p424 = scmp.ne.s32.totalorder %s407, %s423
      %p425 = scmp.eq.s32.totalorder %s39, 0
      %p426 = por %p424, %p425
      %s427 = ssub.s32 %s40, %s52
      %s428 = ssub.s32 %s41, %s48
      %s429 = sor.u32 %s427, %s428
      %p430 = scmp.eq.s32.totalorder %s429, 0
      %s432 = sadd.s32 %s431, 1
      %s433 = scalar_select %p430, %s431, %s432
      %p436 = pneg %p430
      %p437 = scmp.eq.s32.totalorder %s33, 1
      %p438 = por %p436, %p437
      %p439 = scmp.ne.s32.totalorder %s431, %s434
      %p440 = scmp.eq.s32.totalorder %s33, 0
      %p441 = por %p439, %p440
      %p442 = scmp.ne.s32.totalorder %s431, %s434
      %p443 = scmp.eq.s32.totalorder %s38, 1
      %p444 = por %p442, %p443
      %p445 = scmp.ne.s32.totalorder %s434, %s435
      %p446 = scmp.eq.s32.totalorder %s38, 0
      %p447 = por %p445, %p446
      %p448 = scmp.ne.s32.totalorder %s434, %s435
      %p449 = scmp.eq.s32.totalorder %s39, 1
      %p450 = por %p448, %p449
      %p452 = scmp.ne.s32.totalorder %s435, %s451
      %p453 = scmp.eq.s32.totalorder %s39, 0
      %p454 = por %p452, %p453
      %p455 = scmp.le.s32.totalorder 1, %s33
      %p456 = scmp.lt.s32.totalorder %s33, 3
      %p457 = pnand %p455, %p456
      %p458 = pneg %p457
      // Predicated region
      $region9: #{tpu_custom_call.1} parent=5 // pred_check
        _
      $region10: #{tpu_custom_call.1} parent=5 // pred_check_branch
        %460 = sbr.rel (%p457) target = $region12
      $region11: #{tpu_custom_call.1} parent=5 // pred_region
        %s461 = ssub.s32 %s33, 1
        // Predicated region
        $region13: #{tpu_custom_call.1} parent=11 // pred_check
          %p462 = pneg %p118
        $region14: #{tpu_custom_call.1} parent=11 // pred_check_branch
          %464 = sbr.rel (%p462) target = $region16
        $region15: #{tpu_custom_call.1} parent=11 // pred_region
          _
        $region16: #{tpu_custom_call.1} parent=11 // pred_fallthru
          _
        // Predicated region
        $region17: #{tpu_custom_call.1} parent=11 // pred_check
          %p465 = pneg %p139
        $region18: #{tpu_custom_call.1} parent=11 // pred_check_branch
          %467 = sbr.rel (%p465) target = $region20
        $region19: #{tpu_custom_call.1} parent=11 // pred_region
          _
        $region20: #{tpu_custom_call.1} parent=11 // pred_fallthru
          _
        // Predicated region
        $region21: #{tpu_custom_call.1} parent=11 // pred_check
          %p468 = pneg %p160
        $region22: #{tpu_custom_call.1} parent=11 // pred_check_branch
          %470 = sbr.rel (%p468) target = $region24
        $region23: #{tpu_custom_call.1} parent=11 // pred_region
          %s472 = ssub.s32 256, 256
          %473 = vsyncadd [#allocation6], %s472
          %s474 = sshll.u32 [#allocation5], 4
          %s475 = int_to_ptr.vmem [resolvable:$true] %s474
          %480 = dma.hbm_to_vmem [thread:$0]  %s4, 256, %s475, [#allocation6], 64, 64, 4
        $region24: #{tpu_custom_call.1} parent=11 // pred_fallthru
          _
        // Predicated region
        $region25: #{tpu_custom_call.1} parent=11 // pred_check
          %p481 = pneg %p181
        $region26: #{tpu_custom_call.1} parent=11 // pred_check_branch
          %483 = sbr.rel (%p481) target = $region28
        $region27: #{tpu_custom_call.1} parent=11 // pred_region
          _
        $region28: #{tpu_custom_call.1} parent=11 // pred_fallthru
          _
        // Predicated region
        $region29: #{tpu_custom_call.1} parent=11 // pred_check
          %p484 = pneg %p202
        $region30: #{tpu_custom_call.1} parent=11 // pred_check_branch
          %486 = sbr.rel (%p484) target = $region32
        $region31: #{tpu_custom_call.1} parent=11 // pred_region
          %s488 = ssub.s32 256, 256
          %489 = vsyncadd [#allocation9], %s488
          %s490 = sshll.u32 [#allocation8], 4
          %s491 = int_to_ptr.vmem [resolvable:$true] %s490
          %496 = dma.hbm_to_vmem [thread:$0]  %s6, 256, %s491, [#allocation9], 64, 64, 4
        $region32: #{tpu_custom_call.1} parent=11 // pred_fallthru
          _
        // Predicated region
        $region33: #{tpu_custom_call.1} parent=11 // pred_check
          %p497 = pneg %p223
        $region34: #{tpu_custom_call.1} parent=11 // pred_check_branch
          %499 = sbr.rel (%p497) target = $region36
        $region35: #{tpu_custom_call.1} parent=11 // pred_region
          %s501 = ssub.s32 16, 16
          %502 = vsyncadd [#allocation9], %s501
          %s504 = sshll.u32 [#allocation10], 4
          %s505 = int_to_ptr.vmem [resolvable:$true] %s504
          %507 = dma.hbm_to_vmem [thread:$0]  %s7, 16, %s505, [#allocation9]
        $region36: #{tpu_custom_call.1} parent=11 // pred_fallthru
          _
        // Predicated region
        $region37: #{tpu_custom_call.1} parent=11 // pred_check
          %p508 = pneg %p244
        $region38: #{tpu_custom_call.1} parent=11 // pred_check_branch
          %510 = sbr.rel (%p508) target = $region40
        $region39: #{tpu_custom_call.1} parent=11 // pred_region
          %s512 = ssub.s32 256, 256
          %513 = vsyncadd [#allocation12], %s512
          %s514 = sshll.u32 [#allocation11], 4
          %s515 = int_to_ptr.vmem [resolvable:$true] %s514
          %520 = dma.hbm_to_vmem [thread:$0]  %s8, 256, %s515, [#allocation12], 64, 64, 4
        $region40: #{tpu_custom_call.1} parent=11 // pred_fallthru
          _
        // Predicated region
        $region41: #{tpu_custom_call.1} parent=11 // pred_check
          %p521 = pneg %p265
        $region42: #{tpu_custom_call.1} parent=11 // pred_check_branch
          %523 = sbr.rel (%p521) target = $region44
        $region43: #{tpu_custom_call.1} parent=11 // pred_region
          %s525 = ssub.s32 16, 16
          %526 = vsyncadd [#allocation12], %s525
          %s528 = sshll.u32 [#allocation13], 4
          %s529 = int_to_ptr.vmem [resolvable:$true] %s528
          %531 = dma.hbm_to_vmem [thread:$0]  %s9, 16, %s529, [#allocation12]
        $region44: #{tpu_custom_call.1} parent=11 // pred_fallthru
          _
        // Predicated region
        $region45: #{tpu_custom_call.1} parent=11 // pred_check
          %p532 = pneg %p286
        $region46: #{tpu_custom_call.1} parent=11 // pred_check_branch
          %534 = sbr.rel (%p532) target = $region48
        $region47: #{tpu_custom_call.1} parent=11 // pred_region
          _
        $region48: #{tpu_custom_call.1} parent=11 // pred_fallthru
          _
        // Predicated region
        $region49: #{tpu_custom_call.1} parent=11 // pred_check
          %p535 = pneg %p307
        $region50: #{tpu_custom_call.1} parent=11 // pred_check_branch
          %537 = sbr.rel (%p535) target = $region52
        $region51: #{tpu_custom_call.1} parent=11 // pred_region
          _
        $region52: #{tpu_custom_call.1} parent=11 // pred_fallthru
          _
        // Predicated region
        $region53: #{tpu_custom_call.1} parent=11 // pred_check
          %p538 = pneg %p328
        $region54: #{tpu_custom_call.1} parent=11 // pred_check_branch
          %540 = sbr.rel (%p538) target = $region56
        $region55: #{tpu_custom_call.1} parent=11 // pred_region
          _
        $region56: #{tpu_custom_call.1} parent=11 // pred_fallthru
          _
        // Predicated region
        $region57: #{tpu_custom_call.1} parent=11 // pred_check
          %p541 = pneg %p349
        $region58: #{tpu_custom_call.1} parent=11 // pred_check_branch
          %543 = sbr.rel (%p541) target = $region60
        $region59: #{tpu_custom_call.1} parent=11 // pred_region
          _
        $region60: #{tpu_custom_call.1} parent=11 // pred_fallthru
          _
        // Predicated region
        $region61: #{tpu_custom_call.1} parent=11 // pred_check
          %p544 = pneg %p370
        $region62: #{tpu_custom_call.1} parent=11 // pred_check_branch
          %546 = sbr.rel (%p544) target = $region64
        $region63: #{tpu_custom_call.1} parent=11 // pred_region
          _
        $region64: #{tpu_custom_call.1} parent=11 // pred_fallthru
          _
        // Predicated region
        $region65: #{tpu_custom_call.1} parent=11 // pred_check
          %p547 = pneg %p391
        $region66: #{tpu_custom_call.1} parent=11 // pred_check_branch
          %549 = sbr.rel (%p547) target = $region68
        $region67: #{tpu_custom_call.1} parent=11 // pred_region
          _
        $region68: #{tpu_custom_call.1} parent=11 // pred_fallthru
          _
      $region12: #{tpu_custom_call.1} parent=5 // pred_fallthru
        _
      %p550 = scmp.lt.s32.totalorder %s33, 2
      // Predicated region
      $region69: #{tpu_custom_call.1} parent=5 // pred_check
        %p551 = pneg %p550
      $region70: #{tpu_custom_call.1} parent=5 // pred_check_branch
        %553 = sbr.rel (%p551) target = $region72
      $region71: #{tpu_custom_call.1} parent=5 // pred_region
        // Predicated region
        $region73: #{tpu_custom_call.1} parent=71 // pred_check
          %p554 = pneg %p65
        $region74: #{tpu_custom_call.1} parent=71 // pred_check_branch
          %556 = sbr.rel (%p554) target = $region76
        $region75: #{tpu_custom_call.1} parent=71 // pred_region
          %p557 = scmp.lt.s32.totalorder %s40, 1
          %s558 = scalar_select %p557, %s40, 1
          %s559 = smul.addr %s558, 8
          %s560 = scalar_lea.vmem %s0, %s559
        $region76: #{tpu_custom_call.1} parent=71 // pred_fallthru
          _
        // Predicated region
        $region77: #{tpu_custom_call.1} parent=71 // pred_check
          %p561 = pneg %p91
        $region78: #{tpu_custom_call.1} parent=71 // pred_check_branch
          %563 = sbr.rel (%p561) target = $region80
        $region79: #{tpu_custom_call.1} parent=71 // pred_region
          %p564 = scmp.lt.s32.totalorder %s40, 1
          %s565 = scalar_select %p564, %s40, 1
          %s566 = smul.addr %s565, 8
          %s567 = scalar_lea.vmem %s1, %s566
        $region80: #{tpu_custom_call.1} parent=71 // pred_fallthru
          _
      $region72: #{tpu_custom_call.1} parent=5 // pred_fallthru
        _
      %p568 = scmp.le.s32.totalorder 1, %s33
      %p569 = scmp.lt.s32.totalorder %s33, 3
      %p570 = pnand %p568, %p569
      %p571 = pneg %p570
      // Predicated region
      $region81: #{tpu_custom_call.1} parent=5 // pred_check
        _
      $region82: #{tpu_custom_call.1} parent=5 // pred_check_branch
        %573 = sbr.rel (%p570) target = $region84
      $region83: #{tpu_custom_call.1} parent=5 // pred_region
        %s574 = ssub.s32 %s33, 1
        // Predicated region
        $region85: #{tpu_custom_call.1} parent=83 // pred_check
          %p575 = pneg %p160
        $region86: #{tpu_custom_call.1} parent=83 // pred_check_branch
          %577 = sbr.rel (%p575) target = $region88
        $region87: #{tpu_custom_call.1} parent=83 // pred_region
          %578 = dma.done [#allocation6], 256
        $region88: #{tpu_custom_call.1} parent=83 // pred_fallthru
          _
        // Predicated region
        $region89: #{tpu_custom_call.1} parent=83 // pred_check
          %p579 = pneg %p202
        $region90: #{tpu_custom_call.1} parent=83 // pred_check_branch
          %581 = sbr.rel (%p579) target = $region92
        $region91: #{tpu_custom_call.1} parent=83 // pred_region
          %582 = dma.done [#allocation9], 256
        $region92: #{tpu_custom_call.1} parent=83 // pred_fallthru
          _
        // Predicated region
        $region93: #{tpu_custom_call.1} parent=83 // pred_check
          %p583 = pneg %p223
        $region94: #{tpu_custom_call.1} parent=83 // pred_check_branch
          %585 = sbr.rel (%p583) target = $region96
        $region95: #{tpu_custom_call.1} parent=83 // pred_region
          %586 = dma.done [#allocation9], 16
        $region96: #{tpu_custom_call.1} parent=83 // pred_fallthru
          _
        // Predicated region
        $region97: #{tpu_custom_call.1} parent=83 // pred_check
          %p587 = pneg %p244
        $region98: #{tpu_custom_call.1} parent=83 // pred_check_branch
          %589 = sbr.rel (%p587) target = $region100
        $region99: #{tpu_custom_call.1} parent=83 // pred_region
          %590 = dma.done [#allocation12], 256
        $region100: #{tpu_custom_call.1} parent=83 // pred_fallthru
          _
        // Predicated region
        $region101: #{tpu_custom_call.1} parent=83 // pred_check
          %p591 = pneg %p265
        $region102: #{tpu_custom_call.1} parent=83 // pred_check_branch
          %593 = sbr.rel (%p591) target = $region104
        $region103: #{tpu_custom_call.1} parent=83 // pred_region
          %594 = dma.done [#allocation12], 16
        $region104: #{tpu_custom_call.1} parent=83 // pred_fallthru
          _
        %p595 = scmp.lt.s32.totalorder %s42, 1
        %s596 = scalar_select %p595, %s42, 1
        %s597 = smul.addr %s596, 8
        %s598 = scalar_lea.vmem %s0, %s597
        %p599 = pneg %p71
        %p600 = pneg %p68
        %p601 = scmp.lt.s32.totalorder %s42, 1
        %s602 = scalar_select %p601, %s42, 1
        %s603 = smul.addr %s602, 8
        %s604 = scalar_lea.vmem %s1, %s603
        %p605 = pneg %p97
        %p606 = pneg %p94
        %p607 = pneg %p118
        %p608 = pneg %p115
        %p609 = pneg %p139
        %p610 = pneg %p136
        %p611 = pneg %p160
        %p612 = pneg %p157
        %p613 = pneg %p181
        %p614 = pneg %p178
        %p615 = pneg %p202
        %p616 = pneg %p199
        %p617 = pneg %p223
        %p618 = pneg %p220
        %p619 = pneg %p244
        %p620 = pneg %p241
        %p621 = pneg %p265
        %p622 = pneg %p262
        %p623 = pneg %p286
        %p624 = pneg %p283
        %p625 = pneg %p307
        %p626 = pneg %p304
        %p627 = pneg %p328
        %p628 = pneg %p325
        %p629 = pneg %p349
        %p630 = pneg %p346
        %p631 = pneg %p370
        %p632 = pneg %p367
        %p633 = pneg %p391
        %p634 = pneg %p388
        %p635 = pneg %p419
        %p636 = pneg %p416
        %s637 = sand.u32 %s406, 1
        %s638 = scalar_lea.sflag [#allocation7], %s637
        %s639 = sand.u32 %s406, 1
        %s640 = smul.addr %s639, 8
        %s641 = scalar_lea.vmem [#allocation14], %s640
        %p642 = pneg %p447
        %p643 = pneg %p444
        %s644 = sand.u32 %s434, 1
        %s645 = scalar_lea.sflag [#allocation16], %s644
        %s646 = sand.u32 %s434, 1
        %s647 = smul.addr %s646, 8
        %s648 = scalar_lea.vmem [#allocation15], %s647
        %p649 = scmp.lt.s32.totalorder %s42, 1
        %s650 = scalar_select %p649, %s42, 1
        %s651 = smul.addr %s650, 8
        %s652 = scalar_lea.vmem %s0, %s651
        %p653 = scmp.lt.s32.totalorder %s42, 1
        %s654 = scalar_select %p653, %s42, 1
        %s655 = smul.addr %s654, 8
        %s656 = scalar_lea.vmem %s1, %s655
        %p658 = scmp.eq.s32.totalorder %s43, 0
        // Predicated region
        $region105: #{tpu_custom_call.1} parent=83 // pred_check
          %p659 = pneg %p658
        $region106: #{tpu_custom_call.1} parent=83 // pred_check_branch
          %661 = sbr.rel (%p659) target = $region108
        $region107: #{tpu_custom_call.1} parent=83 // pred_region
          %v662 = vld [vmem:[%s652] sm:$0xff]
          %v663 = vpack.c.bf16 %v662, %v662
          %v664 = vld [vmem:[%s656] sm:$0xff]
          %v665 = vpack.c.bf16 %v664, %v664
          %v666 = vadd.bf16 %v663, %v665
          %v667 = vld [vmem:[%s2] sm:$0xf]
          %v668 = vld [vmem:[%s2 + $0x4] sm:$0xf]
          %v669 = vld [vmem:[%s2 + $0x8] sm:$0xf]
          %v670 = vld [vmem:[%s2 + $0xc] sm:$0xf]
          %v671 = vld [vmem:[%s3] sm:$0x1]
          %v673 = vlaneseq
          %v674 = vshrl.u32 %v673, 7
          %v675 = vsub.s32 0, %v674
          %v676 = vrot.slane %v671, %v675
          %v682 = vunpack.c.l.b16 %v667
          %v683 = vunpack.c.l.b16 %v668
          %v684 = vunpack.c.l.b16 %v669
          %v685 = vunpack.c.l.b16 %v670
          %v686 = vpack.c.b16 %v683, %v682
          %v687 = vpack.c.b16 %v685, %v684
          %vm690 = vcmask 261120
          %v692 = vsel %vm690, %v666, 0
          %694 = vmatprep.subr.bf16.mxu0 0
          %695 = vmatpush1.bf16.msra.mxu0 0
          %696 = vmatprep.subr.bf16.mxu0 0
          %697 = vmatpush1.bf16.msra.mxu0 0
          %698 = vmatprep.subr.bf16.mxu0 0
          %699 = vmatpush1.bf16.msra.mxu0 0
          %700 = vmatprep.subr.bf16.mxu0 0
          %701 = vmatpush1.bf16.msra.mxu0 0
          %702 = vmatprep.subr.bf16.mxu0 0
          %703 = vmatpush1.bf16.msra.mxu0 0
          %704 = vmatprep.subr.bf16.mxu0 0
          %705 = vmatpush1.bf16.msra.mxu0 0
          %706 = vmatprep.subr.bf16.mxu0 0
          %707 = vmatpush1.bf16.msra.mxu0 %v687
          %708 = vmatprep.subr.bf16.mxu0 0
          %709 = vmatpush1.bf16.msra.mxu0 %v686
          %710 = vmatprep.subr.bf16.mxu0 0
          %711 = vmatpush2.bf16.msra.mxu0 0
          %712 = vmatprep.subr.bf16.mxu0 0
          %713 = vmatpush2.bf16.msra.mxu0 0
          %714 = vmatprep.subr.bf16.mxu0 0
          %715 = vmatpush2.bf16.msra.mxu0 0
          %716 = vmatprep.subr.bf16.mxu0 0
          %717 = vmatpush2.bf16.msra.mxu0 0
          %718 = vmatprep.subr.bf16.mxu0 0
          %719 = vmatpush2.bf16.msra.mxu0 0
          %720 = vmatprep.subr.bf16.mxu0 0
          %721 = vmatpush2.bf16.msra.mxu0 0
          %722 = vmatprep.subr.bf16.mxu0 0
          %723 = vmatpush2.bf16.msra.mxu0 0
          %724 = vmatprep.subr.bf16.mxu0 0
          %725 = vmatpush2.bf16.msra.mxu0 0
          %726 = vmatprep.mubr.bf16.mxu0 0
          %727 = vmatmul.mubr.bf16.gmra.mxu0 %v692
          %v728 = vpop.f32.mrf.mxu0
          %v729 = vadd.f32 %v676, %v728
          %v730 = vpop.f32.mrf.mxu0
          %v731 = vpop.f32.mrf.mxu0
          %v732 = vpop.f32.mrf.mxu0
          %733 = vdwg.mxu0
          %v734 = vld [vmem:[#allocation5] sm:$0xf]
          %v735 = vld [vmem:[#allocation5 + $0x4] sm:$0xf]
          %v736 = vld [vmem:[#allocation5 + $0x8] sm:$0xf]
          %v737 = vld [vmem:[#allocation5 + $0xc] sm:$0xf]
          %v738 = vld [vmem:[%s5] sm:$0x1]
          %v740 = vlaneseq
          %v741 = vshrl.u32 %v740, 7
          %v742 = vsub.s32 0, %v741
          %v743 = vrot.slane %v738, %v742
          %v749 = vunpack.c.l.b16 %v734
          %v750 = vunpack.c.l.b16 %v735
          %v751 = vunpack.c.l.b16 %v736
          %v752 = vunpack.c.l.b16 %v737
          %v753 = vpack.c.b16 %v750, %v749
          %v754 = vpack.c.b16 %v752, %v751
          %v758 = vsel %vm690, %v663, 0
          %760 = vmatprep.subr.bf16.mxu0 0
          %761 = vmatpush1.bf16.msra.mxu0 0
          %762 = vmatprep.subr.bf16.mxu0 0
          %763 = vmatpush1.bf16.msra.mxu0 0
          %764 = vmatprep.subr.bf16.mxu0 0
          %765 = vmatpush1.bf16.msra.mxu0 0
          %766 = vmatprep.subr.bf16.mxu0 0
          %767 = vmatpush1.bf16.msra.mxu0 0
          %768 = vmatprep.subr.bf16.mxu0 0
          %769 = vmatpush1.bf16.msra.mxu0 0
          %770 = vmatprep.subr.bf16.mxu0 0
          %771 = vmatpush1.bf16.msra.mxu0 0
          %772 = vmatprep.subr.bf16.mxu0 0
          %773 = vmatpush1.bf16.msra.mxu0 %v754
          %774 = vmatprep.subr.bf16.mxu0 0
          %775 = vmatpush1.bf16.msra.mxu0 %v753
          %776 = vmatprep.subr.bf16.mxu0 0
          %777 = vmatpush2.bf16.msra.mxu0 0
          %778 = vmatprep.subr.bf16.mxu0 0
          %779 = vmatpush2.bf16.msra.mxu0 0
          %780 = vmatprep.subr.bf16.mxu0 0
          %781 = vmatpush2.bf16.msra.mxu0 0
          %782 = vmatprep.subr.bf16.mxu0 0
          %783 = vmatpush2.bf16.msra.mxu0 0
          %784 = vmatprep.subr.bf16.mxu0 0
          %785 = vmatpush2.bf16.msra.mxu0 0
          %786 = vmatprep.subr.bf16.mxu0 0
          %787 = vmatpush2.bf16.msra.mxu0 0
          %788 = vmatprep.subr.bf16.mxu0 0
          %789 = vmatpush2.bf16.msra.mxu0 0
          %790 = vmatprep.subr.bf16.mxu0 0
          %791 = vmatpush2.bf16.msra.mxu0 0
          %792 = vmatprep.mubr.bf16.mxu0 0
          %793 = vmatmul.mubr.bf16.gmra.mxu0 %v758
          %v794 = vpop.f32.mrf.mxu0
          %v795 = vadd.f32 %v743, %v794
          %v796 = vpop.f32.mrf.mxu0
          %v797 = vpop.f32.mrf.mxu0
          %v798 = vpop.f32.mrf.mxu0
          %799 = vdwg.mxu0
          %v800 = vpack.c.bf16 %v729, %v729
          %vm801 = vcmask 257024
          %802 = vst.msk [vmem:[#allocation2] sm:$0xf] %vm801, %v800
          %804 = vrot.lane.b32.xlu0 %v729, 96
          %v805 = vpop.permute.xlu0 %804
          %807 = vxpose.xlu0.b32.start [1/16] %v805, 128
          %808 = vxpose.xlu0.b32.cont [2/16] 0.0, 128
          %809 = vxpose.xlu0.b32.cont [3/16] 0.0, 128
          %810 = vxpose.xlu0.b32.cont [4/16] 0.0, 128
          %811 = vxpose.xlu0.b32.cont [5/16] 0.0, 128
          %812 = vxpose.xlu0.b32.cont [6/16] 0.0, 128
          %813 = vxpose.xlu0.b32.cont [7/16] 0.0, 128
          %814 = vxpose.xlu0.b32.cont [8/16] 0.0, 128
          %815 = vxpose.xlu0.b32.cont [9/16] 0.0, 128
          %816 = vxpose.xlu0.b32.cont [10/16] 0.0, 128
          %817 = vxpose.xlu0.b32.cont [11/16] 0.0, 128
          %818 = vxpose.xlu0.b32.cont [12/16] 0.0, 128
          %819 = vxpose.xlu0.b32.cont [13/16] 0.0, 128
          %820 = vxpose.xlu0.b32.cont [14/16] 0.0, 128
          %821 = vxpose.xlu0.b32.cont [15/16] 0.0, 128
          %822 = vxpose.xlu0.b32.end [16/16] 0.0, 128
          %v823 = vpop.trf.xlu0
          %v824 = vpop.trf.xlu0
          %v825 = vpop.trf.xlu0
          %v826 = vpop.trf.xlu0
          %v827 = vpop.trf.xlu0
          %v828 = vpop.trf.xlu0
          %v829 = vpop.trf.xlu0
          %v830 = vpop.trf.xlu0
          %v831 = vpop.trf.xlu0
          %v832 = vpop.trf.xlu0
          %v833 = vpop.trf.xlu0
          %v834 = vpop.trf.xlu0
          %v835 = vpop.trf.xlu0
          %v836 = vpop.trf.xlu0
          %v837 = vpop.trf.xlu0
          %v838 = vpop.trf.xlu0
          %v839 = vpack.c.bf16 %v824, %v823
          %v840 = vpack.c.bf16 %v826, %v825
          %v843 = vunpack.c.l.b16 %v839
          %v844 = vunpack.c.h.b16 %v839
          %v845 = vunpack.c.l.b16 %v840
          %v846 = vunpack.c.h.b16 %v840
          %v847 = vpack.c.b16 %v843, %v843
          %v848 = vpack.c.b16 %v844, %v844
          %v849 = vpack.c.b16 %v845, %v845
          %v850 = vpack.c.b16 %v846, %v846
          %vm855 = vcmask 60416
          %856 = vst.msk [vmem:[#allocation3] sm:$0xf] %vm855, %v847
          %857 = vst.msk [vmem:[#allocation3 + $0x4] sm:$0xf] %vm855, %v848
          %858 = vst.msk [vmem:[#allocation3 + $0x8] sm:$0xf] %vm855, %v849
          %859 = vst.msk [vmem:[#allocation3 + $0xc] sm:$0xf] %vm855, %v850
          %v860 = vpack.c.bf16 %v795, %v795
          %861 = vst.msk [vmem:[#allocation4] sm:$0xf] %vm801, %v860
        $region108: #{tpu_custom_call.1} parent=83 // pred_fallthru
          _
        %s862 = smul.u32 %s43, 8
        %s863 = scalar_lea.vmem %s652, %s862
        %v864 = vld [vmem:[%s863] sm:$0xff]
        %s865 = sshra.s32 %s862, 3
        %s866 = sand.u32 %s862, 7
        %s867 = smul.addr %s865, 4
        %s868 = scalar_lea.vmem [#allocation2], %s867
        %v869 = vld [vmem:[%s868] sm:$0xf]
        %v870 = vld [vmem:[#allocation3] sm:$0xf]
        %v871 = vld [vmem:[#allocation3 + $0x4] sm:$0xf]
        %v872 = vld [vmem:[#allocation3 + $0x8] sm:$0xf]
        %v873 = vld [vmem:[#allocation3 + $0xc] sm:$0xf]
        %v874 = vld [vmem:[#allocation4] sm:$0xf]
        %vm875 = vcmask 64512
        %v877 = vsel %vm875, %v869, 0
        %vm879 = vcmask 1043456
        %v881 = vsel %vm879, %v870, 0
        %883 = vmatprep.subr.bf16.mxu0 0
        %884 = vmatpush1.bf16.msra.mxu0 0
        %885 = vmatprep.subr.bf16.mxu0 0
        %886 = vmatpush1.bf16.msra.mxu0 0
        %887 = vmatprep.subr.bf16.mxu0 0
        %888 = vmatpush1.bf16.msra.mxu0 0
        %889 = vmatprep.subr.bf16.mxu0 0
        %890 = vmatpush1.bf16.msra.mxu0 0
        %891 = vmatprep.subr.bf16.mxu0 0
        %892 = vmatpush1.bf16.msra.mxu0 0
        %893 = vmatprep.subr.bf16.mxu0 0
        %894 = vmatpush1.bf16.msra.mxu0 0
        %895 = vmatprep.subr.bf16.mxu0 0
        %896 = vmatpush1.bf16.msra.mxu0 0
        %897 = vmatprep.subr.bf16.mxu0 0
        %898 = vmatpush1.bf16.msra.mxu0 %v881
        %899 = vmatprep.subr.bf16.mxu0 0
        %900 = vmatpush2.bf16.msra.mxu0 0
        %901 = vmatprep.subr.bf16.mxu0 0
        %902 = vmatpush2.bf16.msra.mxu0 0
        %903 = vmatprep.subr.bf16.mxu0 0
        %904 = vmatpush2.bf16.msra.mxu0 0
        %905 = vmatprep.subr.bf16.mxu0 0
        %906 = vmatpush2.bf16.msra.mxu0 0
        %907 = vmatprep.subr.bf16.mxu0 0
        %908 = vmatpush2.bf16.msra.mxu0 0
        %909 = vmatprep.subr.bf16.mxu0 0
        %910 = vmatpush2.bf16.msra.mxu0 0
        %911 = vmatprep.subr.bf16.mxu0 0
        %912 = vmatpush2.bf16.msra.mxu0 0
        %913 = vmatprep.subr.bf16.mxu0 0
        %914 = vmatpush2.bf16.msra.mxu0 0
        %915 = vmatprep.mubr.bf16.mxu0 0
        %916 = vmatmul.mubr.bf16.gmra.mxu0 %v877
        %v917 = vpop.f32.mrf.mxu0
        %v918 = vadd.f32 0.0, %v917
        %v919 = vpop.f32.mrf.mxu0
        %v920 = vpop.f32.mrf.mxu0
        %v921 = vpop.f32.mrf.mxu0
        %922 = vdwg.mxu0
        %v923 = vsel %vm875, %v918, -inf
        %924 = vmax.xlane.f32.xlu0 %v923
        %v925 = vpop.xlane.xlu0 %924
        %v926 = vsub.f32 %v918, %v925
        %v927 = vmul.f32 %v926, 1.442695
        %v928 = vpow.pop %v927
        %v929 = vsel %vm875, %v928, 0.0
        %930 = vadd.xlane.f32.xlu0 %v929
        %v931 = vpop.xlane.xlu0 %930
        %v932 = vrcp.pop %v931
        %v933 = vmul.f32 %v928, %v932
        %v934 = vadd.f32 %v933, 0.0
        %v935 = vpack.c.bf16 %v933, %v933
        %v937 = vsel %vm875, %v935, 0
        %v940 = vsel %vm879, %v874, 0
        %942 = vmatprep.subr.bf16.mxu0 0
        %943 = vmatpush1.bf16.msra.mxu0 0
        %944 = vmatprep.subr.bf16.mxu0 0
        %945 = vmatpush1.bf16.msra.mxu0 0
        %946 = vmatprep.subr.bf16.mxu0 0
        %947 = vmatpush1.bf16.msra.mxu0 0
        %948 = vmatprep.subr.bf16.mxu0 0
        %949 = vmatpush1.bf16.msra.mxu0 0
        %950 = vmatprep.subr.bf16.mxu0 0
        %951 = vmatpush1.bf16.msra.mxu0 0
        %952 = vmatprep.subr.bf16.mxu0 0
        %953 = vmatpush1.bf16.msra.mxu0 0
        %954 = vmatprep.subr.bf16.mxu0 0
        %955 = vmatpush1.bf16.msra.mxu0 0
        %956 = vmatprep.subr.bf16.mxu0 0
        %957 = vmatpush1.bf16.msra.mxu0 %v940
        %958 = vmatprep.subr.bf16.mxu0 0
        %959 = vmatpush2.bf16.msra.mxu0 0
        %960 = vmatprep.subr.bf16.mxu0 0
        %961 = vmatpush2.bf16.msra.mxu0 0
        %962 = vmatprep.subr.bf16.mxu0 0
        %963 = vmatpush2.bf16.msra.mxu0 0
        %964 = vmatprep.subr.bf16.mxu0 0
        %965 = vmatpush2.bf16.msra.mxu0 0
        %966 = vmatprep.subr.bf16.mxu0 0
        %967 = vmatpush2.bf16.msra.mxu0 0
        %968 = vmatprep.subr.bf16.mxu0 0
        %969 = vmatpush2.bf16.msra.mxu0 0
        %970 = vmatprep.subr.bf16.mxu0 0
        %971 = vmatpush2.bf16.msra.mxu0 0
        %972 = vmatprep.subr.bf16.mxu0 0
        %973 = vmatpush2.bf16.msra.mxu0 0
        %974 = vmatprep.mubr.bf16.mxu0 0
        %975 = vmatmul.mubr.bf16.gmra.mxu0 %v937
        %v976 = vpop.f32.mrf.mxu0
        %v977 = vadd.f32 0.0, %v976
        %v978 = vpop.f32.mrf.mxu0
        %v979 = vpop.f32.mrf.mxu0
        %v980 = vpop.f32.mrf.mxu0
        %981 = vdwg.mxu0
        %v982 = vpack.c.bf16 %v977, %v977
        %v983 = vld [vmem:[#allocation8] sm:$0xf]
        %v985 = vunpack.c.l.b16 %v869
        %v986 = vpack.c.b16 %v985, %v985
        %987 = vrot.lane.b32.xlu0 %v986, 120
        %v988 = vpop.permute.xlu0 %987
        %v990 = vsel %vm875, %v988, 0
        %v993 = vsel %vm879, %v871, 0
        %995 = vmatprep.subr.bf16.mxu0 0
        %996 = vmatpush1.bf16.msra.mxu0 0
        %997 = vmatprep.subr.bf16.mxu0 0
        %998 = vmatpush1.bf16.msra.mxu0 0
        %999 = vmatprep.subr.bf16.mxu0 0
        %1000 = vmatpush1.bf16.msra.mxu0 0
        %1001 = vmatprep.subr.bf16.mxu0 0
        %1002 = vmatpush1.bf16.msra.mxu0 0
        %1003 = vmatprep.subr.bf16.mxu0 0
        %1004 = vmatpush1.bf16.msra.mxu0 0
        %1005 = vmatprep.subr.bf16.mxu0 0
        %1006 = vmatpush1.bf16.msra.mxu0 0
        %1007 = vmatprep.subr.bf16.mxu0 0
        %1008 = vmatpush1.bf16.msra.mxu0 0
        %1009 = vmatprep.subr.bf16.mxu0 0
        %1010 = vmatpush1.bf16.msra.mxu0 %v993
        %1011 = vmatprep.subr.bf16.mxu0 0
        %1012 = vmatpush2.bf16.msra.mxu0 0
        %1013 = vmatprep.subr.bf16.mxu0 0
        %1014 = vmatpush2.bf16.msra.mxu0 0
        %1015 = vmatprep.subr.bf16.mxu0 0
        %1016 = vmatpush2.bf16.msra.mxu0 0
        %1017 = vmatprep.subr.bf16.mxu0 0
        %1018 = vmatpush2.bf16.msra.mxu0 0
        %1019 = vmatprep.subr.bf16.mxu0 0
        %1020 = vmatpush2.bf16.msra.mxu0 0
        %1021 = vmatprep.subr.bf16.mxu0 0
        %1022 = vmatpush2.bf16.msra.mxu0 0
        %1023 = vmatprep.subr.bf16.mxu0 0
        %1024 = vmatpush2.bf16.msra.mxu0 0
        %1025 = vmatprep.subr.bf16.mxu0 0
        %1026 = vmatpush2.bf16.msra.mxu0 0
        %1027 = vmatprep.mubr.bf16.mxu0 0
        %1028 = vmatmul.mubr.bf16.gmra.mxu0 %v990
        %v1029 = vpop.f32.mrf.mxu0
        %v1030 = vadd.f32 0.0, %v1029
        %v1031 = vpop.f32.mrf.mxu0
        %v1032 = vpop.f32.mrf.mxu0
        %v1033 = vpop.f32.mrf.mxu0
        %1034 = vdwg.mxu0
        %v1035 = vsel %vm875, %v1030, -inf
        %1036 = vmax.xlane.f32.xlu0 %v1035
        %v1037 = vpop.xlane.xlu0 %1036
        %v1038 = vsub.f32 %v1030, %v1037
        %v1039 = vmul.f32 %v1038, 1.442695
        %v1040 = vpow.pop %v1039
        %v1041 = vsel %vm875, %v1040, 0.0
        %1042 = vadd.xlane.f32.xlu0 %v1041
        %v1043 = vpop.xlane.xlu0 %1042
        %v1044 = vrcp.pop %v1043
        %v1045 = vmul.f32 %v1040, %v1044
        %v1046 = vadd.f32 %v934, %v1045
        %v1047 = vpack.c.bf16 %v1045, %v1045
        %v1049 = vunpack.c.l.b16 %v874
        %v1050 = vpack.c.b16 %v1049, %v1049
        %1051 = vrot.lane.b32.xlu0 %v1050, 120
        %v1052 = vpop.permute.xlu0 %1051
        %v1054 = vsel %vm875, %v1047, 0
        %v1057 = vsel %vm879, %v1052, 0
        %1059 = vmatprep.subr.bf16.mxu0 0
        %1060 = vmatpush1.bf16.msra.mxu0 0
        %1061 = vmatprep.subr.bf16.mxu0 0
        %1062 = vmatpush1.bf16.msra.mxu0 0
        %1063 = vmatprep.subr.bf16.mxu0 0
        %1064 = vmatpush1.bf16.msra.mxu0 0
        %1065 = vmatprep.subr.bf16.mxu0 0
        %1066 = vmatpush1.bf16.msra.mxu0 0
        %1067 = vmatprep.subr.bf16.mxu0 0
        %1068 = vmatpush1.bf16.msra.mxu0 0
        %1069 = vmatprep.subr.bf16.mxu0 0
        %1070 = vmatpush1.bf16.msra.mxu0 0
        %1071 = vmatprep.subr.bf16.mxu0 0
        %1072 = vmatpush1.bf16.msra.mxu0 0
        %1073 = vmatprep.subr.bf16.mxu0 0
        %1074 = vmatpush1.bf16.msra.mxu0 %v1057
        %1075 = vmatprep.subr.bf16.mxu0 0
        %1076 = vmatpush2.bf16.msra.mxu0 0
        %1077 = vmatprep.subr.bf16.mxu0 0
        %1078 = vmatpush2.bf16.msra.mxu0 0
        %1079 = vmatprep.subr.bf16.mxu0 0
        %1080 = vmatpush2.bf16.msra.mxu0 0
        %1081 = vmatprep.subr.bf16.mxu0 0
        %1082 = vmatpush2.bf16.msra.mxu0 0
        %1083 = vmatprep.subr.bf16.mxu0 0
        %1084 = vmatpush2.bf16.msra.mxu0 0
        %1085 = vmatprep.subr.bf16.mxu0 0
        %1086 = vmatpush2.bf16.msra.mxu0 0
        %1087 = vmatprep.subr.bf16.mxu0 0
        %1088 = vmatpush2.bf16.msra.mxu0 0
        %1089 = vmatprep.subr.bf16.mxu0 0
        %1090 = vmatpush2.bf16.msra.mxu0 0
        %1091 = vmatprep.mubr.bf16.mxu0 0
        %1092 = vmatmul.mubr.bf16.gmra.mxu0 %v1054
        %v1093 = vpop.f32.mrf.mxu0
        %v1094 = vadd.f32 0.0, %v1093
        %v1095 = vpop.f32.mrf.mxu0
        %v1096 = vpop.f32.mrf.mxu0
        %v1097 = vpop.f32.mrf.mxu0
        %1098 = vdwg.mxu0
        %v1099 = vpack.c.bf16 %v1094, %v1094
        %v1100 = vld [vmem:[#allocation8 + $0x4] sm:$0xf]
        %v1102 = vsel %vm875, %v1099, 0
        %v1105 = vsel %vm879, %v1100, 0
        %1107 = vmatprep.subr.bf16.mxu0 0
        %1108 = vmatpush1.bf16.msra.mxu0 0
        %1109 = vmatprep.subr.bf16.mxu0 0
        %1110 = vmatpush1.bf16.msra.mxu0 0
        %1111 = vmatprep.subr.bf16.mxu0 0
        %1112 = vmatpush1.bf16.msra.mxu0 0
        %1113 = vmatprep.subr.bf16.mxu0 0
        %1114 = vmatpush1.bf16.msra.mxu0 0
        %1115 = vmatprep.subr.bf16.mxu0 0
        %1116 = vmatpush1.bf16.msra.mxu0 0
        %1117 = vmatprep.subr.bf16.mxu0 0
        %1118 = vmatpush1.bf16.msra.mxu0 0
        %1119 = vmatprep.subr.bf16.mxu0 0
        %1120 = vmatpush1.bf16.msra.mxu0 0
        %1121 = vmatprep.subr.bf16.mxu0 0
        %1122 = vmatpush1.bf16.msra.mxu0 %v1105
        %1123 = vmatprep.subr.bf16.mxu0 0
        %1124 = vmatpush2.bf16.msra.mxu0 0
        %1125 = vmatprep.subr.bf16.mxu0 0
        %1126 = vmatpush2.bf16.msra.mxu0 0
        %1127 = vmatprep.subr.bf16.mxu0 0
        %1128 = vmatpush2.bf16.msra.mxu0 0
        %1129 = vmatprep.subr.bf16.mxu0 0
        %1130 = vmatpush2.bf16.msra.mxu0 0
        %1131 = vmatprep.subr.bf16.mxu0 0
        %1132 = vmatpush2.bf16.msra.mxu0 0
        %1133 = vmatprep.subr.bf16.mxu0 0
        %1134 = vmatpush2.bf16.msra.mxu0 0
        %1135 = vmatprep.subr.bf16.mxu0 0
        %1136 = vmatpush2.bf16.msra.mxu0 0
        %1137 = vmatprep.subr.bf16.mxu0 0
        %1138 = vmatpush2.bf16.msra.mxu0 0
        %1139 = vmatprep.mubr.bf16.mxu0 0
        %1140 = vmatmul.mubr.bf16.gmra.mxu0 %v1102
        %v1141 = vpop.f32.mrf.mxu0
        %v1142 = vadd.f32 0.0, %v1141
        %v1143 = vpop.f32.mrf.mxu0
        %v1144 = vpop.f32.mrf.mxu0
        %v1145 = vpop.f32.mrf.mxu0
        %1146 = vdwg.mxu0
        %v1148 = vsel %vm875, %v982, 0
        %v1151 = vsel %vm879, %v983, 0
        %1153 = vmatprep.subr.bf16.mxu0 0
        %1154 = vmatpush1.bf16.msra.mxu0 0
        %1155 = vmatprep.subr.bf16.mxu0 0
        %1156 = vmatpush1.bf16.msra.mxu0 0
        %1157 = vmatprep.subr.bf16.mxu0 0
        %1158 = vmatpush1.bf16.msra.mxu0 0
        %1159 = vmatprep.subr.bf16.mxu0 0
        %1160 = vmatpush1.bf16.msra.mxu0 0
        %1161 = vmatprep.subr.bf16.mxu0 0
        %1162 = vmatpush1.bf16.msra.mxu0 0
        %1163 = vmatprep.subr.bf16.mxu0 0
        %1164 = vmatpush1.bf16.msra.mxu0 0
        %1165 = vmatprep.subr.bf16.mxu0 0
        %1166 = vmatpush1.bf16.msra.mxu0 0
        %1167 = vmatprep.subr.bf16.mxu0 0
        %1168 = vmatpush1.bf16.msra.mxu0 %v1151
        %1169 = vmatprep.subr.bf16.mxu0 0
        %1170 = vmatpush2.bf16.msra.mxu0 0
        %1171 = vmatprep.subr.bf16.mxu0 0
        %1172 = vmatpush2.bf16.msra.mxu0 0
        %1173 = vmatprep.subr.bf16.mxu0 0
        %1174 = vmatpush2.bf16.msra.mxu0 0
        %1175 = vmatprep.subr.bf16.mxu0 0
        %1176 = vmatpush2.bf16.msra.mxu0 0
        %1177 = vmatprep.subr.bf16.mxu0 0
        %1178 = vmatpush2.bf16.msra.mxu0 0
        %1179 = vmatprep.subr.bf16.mxu0 0
        %1180 = vmatpush2.bf16.msra.mxu0 0
        %1181 = vmatprep.subr.bf16.mxu0 0
        %1182 = vmatpush2.bf16.msra.mxu0 0
        %1183 = vmatprep.subr.bf16.mxu0 0
        %1184 = vmatpush2.bf16.msra.mxu0 0
        %1185 = vmatprep.mubr.bf16.mxu0 0
        %1186 = vmatmul.mubr.bf16.gmra.mxu0 %v1148
        %v1187 = vpop.f32.mrf.mxu0
        %v1188 = vadd.f32 %v1142, %v1187
        %v1189 = vpop.f32.mrf.mxu0
        %v1190 = vpop.f32.mrf.mxu0
        %v1191 = vpop.f32.mrf.mxu0
        %1192 = vdwg.mxu0
        %1193 = vrot.lane.b32.xlu0 %v986, 112
        %v1194 = vpop.permute.xlu0 %1193
        %v1196 = vsel %vm875, %v1194, 0
        %v1199 = vsel %vm879, %v872, 0
        %1201 = vmatprep.subr.bf16.mxu0 0
        %1202 = vmatpush1.bf16.msra.mxu0 0
        %1203 = vmatprep.subr.bf16.mxu0 0
        %1204 = vmatpush1.bf16.msra.mxu0 0
        %1205 = vmatprep.subr.bf16.mxu0 0
        %1206 = vmatpush1.bf16.msra.mxu0 0
        %1207 = vmatprep.subr.bf16.mxu0 0
        %1208 = vmatpush1.bf16.msra.mxu0 0
        %1209 = vmatprep.subr.bf16.mxu0 0
        %1210 = vmatpush1.bf16.msra.mxu0 0
        %1211 = vmatprep.subr.bf16.mxu0 0
        %1212 = vmatpush1.bf16.msra.mxu0 0
        %1213 = vmatprep.subr.bf16.mxu0 0
        %1214 = vmatpush1.bf16.msra.mxu0 0
        %1215 = vmatprep.subr.bf16.mxu0 0
        %1216 = vmatpush1.bf16.msra.mxu0 %v1199
        %1217 = vmatprep.subr.bf16.mxu0 0
        %1218 = vmatpush2.bf16.msra.mxu0 0
        %1219 = vmatprep.subr.bf16.mxu0 0
        %1220 = vmatpush2.bf16.msra.mxu0 0
        %1221 = vmatprep.subr.bf16.mxu0 0
        %1222 = vmatpush2.bf16.msra.mxu0 0
        %1223 = vmatprep.subr.bf16.mxu0 0
        %1224 = vmatpush2.bf16.msra.mxu0 0
        %1225 = vmatprep.subr.bf16.mxu0 0
        %1226 = vmatpush2.bf16.msra.mxu0 0
        %1227 = vmatprep.subr.bf16.mxu0 0
        %1228 = vmatpush2.bf16.msra.mxu0 0
        %1229 = vmatprep.subr.bf16.mxu0 0
        %1230 = vmatpush2.bf16.msra.mxu0 0
        %1231 = vmatprep.subr.bf16.mxu0 0
        %1232 = vmatpush2.bf16.msra.mxu0 0
        %1233 = vmatprep.mubr.bf16.mxu0 0
        %1234 = vmatmul.mubr.bf16.gmra.mxu0 %v1196
        %v1235 = vpop.f32.mrf.mxu0
        %v1236 = vadd.f32 0.0, %v1235
        %v1237 = vpop.f32.mrf.mxu0
        %v1238 = vpop.f32.mrf.mxu0
        %v1239 = vpop.f32.mrf.mxu0
        %1240 = vdwg.mxu0
        %v1241 = vsel %vm875, %v1236, -inf
        %1242 = vmax.xlane.f32.xlu0 %v1241
        %v1243 = vpop.xlane.xlu0 %1242
        %v1244 = vsub.f32 %v1236, %v1243
        %v1245 = vmul.f32 %v1244, 1.442695
        %v1246 = vpow.pop %v1245
        %v1247 = vsel %vm875, %v1246, 0.0
        %1248 = vadd.xlane.f32.xlu0 %v1247
        %v1249 = vpop.xlane.xlu0 %1248
        %v1250 = vrcp.pop %v1249
        %v1251 = vmul.f32 %v1246, %v1250
        %v1252 = vadd.f32 %v1046, %v1251
        %v1253 = vpack.c.bf16 %v1251, %v1251
        %1254 = vrot.lane.b32.xlu0 %v1050, 112
        %v1255 = vpop.permute.xlu0 %1254
        %v1257 = vsel %vm875, %v1253, 0
        %v1260 = vsel %vm879, %v1255, 0
        %1262 = vmatprep.subr.bf16.mxu0 0
        %1263 = vmatpush1.bf16.msra.mxu0 0
        %1264 = vmatprep.subr.bf16.mxu0 0
        %1265 = vmatpush1.bf16.msra.mxu0 0
        %1266 = vmatprep.subr.bf16.mxu0 0
        %1267 = vmatpush1.bf16.msra.mxu0 0
        %1268 = vmatprep.subr.bf16.mxu0 0
        %1269 = vmatpush1.bf16.msra.mxu0 0
        %1270 = vmatprep.subr.bf16.mxu0 0
        %1271 = vmatpush1.bf16.msra.mxu0 0
        %1272 = vmatprep.subr.bf16.mxu0 0
        %1273 = vmatpush1.bf16.msra.mxu0 0
        %1274 = vmatprep.subr.bf16.mxu0 0
        %1275 = vmatpush1.bf16.msra.mxu0 0
        %1276 = vmatprep.subr.bf16.mxu0 0
        %1277 = vmatpush1.bf16.msra.mxu0 %v1260
        %1278 = vmatprep.subr.bf16.mxu0 0
        %1279 = vmatpush2.bf16.msra.mxu0 0
        %1280 = vmatprep.subr.bf16.mxu0 0
        %1281 = vmatpush2.bf16.msra.mxu0 0
        %1282 = vmatprep.subr.bf16.mxu0 0
        %1283 = vmatpush2.bf16.msra.mxu0 0
        %1284 = vmatprep.subr.bf16.mxu0 0
        %1285 = vmatpush2.bf16.msra.mxu0 0
        %1286 = vmatprep.subr.bf16.mxu0 0
        %1287 = vmatpush2.bf16.msra.mxu0 0
        %1288 = vmatprep.subr.bf16.mxu0 0
        %1289 = vmatpush2.bf16.msra.mxu0 0
        %1290 = vmatprep.subr.bf16.mxu0 0
        %1291 = vmatpush2.bf16.msra.mxu0 0
        %1292 = vmatprep.subr.bf16.mxu0 0
        %1293 = vmatpush2.bf16.msra.mxu0 0
        %1294 = vmatprep.mubr.bf16.mxu0 0
        %1295 = vmatmul.mubr.bf16.gmra.mxu0 %v1257
        %v1296 = vpop.f32.mrf.mxu0
        %v1297 = vadd.f32 0.0, %v1296
        %v1298 = vpop.f32.mrf.mxu0
        %v1299 = vpop.f32.mrf.mxu0
        %v1300 = vpop.f32.mrf.mxu0
        %1301 = vdwg.mxu0
        %v1302 = vpack.c.bf16 %v1297, %v1297
        %v1303 = vld [vmem:[#allocation8 + $0x8] sm:$0xf]
        %v1305 = vsel %vm875, %v1302, 0
        %v1308 = vsel %vm879, %v1303, 0
        %1310 = vmatprep.subr.bf16.mxu0 0
        %1311 = vmatpush1.bf16.msra.mxu0 0
        %1312 = vmatprep.subr.bf16.mxu0 0
        %1313 = vmatpush1.bf16.msra.mxu0 0
        %1314 = vmatprep.subr.bf16.mxu0 0
        %1315 = vmatpush1.bf16.msra.mxu0 0
        %1316 = vmatprep.subr.bf16.mxu0 0
        %1317 = vmatpush1.bf16.msra.mxu0 0
        %1318 = vmatprep.subr.bf16.mxu0 0
        %1319 = vmatpush1.bf16.msra.mxu0 0
        %1320 = vmatprep.subr.bf16.mxu0 0
        %1321 = vmatpush1.bf16.msra.mxu0 0
        %1322 = vmatprep.subr.bf16.mxu0 0
        %1323 = vmatpush1.bf16.msra.mxu0 0
        %1324 = vmatprep.subr.bf16.mxu0 0
        %1325 = vmatpush1.bf16.msra.mxu0 %v1308
        %1326 = vmatprep.subr.bf16.mxu0 0
        %1327 = vmatpush2.bf16.msra.mxu0 0
        %1328 = vmatprep.subr.bf16.mxu0 0
        %1329 = vmatpush2.bf16.msra.mxu0 0
        %1330 = vmatprep.subr.bf16.mxu0 0
        %1331 = vmatpush2.bf16.msra.mxu0 0
        %1332 = vmatprep.subr.bf16.mxu0 0
        %1333 = vmatpush2.bf16.msra.mxu0 0
        %1334 = vmatprep.subr.bf16.mxu0 0
        %1335 = vmatpush2.bf16.msra.mxu0 0
        %1336 = vmatprep.subr.bf16.mxu0 0
        %1337 = vmatpush2.bf16.msra.mxu0 0
        %1338 = vmatprep.subr.bf16.mxu0 0
        %1339 = vmatpush2.bf16.msra.mxu0 0
        %1340 = vmatprep.subr.bf16.mxu0 0
        %1341 = vmatpush2.bf16.msra.mxu0 0
        %1342 = vmatprep.mubr.bf16.mxu0 0
        %1343 = vmatmul.mubr.bf16.gmra.mxu0 %v1305
        %v1344 = vpop.f32.mrf.mxu0
        %v1345 = vadd.f32 0.0, %v1344
        %v1346 = vpop.f32.mrf.mxu0
        %v1347 = vpop.f32.mrf.mxu0
        %v1348 = vpop.f32.mrf.mxu0
        %1349 = vdwg.mxu0
        %v1350 = vadd.f32 %v1188, %v1345
        %1351 = vrot.lane.b32.xlu0 %v986, 104
        %v1352 = vpop.permute.xlu0 %1351
        %v1354 = vsel %vm875, %v1352, 0
        %v1357 = vsel %vm879, %v873, 0
        %1359 = vmatprep.subr.bf16.mxu0 0
        %1360 = vmatpush1.bf16.msra.mxu0 0
        %1361 = vmatprep.subr.bf16.mxu0 0
        %1362 = vmatpush1.bf16.msra.mxu0 0
        %1363 = vmatprep.subr.bf16.mxu0 0
        %1364 = vmatpush1.bf16.msra.mxu0 0
        %1365 = vmatprep.subr.bf16.mxu0 0
        %1366 = vmatpush1.bf16.msra.mxu0 0
        %1367 = vmatprep.subr.bf16.mxu0 0
        %1368 = vmatpush1.bf16.msra.mxu0 0
        %1369 = vmatprep.subr.bf16.mxu0 0
        %1370 = vmatpush1.bf16.msra.mxu0 0
        %1371 = vmatprep.subr.bf16.mxu0 0
        %1372 = vmatpush1.bf16.msra.mxu0 0
        %1373 = vmatprep.subr.bf16.mxu0 0
        %1374 = vmatpush1.bf16.msra.mxu0 %v1357
        %1375 = vmatprep.subr.bf16.mxu0 0
        %1376 = vmatpush2.bf16.msra.mxu0 0
        %1377 = vmatprep.subr.bf16.mxu0 0
        %1378 = vmatpush2.bf16.msra.mxu0 0
        %1379 = vmatprep.subr.bf16.mxu0 0
        %1380 = vmatpush2.bf16.msra.mxu0 0
        %1381 = vmatprep.subr.bf16.mxu0 0
        %1382 = vmatpush2.bf16.msra.mxu0 0
        %1383 = vmatprep.subr.bf16.mxu0 0
        %1384 = vmatpush2.bf16.msra.mxu0 0
        %1385 = vmatprep.subr.bf16.mxu0 0
        %1386 = vmatpush2.bf16.msra.mxu0 0
        %1387 = vmatprep.subr.bf16.mxu0 0
        %1388 = vmatpush2.bf16.msra.mxu0 0
        %1389 = vmatprep.subr.bf16.mxu0 0
        %1390 = vmatpush2.bf16.msra.mxu0 0
        %1391 = vmatprep.mubr.bf16.mxu0 0
        %1392 = vmatmul.mubr.bf16.gmra.mxu0 %v1354
        %v1393 = vpop.f32.mrf.mxu0
        %v1394 = vadd.f32 0.0, %v1393
        %v1395 = vpop.f32.mrf.mxu0
        %v1396 = vpop.f32.mrf.mxu0
        %v1397 = vpop.f32.mrf.mxu0
        %1398 = vdwg.mxu0
        %v1399 = vsel %vm875, %v1394, -inf
        %1400 = vmax.xlane.f32.xlu0 %v1399
        %v1401 = vpop.xlane.xlu0 %1400
        %v1402 = vsub.f32 %v1394, %v1401
        %v1403 = vmul.f32 %v1402, 1.442695
        %v1404 = vpow.pop %v1403
        %v1405 = vsel %vm875, %v1404, 0.0
        %1406 = vadd.xlane.f32.xlu0 %v1405
        %v1407 = vpop.xlane.xlu0 %1406
        %v1408 = vrcp.pop %v1407
        %v1409 = vmul.f32 %v1404, %v1408
        %v1410 = vadd.f32 %v1252, %v1409
        %v1411 = vpack.c.bf16 %v1409, %v1409
        %1412 = vrot.lane.b32.xlu0 %v1050, 104
        %v1413 = vpop.permute.xlu0 %1412
        %v1415 = vsel %vm875, %v1411, 0
        %v1418 = vsel %vm879, %v1413, 0
        %1420 = vmatprep.subr.bf16.mxu0 0
        %1421 = vmatpush1.bf16.msra.mxu0 0
        %1422 = vmatprep.subr.bf16.mxu0 0
        %1423 = vmatpush1.bf16.msra.mxu0 0
        %1424 = vmatprep.subr.bf16.mxu0 0
        %1425 = vmatpush1.bf16.msra.mxu0 0
        %1426 = vmatprep.subr.bf16.mxu0 0
        %1427 = vmatpush1.bf16.msra.mxu0 0
        %1428 = vmatprep.subr.bf16.mxu0 0
        %1429 = vmatpush1.bf16.msra.mxu0 0
        %1430 = vmatprep.subr.bf16.mxu0 0
        %1431 = vmatpush1.bf16.msra.mxu0 0
        %1432 = vmatprep.subr.bf16.mxu0 0
        %1433 = vmatpush1.bf16.msra.mxu0 0
        %1434 = vmatprep.subr.bf16.mxu0 0
        %1435 = vmatpush1.bf16.msra.mxu0 %v1418
        %1436 = vmatprep.subr.bf16.mxu0 0
        %1437 = vmatpush2.bf16.msra.mxu0 0
        %1438 = vmatprep.subr.bf16.mxu0 0
        %1439 = vmatpush2.bf16.msra.mxu0 0
        %1440 = vmatprep.subr.bf16.mxu0 0
        %1441 = vmatpush2.bf16.msra.mxu0 0
        %1442 = vmatprep.subr.bf16.mxu0 0
        %1443 = vmatpush2.bf16.msra.mxu0 0
        %1444 = vmatprep.subr.bf16.mxu0 0
        %1445 = vmatpush2.bf16.msra.mxu0 0
        %1446 = vmatprep.subr.bf16.mxu0 0
        %1447 = vmatpush2.bf16.msra.mxu0 0
        %1448 = vmatprep.subr.bf16.mxu0 0
        %1449 = vmatpush2.bf16.msra.mxu0 0
        %1450 = vmatprep.subr.bf16.mxu0 0
        %1451 = vmatpush2.bf16.msra.mxu0 0
        %1452 = vmatprep.mubr.bf16.mxu0 0
        %1453 = vmatmul.mubr.bf16.gmra.mxu0 %v1415
        %v1454 = vpop.f32.mrf.mxu0
        %v1455 = vadd.f32 0.0, %v1454
        %v1456 = vpop.f32.mrf.mxu0
        %v1457 = vpop.f32.mrf.mxu0
        %v1458 = vpop.f32.mrf.mxu0
        %1459 = vdwg.mxu0
        %v1460 = vpack.c.bf16 %v1455, %v1455
        %v1461 = vld [vmem:[#allocation8 + $0xc] sm:$0xf]
        %v1463 = vsel %vm875, %v1460, 0
        %v1466 = vsel %vm879, %v1461, 0
        %1468 = vmatprep.subr.bf16.mxu0 0
        %1469 = vmatpush1.bf16.msra.mxu0 0
        %1470 = vmatprep.subr.bf16.mxu0 0
        %1471 = vmatpush1.bf16.msra.mxu0 0
        %1472 = vmatprep.subr.bf16.mxu0 0
        %1473 = vmatpush1.bf16.msra.mxu0 0
        %1474 = vmatprep.subr.bf16.mxu0 0
        %1475 = vmatpush1.bf16.msra.mxu0 0
        %1476 = vmatprep.subr.bf16.mxu0 0
        %1477 = vmatpush1.bf16.msra.mxu0 0
        %1478 = vmatprep.subr.bf16.mxu0 0
        %1479 = vmatpush1.bf16.msra.mxu0 0
        %1480 = vmatprep.subr.bf16.mxu0 0
        %1481 = vmatpush1.bf16.msra.mxu0 0
        %1482 = vmatprep.subr.bf16.mxu0 0
        %1483 = vmatpush1.bf16.msra.mxu0 %v1466
        %1484 = vmatprep.subr.bf16.mxu0 0
        %1485 = vmatpush2.bf16.msra.mxu0 0
        %1486 = vmatprep.subr.bf16.mxu0 0
        %1487 = vmatpush2.bf16.msra.mxu0 0
        %1488 = vmatprep.subr.bf16.mxu0 0
        %1489 = vmatpush2.bf16.msra.mxu0 0
        %1490 = vmatprep.subr.bf16.mxu0 0
        %1491 = vmatpush2.bf16.msra.mxu0 0
        %1492 = vmatprep.subr.bf16.mxu0 0
        %1493 = vmatpush2.bf16.msra.mxu0 0
        %1494 = vmatprep.subr.bf16.mxu0 0
        %1495 = vmatpush2.bf16.msra.mxu0 0
        %1496 = vmatprep.subr.bf16.mxu0 0
        %1497 = vmatpush2.bf16.msra.mxu0 0
        %1498 = vmatprep.subr.bf16.mxu0 0
        %1499 = vmatpush2.bf16.msra.mxu0 0
        %1500 = vmatprep.mubr.bf16.mxu0 0
        %1501 = vmatmul.mubr.bf16.gmra.mxu0 %v1463
        %v1502 = vpop.f32.mrf.mxu0
        %v1503 = vadd.f32 0.0, %v1502
        %v1504 = vpop.f32.mrf.mxu0
        %v1505 = vpop.f32.mrf.mxu0
        %v1506 = vpop.f32.mrf.mxu0
        %1507 = vdwg.mxu0
        %v1508 = vadd.f32 %v1350, %v1503
        %v1509 = vld [vmem:[#allocation10] sm:$0x1]
        %v1511 = vlaneseq
        %v1512 = vshrl.u32 %v1511, 7
        %v1513 = vsub.s32 0, %v1512
        %v1514 = vrot.slane %v1509, %v1513
        %v1516 = vadd.f32 %v1508, %v1514
        %v1517 = vadd.f32 %v864, %v1516
        %v1518 = vld [vmem:[%s12] sm:$0x1]
        %v1519 = vld [vmem:[%s13] sm:$0x1]
        %vm1520 = vcmask 261120
        %v1521 = vsel %vm1520, %v1517, 0.0
        %1522 = vadd.xlane.f32.xlu0 %v1521
        %v1523 = vpop.xlane.xlu0 %1522
        %v1524 = vrcp.pop 32.0
        %v1525 = vmul.f32 %v1523, %v1524
        %v1526 = vsub.f32 %v1517, %v1525
        %v1527 = vmul.f32 %v1526, %v1526
        %v1528 = vsel %vm1520, %v1527, 0.0
        %1529 = vadd.xlane.f32.xlu0 %v1528
        %v1530 = vpop.xlane.xlu0 %1529
        %v1531 = vmul.f32 %v1530, %v1524
        %v1532 = vadd.f32 %v1531, 1e-05
        %v1533 = vrsqrt.pop %v1532
        %v1534 = vmul.f32 %v1526, %v1533
        %v1536 = vlaneseq
        %v1537 = vshrl.u32 %v1536, 7
        %v1538 = vsub.s32 0, %v1537
        %v1539 = vrot.slane %v1518, %v1538
        %v1541 = vmul.f32 %v1534, %v1539
        %v1543 = vlaneseq
        %v1544 = vshrl.u32 %v1543, 7
        %v1545 = vsub.s32 0, %v1544
        %v1546 = vrot.slane %v1519, %v1545
        %v1548 = vadd.f32 %v1541, %v1546
        %v1549 = vpack.c.bf16 %v1548, %v1548
        %v1550 = vld [vmem:[#allocation11] sm:$0xf]
        %v1551 = vld [vmem:[#allocation11 + $0x4] sm:$0xf]
        %v1552 = vld [vmem:[#allocation11 + $0x8] sm:$0xf]
        %v1553 = vld [vmem:[#allocation11 + $0xc] sm:$0xf]
        %v1554 = vld [vmem:[#allocation13] sm:$0x1]
        %v1556 = vlaneseq
        %v1557 = vshrl.u32 %v1556, 7
        %v1558 = vsub.s32 0, %v1557
        %v1559 = vrot.slane %v1554, %v1558
        %v1565 = vunpack.c.l.b16 %v1550
        %v1566 = vunpack.c.l.b16 %v1551
        %v1567 = vunpack.c.l.b16 %v1552
        %v1568 = vunpack.c.l.b16 %v1553
        %v1569 = vpack.c.b16 %v1566, %v1565
        %v1570 = vpack.c.b16 %v1568, %v1567
        %v1574 = vsel %vm1520, %v1549, 0
        %1576 = vmatprep.subr.bf16.mxu0 0
        %1577 = vmatpush1.bf16.msra.mxu0 0
        %1578 = vmatprep.subr.bf16.mxu0 0
        %1579 = vmatpush1.bf16.msra.mxu0 0
        %1580 = vmatprep.subr.bf16.mxu0 0
        %1581 = vmatpush1.bf16.msra.mxu0 0
        %1582 = vmatprep.subr.bf16.mxu0 0
        %1583 = vmatpush1.bf16.msra.mxu0 0
        %1584 = vmatprep.subr.bf16.mxu0 0
        %1585 = vmatpush1.bf16.msra.mxu0 0
        %1586 = vmatprep.subr.bf16.mxu0 0
        %1587 = vmatpush1.bf16.msra.mxu0 0
        %1588 = vmatprep.subr.bf16.mxu0 0
        %1589 = vmatpush1.bf16.msra.mxu0 %v1570
        %1590 = vmatprep.subr.bf16.mxu0 0
        %1591 = vmatpush1.bf16.msra.mxu0 %v1569
        %1592 = vmatprep.subr.bf16.mxu0 0
        %1593 = vmatpush2.bf16.msra.mxu0 0
        %1594 = vmatprep.subr.bf16.mxu0 0
        %1595 = vmatpush2.bf16.msra.mxu0 0
        %1596 = vmatprep.subr.bf16.mxu0 0
        %1597 = vmatpush2.bf16.msra.mxu0 0
        %1598 = vmatprep.subr.bf16.mxu0 0
        %1599 = vmatpush2.bf16.msra.mxu0 0
        %1600 = vmatprep.subr.bf16.mxu0 0
        %1601 = vmatpush2.bf16.msra.mxu0 0
        %1602 = vmatprep.subr.bf16.mxu0 0
        %1603 = vmatpush2.bf16.msra.mxu0 0
        %1604 = vmatprep.subr.bf16.mxu0 0
        %1605 = vmatpush2.bf16.msra.mxu0 0
        %1606 = vmatprep.subr.bf16.mxu0 0
        %1607 = vmatpush2.bf16.msra.mxu0 0
        %1608 = vmatprep.mubr.bf16.mxu0 0
        %1609 = vmatmul.mubr.bf16.gmra.mxu0 %v1574
        %v1610 = vpop.f32.mrf.mxu0
        %v1611 = vadd.f32 %v1559, %v1610
        %v1612 = vpop.f32.mrf.mxu0
        %v1613 = vpop.f32.mrf.mxu0
        %v1614 = vpop.f32.mrf.mxu0
        %1615 = vdwg.mxu0
        %v1616 = vpack.c.bf16 %v1611, %v1611
        %v1617 = vmax.bf16 %v1616, 0
        %v1618 = vld [vmem:[%s10] sm:$0xf]
        %v1619 = vld [vmem:[%s10 + $0x4] sm:$0xf]
        %v1620 = vld [vmem:[%s10 + $0x8] sm:$0xf]
        %v1621 = vld [vmem:[%s10 + $0xc] sm:$0xf]
        %v1622 = vld [vmem:[%s10 + $0x10] sm:$0xf]
        %v1623 = vld [vmem:[%s10 + $0x14] sm:$0xf]
        %v1624 = vld [vmem:[%s10 + $0x18] sm:$0xf]
        %v1625 = vld [vmem:[%s10 + $0x1c] sm:$0xf]
        %v1626 = vld [vmem:[%s11] sm:$0x1]
        %v1628 = vlaneseq
        %v1629 = vshrl.u32 %v1628, 7
        %v1630 = vsub.s32 0, %v1629
        %v1631 = vrot.slane %v1626, %v1630
        %v1641 = vunpack.c.l.b16 %v1618
        %v1642 = vunpack.c.l.b16 %v1619
        %v1643 = vunpack.c.l.b16 %v1620
        %v1644 = vunpack.c.l.b16 %v1621
        %v1645 = vunpack.c.l.b16 %v1622
        %v1646 = vunpack.c.l.b16 %v1623
        %v1647 = vunpack.c.l.b16 %v1624
        %v1648 = vunpack.c.l.b16 %v1625
        %v1649 = vpack.c.b16 %v1642, %v1641
        %v1650 = vpack.c.b16 %v1644, %v1643
        %v1651 = vpack.c.b16 %v1646, %v1645
        %v1652 = vpack.c.b16 %v1648, %v1647
        %vm1657 = vcmask 523264
        %v1659 = vsel %vm1657, %v1617, 0
        %1661 = vmatprep.subr.bf16.mxu0 0
        %1662 = vmatpush1.bf16.msra.mxu0 0
        %1663 = vmatprep.subr.bf16.mxu0 0
        %1664 = vmatpush1.bf16.msra.mxu0 0
        %1665 = vmatprep.subr.bf16.mxu0 0
        %1666 = vmatpush1.bf16.msra.mxu0 0
        %1667 = vmatprep.subr.bf16.mxu0 0
        %1668 = vmatpush1.bf16.msra.mxu0 0
        %1669 = vmatprep.subr.bf16.mxu0 0
        %1670 = vmatpush1.bf16.msra.mxu0 %v1652
        %1671 = vmatprep.subr.bf16.mxu0 0
        %1672 = vmatpush1.bf16.msra.mxu0 %v1651
        %1673 = vmatprep.subr.bf16.mxu0 0
        %1674 = vmatpush1.bf16.msra.mxu0 %v1650
        %1675 = vmatprep.subr.bf16.mxu0 0
        %1676 = vmatpush1.bf16.msra.mxu0 %v1649
        %1677 = vmatprep.subr.bf16.mxu0 0
        %1678 = vmatpush2.bf16.msra.mxu0 0
        %1679 = vmatprep.subr.bf16.mxu0 0
        %1680 = vmatpush2.bf16.msra.mxu0 0
        %1681 = vmatprep.subr.bf16.mxu0 0
        %1682 = vmatpush2.bf16.msra.mxu0 0
        %1683 = vmatprep.subr.bf16.mxu0 0
        %1684 = vmatpush2.bf16.msra.mxu0 0
        %1685 = vmatprep.subr.bf16.mxu0 0
        %1686 = vmatpush2.bf16.msra.mxu0 0
        %1687 = vmatprep.subr.bf16.mxu0 0
        %1688 = vmatpush2.bf16.msra.mxu0 0
        %1689 = vmatprep.subr.bf16.mxu0 0
        %1690 = vmatpush2.bf16.msra.mxu0 0
        %1691 = vmatprep.subr.bf16.mxu0 0
        %1692 = vmatpush2.bf16.msra.mxu0 0
        %1693 = vmatprep.mubr.bf16.mxu0 0
        %1694 = vmatmul.mubr.bf16.gmra.mxu0 %v1659
        %v1695 = vpop.f32.mrf.mxu0
        %v1696 = vadd.f32 %v1631, %v1695
        %v1697 = vpop.f32.mrf.mxu0
        %v1698 = vpop.f32.mrf.mxu0
        %v1699 = vpop.f32.mrf.mxu0
        %1700 = vdwg.mxu0
        %v1701 = vadd.f32 %v1548, %v1696
        %v1702 = vld [vmem:[%s14] sm:$0x1]
        %v1703 = vld [vmem:[%s15] sm:$0x1]
        %v1704 = vsel %vm1520, %v1701, 0.0
        %1705 = vadd.xlane.f32.xlu0 %v1704
        %v1706 = vpop.xlane.xlu0 %1705
        %v1707 = vmul.f32 %v1706, %v1524
        %v1708 = vsub.f32 %v1701, %v1707
        %v1709 = vmul.f32 %v1708, %v1708
        %v1710 = vsel %vm1520, %v1709, 0.0
        %1711 = vadd.xlane.f32.xlu0 %v1710
        %v1712 = vpop.xlane.xlu0 %1711
        %v1713 = vmul.f32 %v1712, %v1524
        %v1714 = vadd.f32 %v1713, 1e-05
        %v1715 = vrsqrt.pop %v1714
        %v1716 = vmul.f32 %v1708, %v1715
        %v1718 = vlaneseq
        %v1719 = vshrl.u32 %v1718, 7
        %v1720 = vsub.s32 0, %v1719
        %v1721 = vrot.slane %v1702, %v1720
        %v1723 = vmul.f32 %v1716, %v1721
        %v1725 = vlaneseq
        %v1726 = vshrl.u32 %v1725, 7
        %v1727 = vsub.s32 0, %v1726
        %v1728 = vrot.slane %v1703, %v1727
        %v1730 = vadd.f32 %v1723, %v1728
        %1731 = vst.msk [vmem:[%s641] sm:$0xff] %vm1520, %v1730
        %v1732 = vmul.f32 %v1410, 0.25
        %1733 = vst.msk [vmem:[%s648] sm:$0xff] %vm875, %v1732
        %s1734 = sand.u32 %s406, 1
        %s1735 = scalar_lea.sflag [#allocation7], %s1734
        %s1736 = sand.u32 %s406, 1
        %s1737 = smul.addr %s1736, 8
        %s1738 = scalar_lea.vmem [#allocation14], %s1737
        %s1739 = sand.u32 %s434, 1
        %s1740 = scalar_lea.sflag [#allocation16], %s1739
        %s1741 = sand.u32 %s434, 1
        %s1742 = smul.addr %s1741, 8
        %s1743 = scalar_lea.vmem [#allocation15], %s1742
        // Predicated region
        $region109: #{tpu_custom_call.1} parent=83 // pred_check
          %p1744 = pneg %p416
        $region110: #{tpu_custom_call.1} parent=83 // pred_check_branch
          %1746 = sbr.rel (%p1744) target = $region112
        $region111: #{tpu_custom_call.1} parent=83 // pred_region
          %s1748 = ssub.s32 128, 128
          %1749 = vsyncadd %s1735, %s1748
          %s1750 = sadd.s32 %s43, %s42
          %s1751 = smul.addr %s1750, 128
          %s1752 = scalar_lea.hbm %s16, %s1751
          %s1754 = sshll.u32 %s1738, 4
          %s1755 = int_to_ptr.vmem [resolvable:$true] %s1754
          %1757 = dma.vmem_to_hbm [thread:$0]  %s1755, 128, %s1752, %s1735
        $region112: #{tpu_custom_call.1} parent=83 // pred_fallthru
          _
        // Predicated region
        $region113: #{tpu_custom_call.1} parent=83 // pred_check
          %p1758 = pneg %p444
        $region114: #{tpu_custom_call.1} parent=83 // pred_check_branch
          %1760 = sbr.rel (%p1758) target = $region116
        $region115: #{tpu_custom_call.1} parent=83 // pred_region
          %s1762 = ssub.s32 128, 128
          %1763 = vsyncadd %s1740, %s1762
          %s1764 = sadd.s32 %s43, %s42
          %s1765 = smul.addr %s1764, 128
          %s1766 = scalar_lea.hbm %s17, %s1765
          %s1768 = sshll.u32 %s1743, 4
          %s1769 = int_to_ptr.vmem [resolvable:$true] %s1768
          %1771 = dma.vmem_to_hbm [thread:$0]  %s1769, 128, %s1766, %s1740
        $region116: #{tpu_custom_call.1} parent=83 // pred_fallthru
          _
      $region84: #{tpu_custom_call.1} parent=5 // pred_fallthru
        _
      %p1772 = scmp.le.s32.totalorder 2, %s33
      // Predicated region
      $region117: #{tpu_custom_call.1} parent=5 // pred_check
        %p1773 = pneg %p1772
      $region118: #{tpu_custom_call.1} parent=5 // pred_check_branch
        %1775 = sbr.rel (%p1773) target = $region120
      $region119: #{tpu_custom_call.1} parent=5 // pred_region
        %s1776 = ssub.s32 %s33, 2
        // Predicated region
        $region121: #{tpu_custom_call.1} parent=119 // pred_check
          %p1777 = pneg %p422
        $region122: #{tpu_custom_call.1} parent=119 // pred_check_branch
          %1779 = sbr.rel (%p1777) target = $region124
        $region123: #{tpu_custom_call.1} parent=119 // pred_region
          %s1780 = sand.u32 %s407, 1
          %s1781 = scalar_lea.sflag [#allocation7], %s1780
          %s1782 = sand.u32 %s407, 1
          %s1783 = smul.addr %s1782, 8
          %s1784 = scalar_lea.vmem [#allocation14], %s1783
          %1785 = dma.done %s1781, 128
        $region124: #{tpu_custom_call.1} parent=119 // pred_fallthru
          _
        // Predicated region
        $region125: #{tpu_custom_call.1} parent=119 // pred_check
          %p1786 = pneg %p450
        $region126: #{tpu_custom_call.1} parent=119 // pred_check_branch
          %1788 = sbr.rel (%p1786) target = $region128
        $region127: #{tpu_custom_call.1} parent=119 // pred_region
          %s1789 = sand.u32 %s435, 1
          %s1790 = scalar_lea.sflag [#allocation16], %s1789
          %s1791 = sand.u32 %s435, 1
          %s1792 = smul.addr %s1791, 8
          %s1793 = scalar_lea.vmem [#allocation15], %s1792
          %1794 = dma.done %s1790, 128
        $region128: #{tpu_custom_call.1} parent=119 // pred_fallthru
          _
      $region120: #{tpu_custom_call.1} parent=5 // pred_fallthru
        _
    $region6: #{tpu_custom_call.1} parent=1 // loop_footer
      %s37 = sadd.s32 1, %s33
    $region7: #{tpu_custom_call.1} parent=1 // loop_footer_branch
      %32 = sbr.rel target = $region3
    $region8: #{tpu_custom_call.1} parent=1 // loop_exit
      _
    %1795 = vsyncpa [#allocation6], 1
    %s1796 = scalar_lea.sflag [#allocation6], 1
    %1797 = vsyncpa %s1796, 1
    %1798 = vsyncpa [#allocation9], 1
    %1799 = vsyncpa [#allocation12], 1
    %1800 = vsyncpa [#allocation7], 1
    %s1801 = scalar_lea.sflag [#allocation7], 1
    %1802 = vsyncpa %s1801, 1
    %1803 = vsyncpa [#allocation16], 1
    %s1804 = scalar_lea.sflag [#allocation16], 1
    %1805 = vsyncpa %s1804, 1

// kernel: tpu_custom_call.1
$region0: #{tpu_custom_call.1}
  #allocation0 [shape = 'u32[]', space=smem, size = 0x4, offset = 0x4, fixed_abs, tag = 'smem constant byte address 0x4 - core index']
  #allocation1 [shape = 'u32[144,128]{1,0:T(1,128)}', space=vmem, size = 0x12000, scoped, tag = 'internal scratch']
  #allocation2 [shape = 'bf16[8,32]{1,0:T(8,128)(2,1)}', space=vmem, size = 0x800, scoped, tag = 'scratch operand']
  #allocation3 [shape = 'bf16[32,8]{1,0:T(8,128)(2,1)}', space=vmem, size = 0x2000, scoped, tag = 'scratch operand']
  #allocation4 [shape = 'bf16[8,32]{1,0:T(8,128)(2,1)}', space=vmem, size = 0x800, scoped, tag = 'scratch operand']
  %s0 = inlined_call_operand.vmem [shape: f32[2,8,32], index: 0, kind: input, shape index: {}]
  %s1 = inlined_call_operand.vmem [shape: f32[2,8,32], index: 1, kind: input, shape index: {}]
  %s2 = inlined_call_operand.vmem [shape: bf16[32,64], index: 2, kind: input, shape index: {}]
  %s3 = inlined_call_operand.vmem [shape: f32[1,64], index: 3, kind: input, shape index: {}]
  %s4 = inlined_call_operand.hbm [shape: bf16[32,32], index: 4, kind: input, shape index: {}]
  %s5 = inlined_call_operand.vmem [shape: f32[1,32], index: 5, kind: input, shape index: {}]
  %s6 = inlined_call_operand.hbm [shape: bf16[32,32], index: 6, kind: input, shape index: {}]
  %s7 = inlined_call_operand.hbm [shape: f32[1,32], index: 7, kind: input, shape index: {}]
  %s8 = inlined_call_operand.hbm [shape: bf16[32,64], index: 8, kind: input, shape index: {}]
  %s9 = inlined_call_operand.hbm [shape: f32[1,64], index: 9, kind: input, shape index: {}]
  %s10 = inlined_call_operand.vmem [shape: bf16[64,32], index: 10, kind: input, shape index: {}]
  %s11 = inlined_call_operand.vmem [shape: f32[1,32], index: 11, kind: input, shape index: {}]
  %s12 = inlined_call_operand.vmem [shape: f32[1,32], index: 12, kind: input, shape index: {}]
  %s13 = inlined_call_operand.vmem [shape: f32[1,32], index: 13, kind: input, shape index: {}]
  %s14 = inlined_call_operand.vmem [shape: f32[1,32], index: 14, kind: input, shape index: {}]
  %s15 = inlined_call_operand.vmem [shape: f32[1,32], index: 15, kind: input, shape index: {}]
  %s16 = inlined_call_operand.hbm [shape: f32[2,8,32], index: 16, kind: output, shape index: {0}]
  %s17 = inlined_call_operand.hbm [shape: f32[2,8,8], index: 17, kind: output, shape index: {1}]
  %18 = xla_tuple %s16, %s17
  %s19 = sld [smem:[#allocation0]]
  $region129: #{tpu_custom_call.1} parent=0
    _
  %s21 = ssub.s32 1, %s19
  %s22 = scalar_select 0, %s21, %s19
  $region1: #{tpu_custom_call.1} parent=0
    #allocation5 [shape = 'u8[8192]{0}', space=vmem, size = 0x2000, scoped, tag = 'input window, operand 4, single buffered']
    #allocation6 [shape = 's32[2]{0}', space=sflag, size = 0x8, scoped, tag = 'scoped memory for tpu_custom_call.1']
    #allocation7 [shape = 's32[2]{0}', space=sflag, size = 0x8, scoped, tag = 'scoped memory for tpu_custom_call.1']
    #allocation8 [shape = 'u8[8192]{0}', space=vmem, size = 0x2000, scoped, tag = 'input window, operand 6, single buffered']
    #allocation9 [shape = 's32[1]{0}', space=sflag, size = 0x4, scoped, tag = 'scoped memory for tpu_custom_call.1']
    #allocation10 [shape = 'u8[512]{0}', space=vmem, size = 0x400, scoped, tag = 'input window, operand 7, single buffered']
    #allocation11 [shape = 'u8[8192]{0}', space=vmem, size = 0x2000, scoped, tag = 'input window, operand 8, single buffered']
    #allocation12 [shape = 's32[1]{0}', space=sflag, size = 0x4, scoped, tag = 'scoped memory for tpu_custom_call.1']
    #allocation13 [shape = 'u8[512]{0}', space=vmem, size = 0x400, scoped, tag = 'input window, operand 9, single buffered']
    #allocation14 [shape = 'u8[8192]{0}', space=vmem, size = 0x2000, scoped, tag = 'output window, operand 0']
    #allocation15 [shape = 'u8[8192]{0}', space=vmem, size = 0x2000, scoped, tag = 'output window, operand 1']
    #allocation16 [shape = 's32[2]{0}', space=sflag, size = 0x8, scoped, tag = 'scoped memory for tpu_custom_call.1']
    %23 = vsyncpa [#allocation6], 0
    %24 = vsyncpa [#allocation9], 0
    %25 = vsyncpa [#allocation12], 0
    %26 = vsyncpa [#allocation7], 0
    %s27 = scalar_lea.sflag [#allocation7], 1
    %28 = vsyncpa %s27, 0
    %29 = vsyncpa [#allocation16], 0
    %s30 = scalar_lea.sflag [#allocation16], 1
    %31 = vsyncpa %s30, 0
    loop: start=0, step=1, limit=4
    $region2: #{tpu_custom_call.1} parent=1 // loop_pre_header
      _
    $region3: #{tpu_custom_call.1} parent=1 // loop_header
      %s33 = sphi 0, %s37
      %p34 = scmp.ge.s32.totalorder %s33, 4
      %s40 = sphi 0, %s52
      %s41 = sphi 0, %s48
      %s42 = sphi 0, %s40
      %s43 = sphi 0, %s41
      %s44 = sphi 0, %s42
      %s45 = sphi 0, %s43
      %s55 = sphi 0, %s57
      %s58 = sphi 0, %s55
      %s59 = sphi 0, %s58
      %s75 = sphi 0, %s59
      %s81 = sphi 0, %s83
      %s84 = sphi 0, %s81
      %s85 = sphi 0, %s84
      %s101 = sphi 0, %s85
      %s105 = sphi 0, %s105
      %s107 = sphi 0, %s105
      %s108 = sphi 0, %s107
      %s122 = sphi 0, %s108
      %s126 = sphi 0, %s126
      %s128 = sphi 0, %s126
      %s129 = sphi 0, %s128
      %s143 = sphi 0, %s129
      %s147 = sphi 0, %s147
      %s149 = sphi 0, %s147
      %s150 = sphi 0, %s149
      %s164 = sphi 0, %s150
      %s168 = sphi 0, %s168
      %s170 = sphi 0, %s168
      %s171 = sphi 0, %s170
      %s185 = sphi 0, %s171
      %s189 = sphi 0, %s189
      %s191 = sphi 0, %s189
      %s192 = sphi 0, %s191
      %s206 = sphi 0, %s192
      %s210 = sphi 0, %s210
      %s212 = sphi 0, %s210
      %s213 = sphi 0, %s212
      %s227 = sphi 0, %s213
      %s231 = sphi 0, %s231
      %s233 = sphi 0, %s231
      %s234 = sphi 0, %s233
      %s248 = sphi 0, %s234
      %s252 = sphi 0, %s252
      %s254 = sphi 0, %s252
      %s255 = sphi 0, %s254
      %s269 = sphi 0, %s255
      %s273 = sphi 0, %s273
      %s275 = sphi 0, %s273
      %s276 = sphi 0, %s275
      %s290 = sphi 0, %s276
      %s294 = sphi 0, %s294
      %s296 = sphi 0, %s294
      %s297 = sphi 0, %s296
      %s311 = sphi 0, %s297
      %s315 = sphi 0, %s315
      %s317 = sphi 0, %s315
      %s318 = sphi 0, %s317
      %s332 = sphi 0, %s318
      %s336 = sphi 0, %s336
      %s338 = sphi 0, %s336
      %s339 = sphi 0, %s338
      %s353 = sphi 0, %s339
      %s357 = sphi 0, %s357
      %s359 = sphi 0, %s357
      %s360 = sphi 0, %s359
      %s374 = sphi 0, %s360
      %s378 = sphi 0, %s378
      %s380 = sphi 0, %s378
      %s381 = sphi 0, %s380
      %s395 = sphi 0, %s381
      %s403 = sphi 0, %s405
      %s406 = sphi 0, %s403
      %s407 = sphi 0, %s406
      %s423 = sphi 0, %s407
      %s431 = sphi 0, %s433
      %s434 = sphi 0, %s431
      %s435 = sphi 0, %s434
      %s451 = sphi 0, %s435
    $region4: #{tpu_custom_call.1} parent=1 // loop_header_branch
      %36 = sbr.rel (%p34) target = $region8
    $region5: #{tpu_custom_call.1} parent=1 // loop_body
      %s38 = ssub.s32 %s33, 1
      %s39 = ssub.s32 %s33, 2
      %s46 = sadd.s32 1, %s41
      %p47 = scmp.ge.s32.totalorder %s46, 1
      %s48 = scalar_select %p47, 0, %s46
      %s49 = sadd.s32 1, %s40
      %s50 = scalar_select %p47, %s49, %s40
      %p51 = scmp.ge.s32.totalorder %s50, 2
      %s52 = scalar_select %p51, 0, %s50
      %s53 = ssub.s32 %s40, %s52
      %p54 = scmp.eq.s32.totalorder %s53, 0
      %s56 = sadd.s32 %s55, 1
      %s57 = scalar_select %p54, %s55, %s56
      %p60 = pneg %p54
      %p61 = scmp.eq.s32.totalorder %s33, 1
      %p62 = por %p60, %p61
      %p63 = scmp.ne.s32.totalorder %s55, %s58
      %p64 = scmp.eq.s32.totalorder %s33, 0
      %p65 = por %p63, %p64
      %p66 = scmp.ne.s32.totalorder %s55, %s58
      %p67 = scmp.eq.s32.totalorder %s38, 1
      %p68 = por %p66, %p67
      %p69 = scmp.ne.s32.totalorder %s58, %s59
      %p70 = scmp.eq.s32.totalorder %s38, 0
      %p71 = por %p69, %p70
      %p72 = scmp.ne.s32.totalorder %s58, %s59
      %p73 = scmp.eq.s32.totalorder %s39, 1
      %p74 = por %p72, %p73
      %p76 = scmp.ne.s32.totalorder %s59, %s75
      %p77 = scmp.eq.s32.totalorder %s39, 0
      %p78 = por %p76, %p77
      %s79 = ssub.s32 %s40, %s52
      %p80 = scmp.eq.s32.totalorder %s79, 0
      %s82 = sadd.s32 %s81, 1
      %s83 = scalar_select %p80, %s81, %s82
      %p86 = pneg %p80
      %p87 = scmp.eq.s32.totalorder %s33, 1
      %p88 = por %p86, %p87
      %p89 = scmp.ne.s32.totalorder %s81, %s84
      %p90 = scmp.eq.s32.totalorder %s33, 0
      %p91 = por %p89, %p90
      %p92 = scmp.ne.s32.totalorder %s81, %s84
      %p93 = scmp.eq.s32.totalorder %s38, 1
      %p94 = por %p92, %p93
      %p95 = scmp.ne.s32.totalorder %s84, %s85
      %p96 = scmp.eq.s32.totalorder %s38, 0
      %p97 = por %p95, %p96
      %p98 = scmp.ne.s32.totalorder %s84, %s85
      %p99 = scmp.eq.s32.totalorder %s39, 1
      %p100 = por %p98, %p99
      %p102 = scmp.ne.s32.totalorder %s85, %s101
      %p103 = scmp.eq.s32.totalorder %s39, 0
      %p104 = por %p102, %p103
      %s106 = sadd.s32 %s105, 1
      %p109 = scmp.eq.s32.totalorder %s33, 1
      %p110 = scmp.ne.s32.totalorder %s105, %s107
      %p111 = scmp.eq.s32.totalorder %s33, 0
      %p112 = por %p110, %p111
      %p113 = scmp.ne.s32.totalorder %s105, %s107
      %p114 = scmp.eq.s32.totalorder %s38, 1
      %p115 = por %p113, %p114
      %p116 = scmp.ne.s32.totalorder %s107, %s108
      %p117 = scmp.eq.s32.totalorder %s38, 0
      %p118 = por %p116, %p117
      %p119 = scmp.ne.s32.totalorder %s107, %s108
      %p120 = scmp.eq.s32.totalorder %s39, 1
      %p121 = por %p119, %p120
      %p123 = scmp.ne.s32.totalorder %s108, %s122
      %p124 = scmp.eq.s32.totalorder %s39, 0
      %p125 = por %p123, %p124
      %s127 = sadd.s32 %s126, 1
      %p130 = scmp.eq.s32.totalorder %s33, 1
      %p131 = scmp.ne.s32.totalorder %s126, %s128
      %p132 = scmp.eq.s32.totalorder %s33, 0
      %p133 = por %p131, %p132
      %p134 = scmp.ne.s32.totalorder %s126, %s128
      %p135 = scmp.eq.s32.totalorder %s38, 1
      %p136 = por %p134, %p135
      %p137 = scmp.ne.s32.totalorder %s128, %s129
      %p138 = scmp.eq.s32.totalorder %s38, 0
      %p139 = por %p137, %p138
      %p140 = scmp.ne.s32.totalorder %s128, %s129
      %p141 = scmp.eq.s32.totalorder %s39, 1
      %p142 = por %p140, %p141
      %p144 = scmp.ne.s32.totalorder %s129, %s143
      %p145 = scmp.eq.s32.totalorder %s39, 0
      %p146 = por %p144, %p145
      %s148 = sadd.s32 %s147, 1
      %p151 = scmp.eq.s32.totalorder %s33, 1
      %p152 = scmp.ne.s32.totalorder %s147, %s149
      %p153 = scmp.eq.s32.totalorder %s33, 0
      %p154 = por %p152, %p153
      %p155 = scmp.ne.s32.totalorder %s147, %s149
      %p156 = scmp.eq.s32.totalorder %s38, 1
      %p157 = por %p155, %p156
      %p158 = scmp.ne.s32.totalorder %s149, %s150
      %p159 = scmp.eq.s32.totalorder %s38, 0
      %p160 = por %p158, %p159
      %p161 = scmp.ne.s32.totalorder %s149, %s150
      %p162 = scmp.eq.s32.totalorder %s39, 1
      %p163 = por %p161, %p162
      %p165 = scmp.ne.s32.totalorder %s150, %s164
      %p166 = scmp.eq.s32.totalorder %s39, 0
      %p167 = por %p165, %p166
      %s169 = sadd.s32 %s168, 1
      %p172 = scmp.eq.s32.totalorder %s33, 1
      %p173 = scmp.ne.s32.totalorder %s168, %s170
      %p174 = scmp.eq.s32.totalorder %s33, 0
      %p175 = por %p173, %p174
      %p176 = scmp.ne.s32.totalorder %s168, %s170
      %p177 = scmp.eq.s32.totalorder %s38, 1
      %p178 = por %p176, %p177
      %p179 = scmp.ne.s32.totalorder %s170, %s171
      %p180 = scmp.eq.s32.totalorder %s38, 0
      %p181 = por %p179, %p180
      %p182 = scmp.ne.s32.totalorder %s170, %s171
      %p183 = scmp.eq.s32.totalorder %s39, 1
      %p184 = por %p182, %p183
      %p186 = scmp.ne.s32.totalorder %s171, %s185
      %p187 = scmp.eq.s32.totalorder %s39, 0
      %p188 = por %p186, %p187
      %s190 = sadd.s32 %s189, 1
      %p193 = scmp.eq.s32.totalorder %s33, 1
      %p194 = scmp.ne.s32.totalorder %s189, %s191
      %p195 = scmp.eq.s32.totalorder %s33, 0
      %p196 = por %p194, %p195
      %p197 = scmp.ne.s32.totalorder %s189, %s191
      %p198 = scmp.eq.s32.totalorder %s38, 1
      %p199 = por %p197, %p198
      %p200 = scmp.ne.s32.totalorder %s191, %s192
      %p201 = scmp.eq.s32.totalorder %s38, 0
      %p202 = por %p200, %p201
      %p203 = scmp.ne.s32.totalorder %s191, %s192
      %p204 = scmp.eq.s32.totalorder %s39, 1
      %p205 = por %p203, %p204
      %p207 = scmp.ne.s32.totalorder %s192, %s206
      %p208 = scmp.eq.s32.totalorder %s39, 0
      %p209 = por %p207, %p208
      %s211 = sadd.s32 %s210, 1
      %p214 = scmp.eq.s32.totalorder %s33, 1
      %p215 = scmp.ne.s32.totalorder %s210, %s212
      %p216 = scmp.eq.s32.totalorder %s33, 0
      %p217 = por %p215, %p216
      %p218 = scmp.ne.s32.totalorder %s210, %s212
      %p219 = scmp.eq.s32.totalorder %s38, 1
      %p220 = por %p218, %p219
      %p221 = scmp.ne.s32.totalorder %s212, %s213
      %p222 = scmp.eq.s32.totalorder %s38, 0
      %p223 = por %p221, %p222
      %p224 = scmp.ne.s32.totalorder %s212, %s213
      %p225 = scmp.eq.s32.totalorder %s39, 1
      %p226 = por %p224, %p225
      %p228 = scmp.ne.s32.totalorder %s213, %s227
      %p229 = scmp.eq.s32.totalorder %s39, 0
      %p230 = por %p228, %p229
      %s232 = sadd.s32 %s231, 1
      %p235 = scmp.eq.s32.totalorder %s33, 1
      %p236 = scmp.ne.s32.totalorder %s231, %s233
      %p237 = scmp.eq.s32.totalorder %s33, 0
      %p238 = por %p236, %p237
      %p239 = scmp.ne.s32.totalorder %s231, %s233
      %p240 = scmp.eq.s32.totalorder %s38, 1
      %p241 = por %p239, %p240
      %p242 = scmp.ne.s32.totalorder %s233, %s234
      %p243 = scmp.eq.s32.totalorder %s38, 0
      %p244 = por %p242, %p243
      %p245 = scmp.ne.s32.totalorder %s233, %s234
      %p246 = scmp.eq.s32.totalorder %s39, 1
      %p247 = por %p245, %p246
      %p249 = scmp.ne.s32.totalorder %s234, %s248
      %p250 = scmp.eq.s32.totalorder %s39, 0
      %p251 = por %p249, %p250
      %s253 = sadd.s32 %s252, 1
      %p256 = scmp.eq.s32.totalorder %s33, 1
      %p257 = scmp.ne.s32.totalorder %s252, %s254
      %p258 = scmp.eq.s32.totalorder %s33, 0
      %p259 = por %p257, %p258
      %p260 = scmp.ne.s32.totalorder %s252, %s254
      %p261 = scmp.eq.s32.totalorder %s38, 1
      %p262 = por %p260, %p261
      %p263 = scmp.ne.s32.totalorder %s254, %s255
      %p264 = scmp.eq.s32.totalorder %s38, 0
      %p265 = por %p263, %p264
      %p266 = scmp.ne.s32.totalorder %s254, %s255
      %p267 = scmp.eq.s32.totalorder %s39, 1
      %p268 = por %p266, %p267
      %p270 = scmp.ne.s32.totalorder %s255, %s269
      %p271 = scmp.eq.s32.totalorder %s39, 0
      %p272 = por %p270, %p271
      %s274 = sadd.s32 %s273, 1
      %p277 = scmp.eq.s32.totalorder %s33, 1
      %p278 = scmp.ne.s32.totalorder %s273, %s275
      %p279 = scmp.eq.s32.totalorder %s33, 0
      %p280 = por %p278, %p279
      %p281 = scmp.ne.s32.totalorder %s273, %s275
      %p282 = scmp.eq.s32.totalorder %s38, 1
      %p283 = por %p281, %p282
      %p284 = scmp.ne.s32.totalorder %s275, %s276
      %p285 = scmp.eq.s32.totalorder %s38, 0
      %p286 = por %p284, %p285
      %p287 = scmp.ne.s32.totalorder %s275, %s276
      %p288 = scmp.eq.s32.totalorder %s39, 1
      %p289 = por %p287, %p288
      %p291 = scmp.ne.s32.totalorder %s276, %s290
      %p292 = scmp.eq.s32.totalorder %s39, 0
      %p293 = por %p291, %p292
      %s295 = sadd.s32 %s294, 1
      %p298 = scmp.eq.s32.totalorder %s33, 1
      %p299 = scmp.ne.s32.totalorder %s294, %s296
      %p300 = scmp.eq.s32.totalorder %s33, 0
      %p301 = por %p299, %p300
      %p302 = scmp.ne.s32.totalorder %s294, %s296
      %p303 = scmp.eq.s32.totalorder %s38, 1
      %p304 = por %p302, %p303
      %p305 = scmp.ne.s32.totalorder %s296, %s297
      %p306 = scmp.eq.s32.totalorder %s38, 0
      %p307 = por %p305, %p306
      %p308 = scmp.ne.s32.totalorder %s296, %s297
      %p309 = scmp.eq.s32.totalorder %s39, 1
      %p310 = por %p308, %p309
      %p312 = scmp.ne.s32.totalorder %s297, %s311
      %p313 = scmp.eq.s32.totalorder %s39, 0
      %p314 = por %p312, %p313
      %s316 = sadd.s32 %s315, 1
      %p319 = scmp.eq.s32.totalorder %s33, 1
      %p320 = scmp.ne.s32.totalorder %s315, %s317
      %p321 = scmp.eq.s32.totalorder %s33, 0
      %p322 = por %p320, %p321
      %p323 = scmp.ne.s32.totalorder %s315, %s317
      %p324 = scmp.eq.s32.totalorder %s38, 1
      %p325 = por %p323, %p324
      %p326 = scmp.ne.s32.totalorder %s317, %s318
      %p327 = scmp.eq.s32.totalorder %s38, 0
      %p328 = por %p326, %p327
      %p329 = scmp.ne.s32.totalorder %s317, %s318
      %p330 = scmp.eq.s32.totalorder %s39, 1
      %p331 = por %p329, %p330
      %p333 = scmp.ne.s32.totalorder %s318, %s332
      %p334 = scmp.eq.s32.totalorder %s39, 0
      %p335 = por %p333, %p334
      %s337 = sadd.s32 %s336, 1
      %p340 = scmp.eq.s32.totalorder %s33, 1
      %p341 = scmp.ne.s32.totalorder %s336, %s338
      %p342 = scmp.eq.s32.totalorder %s33, 0
      %p343 = por %p341, %p342
      %p344 = scmp.ne.s32.totalorder %s336, %s338
      %p345 = scmp.eq.s32.totalorder %s38, 1
      %p346 = por %p344, %p345
      %p347 = scmp.ne.s32.totalorder %s338, %s339
      %p348 = scmp.eq.s32.totalorder %s38, 0
      %p349 = por %p347, %p348
      %p350 = scmp.ne.s32.totalorder %s338, %s339
      %p351 = scmp.eq.s32.totalorder %s39, 1
      %p352 = por %p350, %p351
      %p354 = scmp.ne.s32.totalorder %s339, %s353
      %p355 = scmp.eq.s32.totalorder %s39, 0
      %p356 = por %p354, %p355
      %s358 = sadd.s32 %s357, 1
      %p361 = scmp.eq.s32.totalorder %s33, 1
      %p362 = scmp.ne.s32.totalorder %s357, %s359
      %p363 = scmp.eq.s32.totalorder %s33, 0
      %p364 = por %p362, %p363
      %p365 = scmp.ne.s32.totalorder %s357, %s359
      %p366 = scmp.eq.s32.totalorder %s38, 1
      %p367 = por %p365, %p366
      %p368 = scmp.ne.s32.totalorder %s359, %s360
      %p369 = scmp.eq.s32.totalorder %s38, 0
      %p370 = por %p368, %p369
      %p371 = scmp.ne.s32.totalorder %s359, %s360
      %p372 = scmp.eq.s32.totalorder %s39, 1
      %p373 = por %p371, %p372
      %p375 = scmp.ne.s32.totalorder %s360, %s374
      %p376 = scmp.eq.s32.totalorder %s39, 0
      %p377 = por %p375, %p376
      %s379 = sadd.s32 %s378, 1
      %p382 = scmp.eq.s32.totalorder %s33, 1
      %p383 = scmp.ne.s32.totalorder %s378, %s380
      %p384 = scmp.eq.s32.totalorder %s33, 0
      %p385 = por %p383, %p384
      %p386 = scmp.ne.s32.totalorder %s378, %s380
      %p387 = scmp.eq.s32.totalorder %s38, 1
      %p388 = por %p386, %p387
      %p389 = scmp.ne.s32.totalorder %s380, %s381
      %p390 = scmp.eq.s32.totalorder %s38, 0
      %p391 = por %p389, %p390
      %p392 = scmp.ne.s32.totalorder %s380, %s381
      %p393 = scmp.eq.s32.totalorder %s39, 1
      %p394 = por %p392, %p393
      %p396 = scmp.ne.s32.totalorder %s381, %s395
      %p397 = scmp.eq.s32.totalorder %s39, 0
      %p398 = por %p396, %p397
      %s399 = ssub.s32 %s40, %s52
      %s400 = ssub.s32 %s41, %s48
      %s401 = sor.u32 %s399, %s400
      %p402 = scmp.eq.s32.totalorder %s401, 0
      %s404 = sadd.s32 %s403, 1
      %s405 = scalar_select %p402, %s403, %s404
      %p408 = pneg %p402
      %p409 = scmp.eq.s32.totalorder %s33, 1
      %p410 = por %p408, %p409
      %p411 = scmp.ne.s32.totalorder %s403, %s406
      %p412 = scmp.eq.s32.totalorder %s33, 0
      %p413 = por %p411, %p412
      %p414 = scmp.ne.s32.totalorder %s403, %s406
      %p415 = scmp.eq.s32.totalorder %s38, 1
      %p416 = por %p414, %p415
      %p417 = scmp.ne.s32.totalorder %s406, %s407
      %p418 = scmp.eq.s32.totalorder %s38, 0
      %p419 = por %p417, %p418
      %p420 = scmp.ne.s32.totalorder %s406, %s407
      %p421 = scmp.eq.s32.totalorder %s39, 1
      %p422 = por %p420, %p421
      %p424 = scmp.ne.s32.totalorder %s407, %s423
      %p425 = scmp.eq.s32.totalorder %s39, 0
      %p426 = por %p424, %p425
      %s427 = ssub.s32 %s40, %s52
      %s428 = ssub.s32 %s41, %s48
      %s429 = sor.u32 %s427, %s428
      %p430 = scmp.eq.s32.totalorder %s429, 0
      %s432 = sadd.s32 %s431, 1
      %s433 = scalar_select %p430, %s431, %s432
      %p436 = pneg %p430
      %p437 = scmp.eq.s32.totalorder %s33, 1
      %p438 = por %p436, %p437
      %p439 = scmp.ne.s32.totalorder %s431, %s434
      %p440 = scmp.eq.s32.totalorder %s33, 0
      %p441 = por %p439, %p440
      %p442 = scmp.ne.s32.totalorder %s431, %s434
      %p443 = scmp.eq.s32.totalorder %s38, 1
      %p444 = por %p442, %p443
      %p445 = scmp.ne.s32.totalorder %s434, %s435
      %p446 = scmp.eq.s32.totalorder %s38, 0
      %p447 = por %p445, %p446
      %p448 = scmp.ne.s32.totalorder %s434, %s435
      %p449 = scmp.eq.s32.totalorder %s39, 1
      %p450 = por %p448, %p449
      %p452 = scmp.ne.s32.totalorder %s435, %s451
      %p453 = scmp.eq.s32.totalorder %s39, 0
      %p454 = por %p452, %p453
      %p455 = scmp.le.s32.totalorder 1, %s33
      %p456 = scmp.lt.s32.totalorder %s33, 3
      %p457 = pnand %p455, %p456
      %p458 = pneg %p457
      // Predicated region
      $region9: #{tpu_custom_call.1} parent=5 // pred_check
        _
      $region10: #{tpu_custom_call.1} parent=5 // pred_check_branch
        %460 = sbr.rel (%p457) target = $region12
      $region11: #{tpu_custom_call.1} parent=5 // pred_region
        %s461 = ssub.s32 %s33, 1
        // Predicated region
        $region13: #{tpu_custom_call.1} parent=11 // pred_check
          %p462 = pneg %p118
        $region14: #{tpu_custom_call.1} parent=11 // pred_check_branch
          %464 = sbr.rel (%p462) target = $region16
        $region15: #{tpu_custom_call.1} parent=11 // pred_region
          _
        $region16: #{tpu_custom_call.1} parent=11 // pred_fallthru
          _
        // Predicated region
        $region17: #{tpu_custom_call.1} parent=11 // pred_check
          %p465 = pneg %p139
        $region18: #{tpu_custom_call.1} parent=11 // pred_check_branch
          %467 = sbr.rel (%p465) target = $region20
        $region19: #{tpu_custom_call.1} parent=11 // pred_region
          _
        $region20: #{tpu_custom_call.1} parent=11 // pred_fallthru
          _
        // Predicated region
        $region21: #{tpu_custom_call.1} parent=11 // pred_check
          %p468 = pneg %p160
        $region22: #{tpu_custom_call.1} parent=11 // pred_check_branch
          %470 = sbr.rel (%p468) target = $region24
        $region23: #{tpu_custom_call.1} parent=11 // pred_region
          %s472 = ssub.s32 256, 256
          %473 = vsyncadd [#allocation6], %s472
          %s474 = sshll.u32 [#allocation5], 4
          %s475 = int_to_ptr.vmem [resolvable:$true] %s474
          %480 = dma.hbm_to_vmem [thread:$0]  %s4, 256, %s475, [#allocation6], 64, 64, 4
        $region24: #{tpu_custom_call.1} parent=11 // pred_fallthru
          _
        // Predicated region
        $region25: #{tpu_custom_call.1} parent=11 // pred_check
          %p481 = pneg %p181
        $region26: #{tpu_custom_call.1} parent=11 // pred_check_branch
          %483 = sbr.rel (%p481) target = $region28
        $region27: #{tpu_custom_call.1} parent=11 // pred_region
          _
        $region28: #{tpu_custom_call.1} parent=11 // pred_fallthru
          _
        // Predicated region
        $region29: #{tpu_custom_call.1} parent=11 // pred_check
          %p484 = pneg %p202
        $region30: #{tpu_custom_call.1} parent=11 // pred_check_branch
          %486 = sbr.rel (%p484) target = $region32
        $region31: #{tpu_custom_call.1} parent=11 // pred_region
          %s488 = ssub.s32 256, 256
          %489 = vsyncadd [#allocation9], %s488
          %s490 = sshll.u32 [#allocation8], 4
          %s491 = int_to_ptr.vmem [resolvable:$true] %s490
          %496 = dma.hbm_to_vmem [thread:$0]  %s6, 256, %s491, [#allocation9], 64, 64, 4
        $region32: #{tpu_custom_call.1} parent=11 // pred_fallthru
          _
        // Predicated region
        $region33: #{tpu_custom_call.1} parent=11 // pred_check
          %p497 = pneg %p223
        $region34: #{tpu_custom_call.1} parent=11 // pred_check_branch
          %499 = sbr.rel (%p497) target = $region36
        $region35: #{tpu_custom_call.1} parent=11 // pred_region
          %s501 = ssub.s32 16, 16
          %502 = vsyncadd [#allocation9], %s501
          %s504 = sshll.u32 [#allocation10], 4
          %s505 = int_to_ptr.vmem [resolvable:$true] %s504
          %507 = dma.hbm_to_vmem [thread:$0]  %s7, 16, %s505, [#allocation9]
        $region36: #{tpu_custom_call.1} parent=11 // pred_fallthru
          _
        // Predicated region
        $region37: #{tpu_custom_call.1} parent=11 // pred_check
          %p508 = pneg %p244
        $region38: #{tpu_custom_call.1} parent=11 // pred_check_branch
          %510 = sbr.rel (%p508) target = $region40
        $region39: #{tpu_custom_call.1} parent=11 // pred_region
          %s512 = ssub.s32 256, 256
          %513 = vsyncadd [#allocation12], %s512
          %s514 = sshll.u32 [#allocation11], 4
          %s515 = int_to_ptr.vmem [resolvable:$true] %s514
          %520 = dma.hbm_to_vmem [thread:$0]  %s8, 256, %s515, [#allocation12], 64, 64, 4
        $region40: #{tpu_custom_call.1} parent=11 // pred_fallthru
          _
        // Predicated region
        $region41: #{tpu_custom_call.1} parent=11 // pred_check
          %p521 = pneg %p265
        $region42: #{tpu_custom_call.1} parent=11 // pred_check_branch
          %523 = sbr.rel (%p521) target = $region44
        $region43: #{tpu_custom_call.1} parent=11 // pred_region
          %s525 = ssub.s32 16, 16
          %526 = vsyncadd [#allocation12], %s525
          %s528 = sshll.u32 [#allocation13], 4
          %s529 = int_to_ptr.vmem [resolvable:$true] %s528
          %531 = dma.hbm_to_vmem [thread:$0]  %s9, 16, %s529, [#allocation12]
        $region44: #{tpu_custom_call.1} parent=11 // pred_fallthru
          _
        // Predicated region
        $region45: #{tpu_custom_call.1} parent=11 // pred_check
          %p532 = pneg %p286
        $region46: #{tpu_custom_call.1} parent=11 // pred_check_branch
          %534 = sbr.rel (%p532) target = $region48
        $region47: #{tpu_custom_call.1} parent=11 // pred_region
          _
        $region48: #{tpu_custom_call.1} parent=11 // pred_fallthru
          _
        // Predicated region
        $region49: #{tpu_custom_call.1} parent=11 // pred_check
          %p535 = pneg %p307
        $region50: #{tpu_custom_call.1} parent=11 // pred_check_branch
          %537 = sbr.rel (%p535) target = $region52
        $region51: #{tpu_custom_call.1} parent=11 // pred_region
          _
        $region52: #{tpu_custom_call.1} parent=11 // pred_fallthru
          _
        // Predicated region
        $region53: #{tpu_custom_call.1} parent=11 // pred_check
          %p538 = pneg %p328
        $region54: #{tpu_custom_call.1} parent=11 // pred_check_branch
          %540 = sbr.rel (%p538) target = $region56
        $region55: #{tpu_custom_call.1} parent=11 // pred_region
          _
        $region56: #{tpu_custom_call.1} parent=11 // pred_fallthru
          _
        // Predicated region
        $region57: #{tpu_custom_call.1} parent=11 // pred_check
          %p541 = pneg %p349
        $region58: #{tpu_custom_call.1} parent=11 // pred_check_branch
          %543 = sbr.rel (%p541) target = $region60
        $region59: #{tpu_custom_call.1} parent=11 // pred_region
          _
        $region60: #{tpu_custom_call.1} parent=11 // pred_fallthru
          _
        // Predicated region
        $region61: #{tpu_custom_call.1} parent=11 // pred_check
          %p544 = pneg %p370
        $region62: #{tpu_custom_call.1} parent=11 // pred_check_branch
          %546 = sbr.rel (%p544) target = $region64
        $region63: #{tpu_custom_call.1} parent=11 // pred_region
          _
        $region64: #{tpu_custom_call.1} parent=11 // pred_fallthru
          _
        // Predicated region
        $region65: #{tpu_custom_call.1} parent=11 // pred_check
          %p547 = pneg %p391
        $region66: #{tpu_custom_call.1} parent=11 // pred_check_branch
          %549 = sbr.rel (%p547) target = $region68
        $region67: #{tpu_custom_call.1} parent=11 // pred_region
          _
        $region68: #{tpu_custom_call.1} parent=11 // pred_fallthru
          _
      $region12: #{tpu_custom_call.1} parent=5 // pred_fallthru
        _
      %p550 = scmp.lt.s32.totalorder %s33, 2
      // Predicated region
      $region69: #{tpu_custom_call.1} parent=5 // pred_check
        %p551 = pneg %p550
      $region70: #{tpu_custom_call.1} parent=5 // pred_check_branch
        %553 = sbr.rel (%p551) target = $region72
      $region71: #{tpu_custom_call.1} parent=5 // pred_region
        // Predicated region
        $region73: #{tpu_custom_call.1} parent=71 // pred_check
          %p554 = pneg %p65
        $region74: #{tpu_custom_call.1} parent=71 // pred_check_branch
          %556 = sbr.rel (%p554) target = $region76
        $region75: #{tpu_custom_call.1} parent=71 // pred_region
          %p557 = scmp.lt.s32.totalorder %s40, 1
          %s558 = scalar_select %p557, %s40, 1
          %s559 = smul.addr %s558, 8
          %s560 = scalar_lea.vmem %s0, %s559
        $region76: #{tpu_custom_call.1} parent=71 // pred_fallthru
          _
        // Predicated region
        $region77: #{tpu_custom_call.1} parent=71 // pred_check
          %p561 = pneg %p91
        $region78: #{tpu_custom_call.1} parent=71 // pred_check_branch
          %563 = sbr.rel (%p561) target = $region80
        $region79: #{tpu_custom_call.1} parent=71 // pred_region
          %p564 = scmp.lt.s32.totalorder %s40, 1
          %s565 = scalar_select %p564, %s40, 1
          %s566 = smul.addr %s565, 8
          %s567 = scalar_lea.vmem %s1, %s566
        $region80: #{tpu_custom_call.1} parent=71 // pred_fallthru
          _
      $region72: #{tpu_custom_call.1} parent=5 // pred_fallthru
        _
      %p568 = scmp.le.s32.totalorder 1, %s33
      %p569 = scmp.lt.s32.totalorder %s33, 3
      %p570 = pnand %p568, %p569
      %p571 = pneg %p570
      // Predicated region
      $region81: #{tpu_custom_call.1} parent=5 // pred_check
        _
      $region82: #{tpu_custom_call.1} parent=5 // pred_check_branch
        %573 = sbr.rel (%p570) target = $region84
      $region83: #{tpu_custom_call.1} parent=5 // pred_region
        %s574 = ssub.s32 %s33, 1
        // Predicated region
        $region85: #{tpu_custom_call.1} parent=83 // pred_check
          %p575 = pneg %p160
        $region86: #{tpu_custom_call.1} parent=83 // pred_check_branch
          %577 = sbr.rel (%p575) target = $region88
        $region87: #{tpu_custom_call.1} parent=83 // pred_region
          %578 = dma.done [#allocation6], 256
        $region88: #{tpu_custom_call.1} parent=83 // pred_fallthru
          _
        // Predicated region
        $region89: #{tpu_custom_call.1} parent=83 // pred_check
          %p579 = pneg %p202
        $region90: #{tpu_custom_call.1} parent=83 // pred_check_branch
          %581 = sbr.rel (%p579) target = $region92
        $region91: #{tpu_custom_call.1} parent=83 // pred_region
          %582 = dma.done [#allocation9], 256
        $region92: #{tpu_custom_call.1} parent=83 // pred_fallthru
          _
        // Predicated region
        $region93: #{tpu_custom_call.1} parent=83 // pred_check
          %p583 = pneg %p223
        $region94: #{tpu_custom_call.1} parent=83 // pred_check_branch
          %585 = sbr.rel (%p583) target = $region96
        $region95: #{tpu_custom_call.1} parent=83 // pred_region
          %586 = dma.done [#allocation9], 16
        $region96: #{tpu_custom_call.1} parent=83 // pred_fallthru
          _
        // Predicated region
        $region97: #{tpu_custom_call.1} parent=83 // pred_check
          %p587 = pneg %p244
        $region98: #{tpu_custom_call.1} parent=83 // pred_check_branch
          %589 = sbr.rel (%p587) target = $region100
        $region99: #{tpu_custom_call.1} parent=83 // pred_region
          %590 = dma.done [#allocation12], 256
        $region100: #{tpu_custom_call.1} parent=83 // pred_fallthru
          _
        // Predicated region
        $region101: #{tpu_custom_call.1} parent=83 // pred_check
          %p591 = pneg %p265
        $region102: #{tpu_custom_call.1} parent=83 // pred_check_branch
          %593 = sbr.rel (%p591) target = $region104
        $region103: #{tpu_custom_call.1} parent=83 // pred_region
          %594 = dma.done [#allocation12], 16
        $region104: #{tpu_custom_call.1} parent=83 // pred_fallthru
          _
        %p595 = scmp.lt.s32.totalorder %s42, 1
        %s596 = scalar_select %p595, %s42, 1
        %s597 = smul.addr %s596, 8
        %s598 = scalar_lea.vmem %s0, %s597
        %p599 = pneg %p71
        %p600 = pneg %p68
        %p601 = scmp.lt.s32.totalorder %s42, 1
        %s602 = scalar_select %p601, %s42, 1
        %s603 = smul.addr %s602, 8
        %s604 = scalar_lea.vmem %s1, %s603
        %p605 = pneg %p97
        %p606 = pneg %p94
        %p607 = pneg %p118
        %p608 = pneg %p115
        %p609 = pneg %p139
        %p610 = pneg %p136
        %p611 = pneg %p160
        %p612 = pneg %p157
        %p613 = pneg %p181
        %p614 = pneg %p178
        %p615 = pneg %p202
        %p616 = pneg %p199
        %p617 = pneg %p223
        %p618 = pneg %p220
        %p619 = pneg %p244
        %p620 = pneg %p241
        %p621 = pneg %p265
        %p622 = pneg %p262
        %p623 = pneg %p286
        %p624 = pneg %p283
        %p625 = pneg %p307
        %p626 = pneg %p304
        %p627 = pneg %p328
        %p628 = pneg %p325
        %p629 = pneg %p349
        %p630 = pneg %p346
        %p631 = pneg %p370
        %p632 = pneg %p367
        %p633 = pneg %p391
        %p634 = pneg %p388
        %p635 = pneg %p419
        %p636 = pneg %p416
        %s637 = sand.u32 %s406, 1
        %s638 = scalar_lea.sflag [#allocation7], %s637
        %s639 = sand.u32 %s406, 1
        %s640 = smul.addr %s639, 8
        %s641 = scalar_lea.vmem [#allocation14], %s640
        %p642 = pneg %p447
        %p643 = pneg %p444
        %s644 = sand.u32 %s434, 1
        %s645 = scalar_lea.sflag [#allocation16], %s644
        %s646 = sand.u32 %s434, 1
        %s647 = smul.addr %s646, 8
        %s648 = scalar_lea.vmem [#allocation15], %s647
        %p649 = scmp.lt.s32.totalorder %s42, 1
        %s650 = scalar_select %p649, %s42, 1
        %s651 = smul.addr %s650, 8
        %s652 = scalar_lea.vmem %s0, %s651
        %p653 = scmp.lt.s32.totalorder %s42, 1
        %s654 = scalar_select %p653, %s42, 1
        %s655 = smul.addr %s654, 8
        %s656 = scalar_lea.vmem %s1, %s655
        %p658 = scmp.eq.s32.totalorder %s43, 0
        // Predicated region
        $region105: #{tpu_custom_call.1} parent=83 // pred_check
          %p659 = pneg %p658
        $region106: #{tpu_custom_call.1} parent=83 // pred_check_branch
          %661 = sbr.rel (%p659) target = $region108
        $region107: #{tpu_custom_call.1} parent=83 // pred_region
          %v662 = vld [vmem:[%s652] sm:$0xff]
          %v663 = vpack.c.bf16 %v662, %v662
          %v664 = vld [vmem:[%s656] sm:$0xff]
          %v665 = vpack.c.bf16 %v664, %v664
          %v666 = vadd.bf16 %v663, %v665
          %v667 = vld [vmem:[%s2] sm:$0xf]
          %v668 = vld [vmem:[%s2 + $0x4] sm:$0xf]
          %v669 = vld [vmem:[%s2 + $0x8] sm:$0xf]
          %v670 = vld [vmem:[%s2 + $0xc] sm:$0xf]
          %v671 = vld [vmem:[%s3] sm:$0x1]
          %v673 = vlaneseq
          %v674 = vshrl.u32 %v673, 7
          %v675 = vsub.s32 0, %v674
          %v676 = vrot.slane %v671, %v675
          %v682 = vunpack.c.l.b16 %v667
          %v683 = vunpack.c.l.b16 %v668
          %v684 = vunpack.c.l.b16 %v669
          %v685 = vunpack.c.l.b16 %v670
          %v686 = vpack.c.b16 %v683, %v682
          %v687 = vpack.c.b16 %v685, %v684
          %vm690 = vcmask 261120
          %v692 = vsel %vm690, %v666, 0
          %694 = vmatprep.subr.bf16.mxu0 0
          %695 = vmatpush1.bf16.msra.mxu0 0
          %696 = vmatprep.subr.bf16.mxu0 0
          %697 = vmatpush1.bf16.msra.mxu0 0
          %698 = vmatprep.subr.bf16.mxu0 0
          %699 = vmatpush1.bf16.msra.mxu0 0
          %700 = vmatprep.subr.bf16.mxu0 0
          %701 = vmatpush1.bf16.msra.mxu0 0
          %702 = vmatprep.subr.bf16.mxu0 0
          %703 = vmatpush1.bf16.msra.mxu0 0
          %704 = vmatprep.subr.bf16.mxu0 0
          %705 = vmatpush1.bf16.msra.mxu0 0
          %706 = vmatprep.subr.bf16.mxu0 0
          %707 = vmatpush1.bf16.msra.mxu0 %v687
          %708 = vmatprep.subr.bf16.mxu0 0
          %709 = vmatpush1.bf16.msra.mxu0 %v686
          %710 = vmatprep.subr.bf16.mxu0 0
          %711 = vmatpush2.bf16.msra.mxu0 0
          %712 = vmatprep.subr.bf16.mxu0 0
          %713 = vmatpush2.bf16.msra.mxu0 0
          %714 = vmatprep.subr.bf16.mxu0 0
          %715 = vmatpush2.bf16.msra.mxu0 0
          %716 = vmatprep.subr.bf16.mxu0 0
          %717 = vmatpush2.bf16.msra.mxu0 0
          %718 = vmatprep.subr.bf16.mxu0 0
          %719 = vmatpush2.bf16.msra.mxu0 0
          %720 = vmatprep.subr.bf16.mxu0 0
          %721 = vmatpush2.bf16.msra.mxu0 0
          %722 = vmatprep.subr.bf16.mxu0 0
          %723 = vmatpush2.bf16.msra.mxu0 0
          %724 = vmatprep.subr.bf16.mxu0 0
          %725 = vmatpush2.bf16.msra.mxu0 0
          %726 = vmatprep.mubr.bf16.mxu0 0
          %727 = vmatmul.mubr.bf16.gmra.mxu0 %v692
          %v728 = vpop.f32.mrf.mxu0
          %v729 = vadd.f32 %v676, %v728
          %v730 = vpop.f32.mrf.mxu0
          %v731 = vpop.f32.mrf.mxu0
          %v732 = vpop.f32.mrf.mxu0
          %733 = vdwg.mxu0
          %v734 = vld [vmem:[#allocation5] sm:$0xf]
          %v735 = vld [vmem:[#allocation5 + $0x4] sm:$0xf]
          %v736 = vld [vmem:[#allocation5 + $0x8] sm:$0xf]
          %v737 = vld [vmem:[#allocation5 + $0xc] sm:$0xf]
          %v738 = vld [vmem:[%s5] sm:$0x1]
          %v740 = vlaneseq
          %v741 = vshrl.u32 %v740, 7
          %v742 = vsub.s32 0, %v741
          %v743 = vrot.slane %v738, %v742
          %v749 = vunpack.c.l.b16 %v734
          %v750 = vunpack.c.l.b16 %v735
          %v751 = vunpack.c.l.b16 %v736
          %v752 = vunpack.c.l.b16 %v737
          %v753 = vpack.c.b16 %v750, %v749
          %v754 = vpack.c.b16 %v752, %v751
          %v758 = vsel %vm690, %v663, 0
          %760 = vmatprep.subr.bf16.mxu0 0
          %761 = vmatpush1.bf16.msra.mxu0 0
          %762 = vmatprep.subr.bf16.mxu0 0
          %763 = vmatpush1.bf16.msra.mxu0 0
          %764 = vmatprep.subr.bf16.mxu0 0
          %765 = vmatpush1.bf16.msra.mxu0 0
          %766 = vmatprep.subr.bf16.mxu0 0
          %767 = vmatpush1.bf16.msra.mxu0 0
          %768 = vmatprep.subr.bf16.mxu0 0
          %769 = vmatpush1.bf16.msra.mxu0 0
          %770 = vmatprep.subr.bf16.mxu0 0
          %771 = vmatpush1.bf16.msra.mxu0 0
          %772 = vmatprep.subr.bf16.mxu0 0
          %773 = vmatpush1.bf16.msra.mxu0 %v754
          %774 = vmatprep.subr.bf16.mxu0 0
          %775 = vmatpush1.bf16.msra.mxu0 %v753
          %776 = vmatprep.subr.bf16.mxu0 0
          %777 = vmatpush2.bf16.msra.mxu0 0
          %778 = vmatprep.subr.bf16.mxu0 0
          %779 = vmatpush2.bf16.msra.mxu0 0
          %780 = vmatprep.subr.bf16.mxu0 0
          %781 = vmatpush2.bf16.msra.mxu0 0
          %782 = vmatprep.subr.bf16.mxu0 0
          %783 = vmatpush2.bf16.msra.mxu0 0
          %784 = vmatprep.subr.bf16.mxu0 0
          %785 = vmatpush2.bf16.msra.mxu0 0
          %786 = vmatprep.subr.bf16.mxu0 0
          %787 = vmatpush2.bf16.msra.mxu0 0
          %788 = vmatprep.subr.bf16.mxu0 0
          %789 = vmatpush2.bf16.msra.mxu0 0
          %790 = vmatprep.subr.bf16.mxu0 0
          %791 = vmatpush2.bf16.msra.mxu0 0
          %792 = vmatprep.mubr.bf16.mxu0 0
          %793 = vmatmul.mubr.bf16.gmra.mxu0 %v758
          %v794 = vpop.f32.mrf.mxu0
          %v795 = vadd.f32 %v743, %v794
          %v796 = vpop.f32.mrf.mxu0
          %v797 = vpop.f32.mrf.mxu0
          %v798 = vpop.f32.mrf.mxu0
          %799 = vdwg.mxu0
          %v800 = vpack.c.bf16 %v729, %v729
          %vm801 = vcmask 257024
          %802 = vst.msk [vmem:[#allocation2] sm:$0xf] %vm801, %v800
          %804 = vrot.lane.b32.xlu0 %v729, 96
          %v805 = vpop.permute.xlu0 %804
          %807 = vxpose.xlu0.b32.start [1/16] %v805, 128
          %808 = vxpose.xlu0.b32.cont [2/16] 0.0, 128
          %809 = vxpose.xlu0.b32.cont [3/16] 0.0, 128
          %810 = vxpose.xlu0.b32.cont [4/16] 0.0, 128
          %811 = vxpose.xlu0.b32.cont [5/16] 0.0, 128
          %812 = vxpose.xlu0.b32.cont [6/16] 0.0, 128
          %813 = vxpose.xlu0.b32.cont [7/16] 0.0, 128
          %814 = vxpose.xlu0.b32.cont [8/16] 0.0, 128
          %815 = vxpose.xlu0.b32.cont [9/16] 0.0, 128
          %816 = vxpose.xlu0.b32.cont [10/16] 0.0, 128
          %817 = vxpose.xlu0.b32.cont [11/16] 0.0, 128
          %818 = vxpose.xlu0.b32.cont [12/16] 0.0, 128
          %819 = vxpose.xlu0.b32.cont [13/16] 0.0, 128
          %820 = vxpose.xlu0.b32.cont [14/16] 0.0, 128
          %821 = vxpose.xlu0.b32.cont [15/16] 0.0, 128
          %822 = vxpose.xlu0.b32.end [16/16] 0.0, 128
          %v823 = vpop.trf.xlu0
          %v824 = vpop.trf.xlu0
          %v825 = vpop.trf.xlu0
          %v826 = vpop.trf.xlu0
          %v827 = vpop.trf.xlu0
          %v828 = vpop.trf.xlu0
          %v829 = vpop.trf.xlu0
          %v830 = vpop.trf.xlu0
          %v831 = vpop.trf.xlu0
          %v832 = vpop.trf.xlu0
          %v833 = vpop.trf.xlu0
          %v834 = vpop.trf.xlu0
          %v835 = vpop.trf.xlu0
          %v836 = vpop.trf.xlu0
          %v837 = vpop.trf.xlu0
          %v838 = vpop.trf.xlu0
          %v839 = vpack.c.bf16 %v824, %v823
          %v840 = vpack.c.bf16 %v826, %v825
          %v843 = vunpack.c.l.b16 %v839
          %v844 = vunpack.c.h.b16 %v839
          %v845 = vunpack.c.l.b16 %v840
          %v846 = vunpack.c.h.b16 %v840
          %v847 = vpack.c.b16 %v843, %v843
          %v848 = vpack.c.b16 %v844, %v844
          %v849 = vpack.c.b16 %v845, %v845
          %v850 = vpack.c.b16 %v846, %v846
          %vm855 = vcmask 60416
          %856 = vst.msk [vmem:[#allocation3] sm:$0xf] %vm855, %v847
          %857 = vst.msk [vmem:[#allocation3 + $0x4] sm:$0xf] %vm855, %v848
          %858 = vst.msk [vmem:[#allocation3 + $0x8] sm:$0xf] %vm855, %v849
          %859 = vst.msk [vmem:[#allocation3 + $0xc] sm:$0xf] %vm855, %v850
          %v860 = vpack.c.bf16 %v795, %v795
          %861 = vst.msk [vmem:[#allocation4] sm:$0xf] %vm801, %v860
        $region108: #{tpu_custom_call.1} parent=83 // pred_fallthru
          _
        %s862 = smul.u32 %s43, 8
        %s863 = scalar_lea.vmem %s652, %s862
        %v864 = vld [vmem:[%s863] sm:$0xff]
        %s865 = sshra.s32 %s862, 3
        %s866 = sand.u32 %s862, 7
        %s867 = smul.addr %s865, 4
        %s868 = scalar_lea.vmem [#allocation2], %s867
        %v869 = vld [vmem:[%s868] sm:$0xf]
        %v870 = vld [vmem:[#allocation3] sm:$0xf]
        %v871 = vld [vmem:[#allocation3 + $0x4] sm:$0xf]
        %v872 = vld [vmem:[#allocation3 + $0x8] sm:$0xf]
        %v873 = vld [vmem:[#allocation3 + $0xc] sm:$0xf]
        %v874 = vld [vmem:[#allocation4] sm:$0xf]
        %vm875 = vcmask 64512
        %v877 = vsel %vm875, %v869, 0
        %vm879 = vcmask 1043456
        %v881 = vsel %vm879, %v870, 0
        %883 = vmatprep.subr.bf16.mxu0 0
        %884 = vmatpush1.bf16.msra.mxu0 0
        %885 = vmatprep.subr.bf16.mxu0 0
        %886 = vmatpush1.bf16.msra.mxu0 0
        %887 = vmatprep.subr.bf16.mxu0 0
        %888 = vmatpush1.bf16.msra.mxu0 0
        %889 = vmatprep.subr.bf16.mxu0 0
        %890 = vmatpush1.bf16.msra.mxu0 0
        %891 = vmatprep.subr.bf16.mxu0 0
        %892 = vmatpush1.bf16.msra.mxu0 0
        %893 = vmatprep.subr.bf16.mxu0 0
        %894 = vmatpush1.bf16.msra.mxu0 0
        %895 = vmatprep.subr.bf16.mxu0 0
        %896 = vmatpush1.bf16.msra.mxu0 0
        %897 = vmatprep.subr.bf16.mxu0 0
        %898 = vmatpush1.bf16.msra.mxu0 %v881
        %899 = vmatprep.subr.bf16.mxu0 0
        %900 = vmatpush2.bf16.msra.mxu0 0
        %901 = vmatprep.subr.bf16.mxu0 0
        %902 = vmatpush2.bf16.msra.mxu0 0
        %903 = vmatprep.subr.bf16.mxu0 0
        %904 = vmatpush2.bf16.msra.mxu0 0
        %905 = vmatprep.subr.bf16.mxu0 0
        %906 = vmatpush2.bf16.msra.mxu0 0
        %907 = vmatprep.subr.bf16.mxu0 0
        %908 = vmatpush2.bf16.msra.mxu0 0
        %909 = vmatprep.subr.bf16.mxu0 0
        %910 = vmatpush2.bf16.msra.mxu0 0
        %911 = vmatprep.subr.bf16.mxu0 0
        %912 = vmatpush2.bf16.msra.mxu0 0
        %913 = vmatprep.subr.bf16.mxu0 0
        %914 = vmatpush2.bf16.msra.mxu0 0
        %915 = vmatprep.mubr.bf16.mxu0 0
        %916 = vmatmul.mubr.bf16.gmra.mxu0 %v877
        %v917 = vpop.f32.mrf.mxu0
        %v918 = vadd.f32 0.0, %v917
        %v919 = vpop.f32.mrf.mxu0
        %v920 = vpop.f32.mrf.mxu0
        %v921 = vpop.f32.mrf.mxu0
        %922 = vdwg.mxu0
        %v923 = vsel %vm875, %v918, -inf
        %924 = vmax.xlane.f32.xlu0 %v923
        %v925 = vpop.xlane.xlu0 %924
        %v926 = vsub.f32 %v918, %v925
        %v927 = vmul.f32 %v926, 1.442695
        %v928 = vpow.pop %v927
        %v929 = vsel %vm875, %v928, 0.0
        %930 = vadd.xlane.f32.xlu0 %v929
        %v931 = vpop.xlane.xlu0 %930
        %v932 = vrcp.pop %v931
        %v933 = vmul.f32 %v928, %v932
        %v934 = vadd.f32 %v933, 0.0
        %v935 = vpack.c.bf16 %v933, %v933
        %v937 = vsel %vm875, %v935, 0
        %v940 = vsel %vm879, %v874, 0
        %942 = vmatprep.subr.bf16.mxu0 0
        %943 = vmatpush1.bf16.msra.mxu0 0
        %944 = vmatprep.subr.bf16.mxu0 0
        %945 = vmatpush1.bf16.msra.mxu0 0
        %946 = vmatprep.subr.bf16.mxu0 0
        %947 = vmatpush1.bf16.msra.mxu0 0
        %948 = vmatprep.subr.bf16.mxu0 0
        %949 = vmatpush1.bf16.msra.mxu0 0
        %950 = vmatprep.subr.bf16.mxu0 0
        %951 = vmatpush1.bf16.msra.mxu0 0
        %952 = vmatprep.subr.bf16.mxu0 0
        %953 = vmatpush1.bf16.msra.mxu0 0
        %954 = vmatprep.subr.bf16.mxu0 0
        %955 = vmatpush1.bf16.msra.mxu0 0
        %956 = vmatprep.subr.bf16.mxu0 0
        %957 = vmatpush1.bf16.msra.mxu0 %v940
        %958 = vmatprep.subr.bf16.mxu0 0
        %959 = vmatpush2.bf16.msra.mxu0 0
        %960 = vmatprep.subr.bf16.mxu0 0
        %961 = vmatpush2.bf16.msra.mxu0 0
        %962 = vmatprep.subr.bf16.mxu0 0
        %963 = vmatpush2.bf16.msra.mxu0 0
        %964 = vmatprep.subr.bf16.mxu0 0
        %965 = vmatpush2.bf16.msra.mxu0 0
        %966 = vmatprep.subr.bf16.mxu0 0
        %967 = vmatpush2.bf16.msra.mxu0 0
        %968 = vmatprep.subr.bf16.mxu0 0
        %969 = vmatpush2.bf16.msra.mxu0 0
        %970 = vmatprep.subr.bf16.mxu0 0
        %971 = vmatpush2.bf16.msra.mxu0 0
        %972 = vmatprep.subr.bf16.mxu0 0
        %973 = vmatpush2.bf16.msra.mxu0 0
        %974 = vmatprep.mubr.bf16.mxu0 0
        %975 = vmatmul.mubr.bf16.gmra.mxu0 %v937
        %v976 = vpop.f32.mrf.mxu0
        %v977 = vadd.f32 0.0, %v976
        %v978 = vpop.f32.mrf.mxu0
        %v979 = vpop.f32.mrf.mxu0
        %v980 = vpop.f32.mrf.mxu0
        %981 = vdwg.mxu0
        %v982 = vpack.c.bf16 %v977, %v977
        %v983 = vld [vmem:[#allocation8] sm:$0xf]
        %v985 = vunpack.c.l.b16 %v869
        %v986 = vpack.c.b16 %v985, %v985
        %987 = vrot.lane.b32.xlu0 %v986, 120
        %v988 = vpop.permute.xlu0 %987
        %v990 = vsel %vm875, %v988, 0
        %v993 = vsel %vm879, %v871, 0
        %995 = vmatprep.subr.bf16.mxu0 0
        %996 = vmatpush1.bf16.msra.mxu0 0
        %997 = vmatprep.subr.bf16.mxu0 0
        %998 = vmatpush1.bf16.msra.mxu0 0
        %999 = vmatprep.subr.bf16.mxu0 0
        %1000 = vmatpush1.bf16.msra.mxu0 0
        %1001 = vmatprep.subr.bf16.mxu0 0
        %1002 = vmatpush1.bf16.msra.mxu0 0
        %1003 = vmatprep.subr.bf16.mxu0 0
        %1004 = vmatpush1.bf16.msra.mxu0 0
        %1005 = vmatprep.subr.bf16.mxu0 0
        %1006 = vmatpush1.bf16.msra.mxu0 0
        %1007 = vmatprep.subr.bf16.mxu0 0
        %1008 = vmatpush1.bf16.msra.mxu0 0
        %1009 = vmatprep.subr.bf16.mxu0 0
        %1010 = vmatpush1.bf16.msra.mxu0 %v993
        %1011 = vmatprep.subr.bf16.mxu0 0
        %1012 = vmatpush2.bf16.msra.mxu0 0
        %1013 = vmatprep.subr.bf16.mxu0 0
        %1014 = vmatpush2.bf16.msra.mxu0 0
        %1015 = vmatprep.subr.bf16.mxu0 0
        %1016 = vmatpush2.bf16.msra.mxu0 0
        %1017 = vmatprep.subr.bf16.mxu0 0
        %1018 = vmatpush2.bf16.msra.mxu0 0
        %1019 = vmatprep.subr.bf16.mxu0 0
        %1020 = vmatpush2.bf16.msra.mxu0 0
        %1021 = vmatprep.subr.bf16.mxu0 0
        %1022 = vmatpush2.bf16.msra.mxu0 0
        %1023 = vmatprep.subr.bf16.mxu0 0
        %1024 = vmatpush2.bf16.msra.mxu0 0
        %1025 = vmatprep.subr.bf16.mxu0 0
        %1026 = vmatpush2.bf16.msra.mxu0 0
        %1027 = vmatprep.mubr.bf16.mxu0 0
        %1028 = vmatmul.mubr.bf16.gmra.mxu0 %v990
        %v1029 = vpop.f32.mrf.mxu0
        %v1030 = vadd.f32 0.0, %v1029
        %v1031 = vpop.f32.mrf.mxu0
        %v1032 = vpop.f32.mrf.mxu0
        %v1033 = vpop.f32.mrf.mxu0
        %1034 = vdwg.mxu0
        %v1035 = vsel %vm875, %v1030, -inf
        %1036 = vmax.xlane.f32.xlu0 %v1035
        %v1037 = vpop.xlane.xlu0 %1036
        %v1038 = vsub.f32 %v1030, %v1037
        %v1039 = vmul.f32 %v1038, 1.442695
        %v1040 = vpow.pop %v1039
        %v1041 = vsel %vm875, %v1040, 0.0
        %1042 = vadd.xlane.f32.xlu0 %v1041
        %v1043 = vpop.xlane.xlu0 %1042
        %v1044 = vrcp.pop %v1043
        %v1045 = vmul.f32 %v1040, %v1044
        %v1046 = vadd.f32 %v934, %v1045
        %v1047 = vpack.c.bf16 %v1045, %v1045
        %v1049 = vunpack.c.l.b16 %v874
        %v1050 = vpack.c.b16 %v1049, %v1049
        %1051 = vrot.lane.b32.xlu0 %v1050, 120
        %v1052 = vpop.permute.xlu0 %1051
        %v1054 = vsel %vm875, %v1047, 0
        %v1057 = vsel %vm879, %v1052, 0
        %1059 = vmatprep.subr.bf16.mxu0 0
        %1060 = vmatpush1.bf16.msra.mxu0 0
        %1061 = vmatprep.subr.bf16.mxu0 0
        %1062 = vmatpush1.bf16.msra.mxu0 0
        %1063 = vmatprep.subr.bf16.mxu0 0
        %1064 = vmatpush1.bf16.msra.mxu0 0
        %1065 = vmatprep.subr.bf16.mxu0 0
        %1066 = vmatpush1.bf16.msra.mxu0 0
        %1067 = vmatprep.subr.bf16.mxu0 0
        %1068 = vmatpush1.bf16.msra.mxu0 0
        %1069 = vmatprep.subr.bf16.mxu0 0
        %1070 = vmatpush1.bf16.msra.mxu0 0
        %1071 = vmatprep.subr.bf16.mxu0 0
        %1072 = vmatpush1.bf16.msra.mxu0 0
        %1073 = vmatprep.subr.bf16.mxu0 0
        %1074 = vmatpush1.bf16.msra.mxu0 %v1057
        %1075 = vmatprep.subr.bf16.mxu0 0
        %1076 = vmatpush2.bf16.msra.mxu0 0
        %1077 = vmatprep.subr.bf16.mxu0 0
        %1078 = vmatpush2.bf16.msra.mxu0 0
        %1079 = vmatprep.subr.bf16.mxu0 0
        %1080 = vmatpush2.bf16.msra.mxu0 0
        %1081 = vmatprep.subr.bf16.mxu0 0
        %1082 = vmatpush2.bf16.msra.mxu0 0
        %1083 = vmatprep.subr.bf16.mxu0 0
        %1084 = vmatpush2.bf16.msra.mxu0 0
        %1085 = vmatprep.subr.bf16.mxu0 0
        %1086 = vmatpush2.bf16.msra.mxu0 0
        %1087 = vmatprep.subr.bf16.mxu0 0
        %1088 = vmatpush2.bf16.msra.mxu0 0
        %1089 = vmatprep.subr.bf16.mxu0 0
        %1090 = vmatpush2.bf16.msra.mxu0 0
        %1091 = vmatprep.mubr.bf16.mxu0 0
        %1092 = vmatmul.mubr.bf16.gmra.mxu0 %v1054
        %v1093 = vpop.f32.mrf.mxu0
        %v1094 = vadd.f32 0.0, %v1093
        %v1095 = vpop.f32.mrf.mxu0
        %v1096 = vpop.f32.mrf.mxu0
        %v1097 = vpop.f32.mrf.mxu0
        %1098 = vdwg.mxu0
        %v1099 = vpack.c.bf16 %v1094, %v1094
        %v1100 = vld [vmem:[#allocation8 + $0x4] sm:$0xf]
        %v1102 = vsel %vm875, %v1099, 0
        %v1105 = vsel %vm879, %v1100, 0
        %1107 = vmatprep.subr.bf16.mxu0 0
        %1108 = vmatpush1.bf16.msra.mxu0 0
        %1109 = vmatprep.subr.bf16.mxu0 0
        %1110 = vmatpush1.bf16.msra.mxu0 0
        %1111 = vmatprep.subr.bf16.mxu0 0
        %1112 = vmatpush1.bf16.msra.mxu0 0
        %1113 = vmatprep.subr.bf16.mxu0 0
        %1114 = vmatpush1.bf16.msra.mxu0 0
        %1115 = vmatprep.subr.bf16.mxu0 0
        %1116 = vmatpush1.bf16.msra.mxu0 0
        %1117 = vmatprep.subr.bf16.mxu0 0
        %1118 = vmatpush1.bf16.msra.mxu0 0
        %1119 = vmatprep.subr.bf16.mxu0 0
        %1120 = vmatpush1.bf16.msra.mxu0 0
        %1121 = vmatprep.subr.bf16.mxu0 0
        %1122 = vmatpush1.bf16.msra.mxu0 %v1105
        %1123 = vmatprep.subr.bf16.mxu0 0
        %1124 = vmatpush2.bf16.msra.mxu0 0
        %1125 = vmatprep.subr.bf16.mxu0 0
        %1126 = vmatpush2.bf16.msra.mxu0 0
        %1127 = vmatprep.subr.bf16.mxu0 0
        %1128 = vmatpush2.bf16.msra.mxu0 0
        %1129 = vmatprep.subr.bf16.mxu0 0
        %1130 = vmatpush2.bf16.msra.mxu0 0
        %1131 = vmatprep.subr.bf16.mxu0 0
        %1132 = vmatpush2.bf16.msra.mxu0 0
        %1133 = vmatprep.subr.bf16.mxu0 0
        %1134 = vmatpush2.bf16.msra.mxu0 0
        %1135 = vmatprep.subr.bf16.mxu0 0
        %1136 = vmatpush2.bf16.msra.mxu0 0
        %1137 = vmatprep.subr.bf16.mxu0 0
        %1138 = vmatpush2.bf16.msra.mxu0 0
        %1139 = vmatprep.mubr.bf16.mxu0 0
        %1140 = vmatmul.mubr.bf16.gmra.mxu0 %v1102
        %v1141 = vpop.f32.mrf.mxu0
        %v1142 = vadd.f32 0.0, %v1141
        %v1143 = vpop.f32.mrf.mxu0
        %v1144 = vpop.f32.mrf.mxu0
        %v1145 = vpop.f32.mrf.mxu0
        %1146 = vdwg.mxu0
        %v1148 = vsel %vm875, %v982, 0
        %v1151 = vsel %vm879, %v983, 0
        %1153 = vmatprep.subr.bf16.mxu0 0
        %1154 = vmatpush1.bf16.msra.mxu0 0
        %1155 = vmatprep.subr.bf16.mxu0 0
        %1156 = vmatpush1.bf16.msra.mxu0 0
        %1157 = vmatprep.subr.bf16.mxu0 0
        %1158 = vmatpush1.bf16.msra.mxu0 0
        %1159 = vmatprep.subr.bf16.mxu0 0
        %1160 = vmatpush1.bf16.msra.mxu0 0
        %1161 = vmatprep.subr.bf16.mxu0 0
        %1162 = vmatpush1.bf16.msra.mxu0 0
        %1163 = vmatprep.subr.bf16.mxu0 0
        %1164 = vmatpush1.bf16.msra.mxu0 0
        %1165 = vmatprep.subr.bf16.mxu0 0
        %1166 = vmatpush1.bf16.msra.mxu0 0
        %1167 = vmatprep.subr.bf16.mxu0 0
        %1168 = vmatpush1.bf16.msra.mxu0 %v1151
        %1169 = vmatprep.subr.bf16.mxu0 0
        %1170 = vmatpush2.bf16.msra.mxu0 0
        %1171 = vmatprep.subr.bf16.mxu0 0
        %1172 = vmatpush2.bf16.msra.mxu0 0
        %1173 = vmatprep.subr.bf16.mxu0 0
        %1174 = vmatpush2.bf16.msra.mxu0 0
        %1175 = vmatprep.subr.bf16.mxu0 0
        %1176 = vmatpush2.bf16.msra.mxu0 0
        %1177 = vmatprep.subr.bf16.mxu0 0
        %1178 = vmatpush2.bf16.msra.mxu0 0
        %1179 = vmatprep.subr.bf16.mxu0 0
        %1180 = vmatpush2.bf16.msra.mxu0 0
        %1181 = vmatprep.subr.bf16.mxu0 0
        %1182 = vmatpush2.bf16.msra.mxu0 0
        %1183 = vmatprep.subr.bf16.mxu0 0
        %1184 = vmatpush2.bf16.msra.mxu0 0
        %1185 = vmatprep.mubr.bf16.mxu0 0
        %1186 = vmatmul.mubr.bf16.gmra.mxu0 %v1148
        %v1187 = vpop.f32.mrf.mxu0
        %v1188 = vadd.f32 %v1142, %v1187
        %v1189 = vpop.f32.mrf.mxu0
        %v1190 = vpop.f32.mrf.mxu0
        %v1191 = vpop.f32.mrf.mxu0
        %1192 = vdwg.mxu0
        %1193 = vrot.lane.b32.xlu0 %v986, 112
        %v1194 = vpop.permute.xlu0 %1193
        %v1196 = vsel %vm875, %v1194, 0
        %v1199 = vsel %vm879, %v872, 0
        %1201 = vmatprep.subr.bf16.mxu0 0
        %1202 = vmatpush1.bf16.msra.mxu0 0
        %1203 = vmatprep.subr.bf16.mxu0 0
        %1204 = vmatpush1.bf16.msra.mxu0 0
        %1205 = vmatprep.subr.bf16.mxu0 0
        %1206 = vmatpush1.bf16.msra.mxu0 0
        %1207 = vmatprep.subr.bf16.mxu0 0
        %1208 = vmatpush1.bf16.msra.mxu0 0
        %1209 = vmatprep.subr.bf16.mxu0 0
        %1210 = vmatpush1.bf16.msra.mxu0 0
        %1211 = vmatprep.subr.bf16.mxu0 0
        %1212 = vmatpush1.bf16.msra.mxu0 0
        %1213 = vmatprep.subr.bf16.mxu0 0
        %1214 = vmatpush1.bf16.msra.mxu0 0
        %1215 = vmatprep.subr.bf16.mxu0 0
        %1216 = vmatpush1.bf16.msra.mxu0 %v1199
        %1217 = vmatprep.subr.bf16.mxu0 0
        %1218 = vmatpush2.bf16.msra.mxu0 0
        %1219 = vmatprep.subr.bf16.mxu0 0
        %1220 = vmatpush2.bf16.msra.mxu0 0
        %1221 = vmatprep.subr.bf16.mxu0 0
        %1222 = vmatpush2.bf16.msra.mxu0 0
        %1223 = vmatprep.subr.bf16.mxu0 0
        %1224 = vmatpush2.bf16.msra.mxu0 0
        %1225 = vmatprep.subr.bf16.mxu0 0
        %1226 = vmatpush2.bf16.msra.mxu0 0
        %1227 = vmatprep.subr.bf16.mxu0 0
        %1228 = vmatpush2.bf16.msra.mxu0 0
        %1229 = vmatprep.subr.bf16.mxu0 0
        %1230 = vmatpush2.bf16.msra.mxu0 0
        %1231 = vmatprep.subr.bf16.mxu0 0
        %1232 = vmatpush2.bf16.msra.mxu0 0
        %1233 = vmatprep.mubr.bf16.mxu0 0
        %1234 = vmatmul.mubr.bf16.gmra.mxu0 %v1196
        %v1235 = vpop.f32.mrf.mxu0
        %v1236 = vadd.f32 0.0, %v1235
        %v1237 = vpop.f32.mrf.mxu0
        %v1238 = vpop.f32.mrf.mxu0
        %v1239 = vpop.f32.mrf.mxu0
        %1240 = vdwg.mxu0
        %v1241 = vsel %vm875, %v1236, -inf
        %1242 = vmax.xlane.f32.xlu0 %v1241
        %v1243 = vpop.xlane.xlu0 %1242
        %v1244 = vsub.f32 %v1236, %v1243
        %v1245 = vmul.f32 %v1244, 1.442695
        %v1246 = vpow.pop %v1245
        %v1247 = vsel %vm875, %v1246, 0.0
        %1248 = vadd.xlane.f32.xlu0 %v1247
        %v1249 = vpop.xlane.xlu0 %1248
        %v1250 = vrcp.pop %v1249
        %v1251 = vmul.f32 %v1246, %v1250
        %v1252 = vadd.f32 %v1046, %v1251
        %v1253 = vpack.c.bf16 %v1251, %v1251
        %1254 = vrot.lane.b32.xlu0 %v1050, 112
        %v1255 = vpop.permute.xlu0 %1254
        %v1257 = vsel %vm875, %v1253, 0
        %v1260 = vsel %vm879, %v1255, 0
        %1262 = vmatprep.subr.bf16.mxu0 0
        %1263 = vmatpush1.bf16.msra.mxu0 0
        %1264 = vmatprep.subr.bf16.mxu0 0
        %1265 = vmatpush1.bf16.msra.mxu0 0
        %1266 = vmatprep.subr.bf16.mxu0 0
        %1267 = vmatpush1.bf16.msra.mxu0 0
        %1268 = vmatprep.subr.bf16.mxu0 0
        %1269 = vmatpush1.bf16.msra.mxu0 0
        %1270 = vmatprep.subr.bf16.mxu0 0
        %1271 = vmatpush1.bf16.msra.mxu0 0
        %1272 = vmatprep.subr.bf16.mxu0 0
        %1273 = vmatpush1.bf16.msra.mxu0 0
        %1274 = vmatprep.subr.bf16.mxu0 0
        %1275 = vmatpush1.bf16.msra.mxu0 0
        %1276 = vmatprep.subr.bf16.mxu0 0
        %1277 = vmatpush1.bf16.msra.mxu0 %v1260
        %1278 = vmatprep.subr.bf16.mxu0 0
        %1279 = vmatpush2.bf16.msra.mxu0 0
        %1280 = vmatprep.subr.bf16.mxu0 0
        %1281 = vmatpush2.bf16.msra.mxu0 0
        %1282 = vmatprep.subr.bf16.mxu0 0
        %1283 = vmatpush2.bf16.msra.mxu0 0
        %1284 = vmatprep.subr.bf16.mxu0 0
        %1285 = vmatpush2.bf16.msra.mxu0 0
        %1286 = vmatprep.subr.bf16.mxu0 0
        %1287 = vmatpush2.bf16.msra.mxu0 0
        %1288 = vmatprep.subr.bf16.mxu0 0
        %1289 = vmatpush2.bf16.msra.mxu0 0
        %1290 = vmatprep.subr.bf16.mxu0 0
        %1291 = vmatpush2.bf16.msra.mxu0 0
        %1292 = vmatprep.subr.bf16.mxu0 0
        %1293 = vmatpush2.bf16.msra.mxu0 0
        %1294 = vmatprep.mubr.bf16.mxu0 0
        %1295 = vmatmul.mubr.bf16.gmra.mxu0 %v1257
        %v1296 = vpop.f32.mrf.mxu0
        %v1297 = vadd.f32 0.0, %v1296
        %v1298 = vpop.f32.mrf.mxu0
        %v1299 = vpop.f32.mrf.mxu0
        %v1300 = vpop.f32.mrf.mxu0
        %1301 = vdwg.mxu0
        %v1302 = vpack.c.bf16 %v1297, %v1297
        %v1303 = vld [vmem:[#allocation8 + $0x8] sm:$0xf]
        %v1305 = vsel %vm875, %v1302, 0
        %v1308 = vsel %vm879, %v1303, 0
        %1310 = vmatprep.subr.bf16.mxu0 0
        %1311 = vmatpush1.bf16.msra.mxu0 0
        %1312 = vmatprep.subr.bf16.mxu0 0
        %1313 = vmatpush1.bf16.msra.mxu0 0
        %1314 = vmatprep.subr.bf16.mxu0 0
        %1315 = vmatpush1.bf16.msra.mxu0 0
        %1316 = vmatprep.subr.bf16.mxu0 0
        %1317 = vmatpush1.bf16.msra.mxu0 0
        %1318 = vmatprep.subr.bf16.mxu0 0
        %1319 = vmatpush1.bf16.msra.mxu0 0
        %1320 = vmatprep.subr.bf16.mxu0 0
        %1321 = vmatpush1.bf16.msra.mxu0 0
        %1322 = vmatprep.subr.bf16.mxu0 0
        %1323 = vmatpush1.bf16.msra.mxu0 0
        %1324 = vmatprep.subr.bf16.mxu0 0
        %1325 = vmatpush1.bf16.msra.mxu0 %v1308
        %1326 = vmatprep.subr.bf16.mxu0 0
        %1327 = vmatpush2.bf16.msra.mxu0 0
        %1328 = vmatprep.subr.bf16.mxu0 0
        %1329 = vmatpush2.bf16.msra.mxu0 0
        %1330 = vmatprep.subr.bf16.mxu0 0
        %1331 = vmatpush2.bf16.msra.mxu0 0
        %1332 = vmatprep.subr.bf16.mxu0 0
        %1333 = vmatpush2.bf16.msra.mxu0 0
        %1334 = vmatprep.subr.bf16.mxu0 0
        %1335 = vmatpush2.bf16.msra.mxu0 0
        %1336 = vmatprep.subr.bf16.mxu0 0
        %1337 = vmatpush2.bf16.msra.mxu0 0
        %1338 = vmatprep.subr.bf16.mxu0 0
        %1339 = vmatpush2.bf16.msra.mxu0 0
        %1340 = vmatprep.subr.bf16.mxu0 0
        %1341 = vmatpush2.bf16.msra.mxu0 0
        %1342 = vmatprep.mubr.bf16.mxu0 0
        %1343 = vmatmul.mubr.bf16.gmra.mxu0 %v1305
        %v1344 = vpop.f32.mrf.mxu0
        %v1345 = vadd.f32 0.0, %v1344
        %v1346 = vpop.f32.mrf.mxu0
        %v1347 = vpop.f32.mrf.mxu0
        %v1348 = vpop.f32.mrf.mxu0
        %1349 = vdwg.mxu0
        %v1350 = vadd.f32 %v1188, %v1345
        %1351 = vrot.lane.b32.xlu0 %v986, 104
        %v1352 = vpop.permute.xlu0 %1351
        %v1354 = vsel %vm875, %v1352, 0
        %v1357 = vsel %vm879, %v873, 0
        %1359 = vmatprep.subr.bf16.mxu0 0
        %1360 = vmatpush1.bf16.msra.mxu0 0
        %1361 = vmatprep.subr.bf16.mxu0 0
        %1362 = vmatpush1.bf16.msra.mxu0 0
        %1363 = vmatprep.subr.bf16.mxu0 0
        %1364 = vmatpush1.bf16.msra.mxu0 0
        %1365 = vmatprep.subr.bf16.mxu0 0
        %1366 = vmatpush1.bf16.msra.mxu0 0
        %1367 = vmatprep.subr.bf16.mxu0 0
        %1368 = vmatpush1.bf16.msra.mxu0 0
        %1369 = vmatprep.subr.bf16.mxu0 0
        %1370 = vmatpush1.bf16.msra.mxu0 0
        %1371 = vmatprep.subr.bf16.mxu0 0
        %1372 = vmatpush1.bf16.msra.mxu0 0
        %1373 = vmatprep.subr.bf16.mxu0 0
        %1374 = vmatpush1.bf16.msra.mxu0 %v1357
        %1375 = vmatprep.subr.bf16.mxu0 0
        %1376 = vmatpush2.bf16.msra.mxu0 0
        %1377 = vmatprep.subr.bf16.mxu0 0
        %1378 = vmatpush2.bf16.msra.mxu0 0
        %1379 = vmatprep.subr.bf16.mxu0 0
        %1380 = vmatpush2.bf16.msra.mxu0 0
        %1381 = vmatprep.subr.bf16.mxu0 0
        %1382 = vmatpush2.bf16.msra.mxu0 0
        %1383 = vmatprep.subr.bf16.mxu0 0
        %1384 = vmatpush2.bf16.msra.mxu0 0
        %1385 = vmatprep.subr.bf16.mxu0 0
        %1386 = vmatpush2.bf16.msra.mxu0 0
        %1387 = vmatprep.subr.bf16.mxu0 0
        %1388 = vmatpush2.bf16.msra.mxu0 0
        %1389 = vmatprep.subr.bf16.mxu0 0
        %1390 = vmatpush2.bf16.msra.mxu0 0
        %1391 = vmatprep.mubr.bf16.mxu0 0
        %1392 = vmatmul.mubr.bf16.gmra.mxu0 %v1354
        %v1393 = vpop.f32.mrf.mxu0
        %v1394 = vadd.f32 0.0, %v1393
        %v1395 = vpop.f32.mrf.mxu0
        %v1396 = vpop.f32.mrf.mxu0
        %v1397 = vpop.f32.mrf.mxu0
        %1398 = vdwg.mxu0
        %v1399 = vsel %vm875, %v1394, -inf
        %1400 = vmax.xlane.f32.xlu0 %v1399
        %v1401 = vpop.xlane.xlu0 %1400
        %v1402 = vsub.f32 %v1394, %v1401
        %v1403 = vmul.f32 %v1402, 1.442695
        %v1404 = vpow.pop %v1403
        %v1405 = vsel %vm875, %v1404, 0.0
        %1406 = vadd.xlane.f32.xlu0 %v1405
        %v1407 = vpop.xlane.xlu0 %1406
        %v1408 = vrcp.pop %v1407
        %v1409 = vmul.f32 %v1404, %v1408
        %v1410 = vadd.f32 %v1252, %v1409
        %v1411 = vpack.c.bf16 %v1409, %v1409
        %1412 = vrot.lane.b32.xlu0 %v1050, 104
        %v1413 = vpop.permute.xlu0 %1412
        %v1415 = vsel %vm875, %v1411, 0
        %v1418 = vsel %vm879, %v1413, 0
        %1420 = vmatprep.subr.bf16.mxu0 0
        %1421 = vmatpush1.bf16.msra.mxu0 0
        %1422 = vmatprep.subr.bf16.mxu0 0
        %1423 = vmatpush1.bf16.msra.mxu0 0
        %1424 = vmatprep.subr.bf16.mxu0 0
        %1425 = vmatpush1.bf16.msra.mxu0 0
        %1426 = vmatprep.subr.bf16.mxu0 0
        %1427 = vmatpush1.bf16.msra.mxu0 0
        %1428 = vmatprep.subr.bf16.mxu0 0
        %1429 = vmatpush1.bf16.msra.mxu0 0
        %1430 = vmatprep.subr.bf16.mxu0 0
        %1431 = vmatpush1.bf16.msra.mxu0 0
        %1432 = vmatprep.subr.bf16.mxu0 0
        %1433 = vmatpush1.bf16.msra.mxu0 0
        %1434 = vmatprep.subr.bf16.mxu0 0
        %1435 = vmatpush1.bf16.msra.mxu0 %v1418
        %1436 = vmatprep.subr.bf16.mxu0 0
        %1437 = vmatpush2.bf16.msra.mxu0 0
        %1438 = vmatprep.subr.bf16.mxu0 0
        %1439 = vmatpush2.bf16.msra.mxu0 0
        %1440 = vmatprep.subr.bf16.mxu0 0
        %1441 = vmatpush2.bf16.msra.mxu0 0
        %1442 = vmatprep.subr.bf16.mxu0 0
        %1443 = vmatpush2.bf16.msra.mxu0 0
        %1444 = vmatprep.subr.bf16.mxu0 0
        %1445 = vmatpush2.bf16.msra.mxu0 0
        %1446 = vmatprep.subr.bf16.mxu0 0
        %1447 = vmatpush2.bf16.msra.mxu0 0
        %1448 = vmatprep.subr.bf16.mxu0 0
        %1449 = vmatpush2.bf16.msra.mxu0 0
        %1450 = vmatprep.subr.bf16.mxu0 0
        %1451 = vmatpush2.bf16.msra.mxu0 0
        %1452 = vmatprep.mubr.bf16.mxu0 0
        %1453 = vmatmul.mubr.bf16.gmra.mxu0 %v1415
        %v1454 = vpop.f32.mrf.mxu0
        %v1455 = vadd.f32 0.0, %v1454
        %v1456 = vpop.f32.mrf.mxu0
        %v1457 = vpop.f32.mrf.mxu0
        %v1458 = vpop.f32.mrf.mxu0
        %1459 = vdwg.mxu0
        %v1460 = vpack.c.bf16 %v1455, %v1455
        %v1461 = vld [vmem:[#allocation8 + $0xc] sm:$0xf]
        %v1463 = vsel %vm875, %v1460, 0
        %v1466 = vsel %vm879, %v1461, 0
        %1468 = vmatprep.subr.bf16.mxu0 0
        %1469 = vmatpush1.bf16.msra.mxu0 0
        %1470 = vmatprep.subr.bf16.mxu0 0
        %1471 = vmatpush1.bf16.msra.mxu0 0
        %1472 = vmatprep.subr.bf16.mxu0 0
        %1473 = vmatpush1.bf16.msra.mxu0 0
        %1474 = vmatprep.subr.bf16.mxu0 0
        %1475 = vmatpush1.bf16.msra.mxu0 0
        %1476 = vmatprep.subr.bf16.mxu0 0
        %1477 = vmatpush1.bf16.msra.mxu0 0
        %1478 = vmatprep.subr.bf16.mxu0 0
        %1479 = vmatpush1.bf16.msra.mxu0 0
        %1480 = vmatprep.subr.bf16.mxu0 0
        %1481 = vmatpush1.bf16.msra.mxu0 0
        %1482 = vmatprep.subr.bf16.mxu0 0
        %1483 = vmatpush1.bf16.msra.mxu0 %v1466
        %1484 = vmatprep.subr.bf16.mxu0 0
        %1485 = vmatpush2.bf16.msra.mxu0 0
        %1486 = vmatprep.subr.bf16.mxu0 0
        %1487 = vmatpush2.bf16.msra.mxu0 0
        %1488 = vmatprep.subr.bf16.mxu0 0
        %1489 = vmatpush2.bf16.msra.mxu0 0
        %1490 = vmatprep.subr.bf16.mxu0 0
        %1491 = vmatpush2.bf16.msra.mxu0 0
        %1492 = vmatprep.subr.bf16.mxu0 0
        %1493 = vmatpush2.bf16.msra.mxu0 0
        %1494 = vmatprep.subr.bf16.mxu0 0
        %1495 = vmatpush2.bf16.msra.mxu0 0
        %1496 = vmatprep.subr.bf16.mxu0 0
        %1497 = vmatpush2.bf16.msra.mxu0 0
        %1498 = vmatprep.subr.bf16.mxu0 0
        %1499 = vmatpush2.bf16.msra.mxu0 0
        %1500 = vmatprep.mubr.bf16.mxu0 0
        %1501 = vmatmul.mubr.bf16.gmra.mxu0 %v1463
        %v1502 = vpop.f32.mrf.mxu0
        %v1503 = vadd.f32 0.0, %v1502
        %v1504 = vpop.f32.mrf.mxu0
        %v1505 = vpop.f32.mrf.mxu0
        %v1506 = vpop.f32.mrf.mxu0
        %1507 = vdwg.mxu0
        %v1508 = vadd.f32 %v1350, %v1503
        %v1509 = vld [vmem:[#allocation10] sm:$0x1]
        %v1511 = vlaneseq
        %v1512 = vshrl.u32 %v1511, 7
        %v1513 = vsub.s32 0, %v1512
        %v1514 = vrot.slane %v1509, %v1513
        %v1516 = vadd.f32 %v1508, %v1514
        %v1517 = vadd.f32 %v864, %v1516
        %v1518 = vld [vmem:[%s12] sm:$0x1]
        %v1519 = vld [vmem:[%s13] sm:$0x1]
        %vm1520 = vcmask 261120
        %v1521 = vsel %vm1520, %v1517, 0.0
        %1522 = vadd.xlane.f32.xlu0 %v1521
        %v1523 = vpop.xlane.xlu0 %1522
        %v1524 = vrcp.pop 32.0
        %v1525 = vmul.f32 %v1523, %v1524
        %v1526 = vsub.f32 %v1517, %v1525
        %v1527 = vmul.f32 %v1526, %v1526
        %v1528 = vsel %vm1520, %v1527, 0.0
        %1529 = vadd.xlane.f32.xlu0 %v1528
        %v1530 = vpop.xlane.xlu0 %1529
        %v1531 = vmul.f32 %v1530, %v1524
        %v1532 = vadd.f32 %v1531, 1e-05
        %v1533 = vrsqrt.pop %v1532
        %v1534 = vmul.f32 %v1526, %v1533
        %v1536 = vlaneseq
        %v1537 = vshrl.u32 %v1536, 7
        %v1538 = vsub.s32 0, %v1537
        %v1539 = vrot.slane %v1518, %v1538
        %v1541 = vmul.f32 %v1534, %v1539
        %v1543 = vlaneseq
        %v1544 = vshrl.u32 %v1543, 7
        %v1545 = vsub.s32 0, %v1544
        %v1546 = vrot.slane %v1519, %v1545
        %v1548 = vadd.f32 %v1541, %v1546
        %v1549 = vpack.c.bf16 %v1548, %v1548
        %v1550 = vld [vmem:[#allocation11] sm:$0xf]
        %v1551 = vld [vmem:[#allocation11 + $0x4] sm:$0xf]
        %v1552 = vld [vmem:[#allocation11 + $0x8] sm:$0xf]
        %v1553 = vld [vmem:[#allocation11 + $0xc] sm:$0xf]
        %v1554 = vld [vmem:[#allocation13] sm:$0x1]
        %v1556 = vlaneseq
        %v1557 = vshrl.u32 %v1556, 7
        %v1558 = vsub.s32 0, %v1557
        %v1559 = vrot.slane %v1554, %v1558
        %v1565 = vunpack.c.l.b16 %v1550
        %v1566 = vunpack.c.l.b16 %v1551
        %v1567 = vunpack.c.l.b16 %v1552
        %v1568 = vunpack.c.l.b16 %v1553
        %v1569 = vpack.c.b16 %v1566, %v1565
        %v1570 = vpack.c.b16 %v1568, %v1567
        %v1574 = vsel %vm1520, %v1549, 0
        %1576 = vmatprep.subr.bf16.mxu0 0
        %1577 = vmatpush1.bf16.msra.mxu0 0
        %1578 = vmatprep.subr.bf16.mxu0 0
        %1579 = vmatpush1.bf16.msra.mxu0 0
        %1580 = vmatprep.subr.bf16.mxu0 0
        %1581 = vmatpush1.bf16.msra.mxu0 0
        %1582 = vmatprep.subr.bf16.mxu0 0
        %1583 = vmatpush1.bf16.msra.mxu0 0
        %1584 = vmatprep.subr.bf16.mxu0 0
        %1585 = vmatpush1.bf16.msra.mxu0 0
        %1586 = vmatprep.subr.bf16.mxu0 0
        %1587 = vmatpush1.bf16.msra.mxu0 0
        %1588 = vmatprep.subr.bf16.mxu0 0
        %1589 = vmatpush1.bf16.msra.mxu0 %v1570
        %1590 = vmatprep.subr.bf16.mxu0 0
        %1591 = vmatpush1.bf16.msra.mxu0 %v1569
        %1592 = vmatprep.subr.bf16.mxu0 0
        %1593 = vmatpush2.bf16.msra.mxu0 0
        %1594 = vmatprep.subr.bf16.mxu0 0
        %1595 = vmatpush2.bf16.msra.mxu0 0
        %1596 = vmatprep.subr.bf16.mxu0 0
        %1597 = vmatpush2.bf16.msra.mxu0 0
        %1598 = vmatprep.subr.bf16.mxu0 0
        %1599 = vmatpush2.bf16.msra.mxu0 0
        %1600 = vmatprep.subr.bf16.mxu0 0
        %1601 = vmatpush2.bf16.msra.mxu0 0
        %1602 = vmatprep.subr.bf16.mxu0 0
        %1603 = vmatpush2.bf16.msra.mxu0 0
        %1604 = vmatprep.subr.bf16.mxu0 0
        %1605 = vmatpush2.bf16.msra.mxu0 0
        %1606 = vmatprep.subr.bf16.mxu0 0
        %1607 = vmatpush2.bf16.msra.mxu0 0
        %1608 = vmatprep.mubr.bf16.mxu0 0
        %1609 = vmatmul.mubr.bf16.gmra.mxu0 %v1574
        %v1610 = vpop.f32.mrf.mxu0
        %v1611 = vadd.f32 %v1559, %v1610
        %v1612 = vpop.f32.mrf.mxu0
        %v1613 = vpop.f32.mrf.mxu0
        %v1614 = vpop.f32.mrf.mxu0
        %1615 = vdwg.mxu0
        %v1616 = vpack.c.bf16 %v1611, %v1611
        %v1617 = vmax.bf16 %v1616, 0
        %v1618 = vld [vmem:[%s10] sm:$0xf]
        %v1619 = vld [vmem:[%s10 + $0x4] sm:$0xf]
        %v1620 = vld [vmem:[%s10 + $0x8] sm:$0xf]
        %v1621 = vld [vmem:[%s10 + $0xc] sm:$0xf]
        %v1622 = vld [vmem:[%s10 + $0x10] sm:$0xf]
        %v1623 = vld [vmem:[%s10 + $0x14] sm:$0xf]
        %v1624 = vld [vmem:[%s10 + $0x18] sm:$0xf]
        %v1625 = vld [vmem:[%s10 + $0x1c] sm:$0xf]
        %v1626 = vld [vmem:[%s11] sm:$0x1]
        %v1628 = vlaneseq
        %v1629 = vshrl.u32 %v1628, 7
        %v1630 = vsub.s32 0, %v1629
        %v1631 = vrot.slane %v1626, %v1630
        %v1641 = vunpack.c.l.b16 %v1618
        %v1642 = vunpack.c.l.b16 %v1619
        %v1643 = vunpack.c.l.b16 %v1620
        %v1644 = vunpack.c.l.b16 %v1621
        %v1645 = vunpack.c.l.b16 %v1622
        %v1646 = vunpack.c.l.b16 %v1623
        %v1647 = vunpack.c.l.b16 %v1624
        %v1648 = vunpack.c.l.b16 %v1625
        %v1649 = vpack.c.b16 %v1642, %v1641
        %v1650 = vpack.c.b16 %v1644, %v1643
        %v1651 = vpack.c.b16 %v1646, %v1645
        %v1652 = vpack.c.b16 %v1648, %v1647
        %vm1657 = vcmask 523264
        %v1659 = vsel %vm1657, %v1617, 0
        %1661 = vmatprep.subr.bf16.mxu0 0
        %1662 = vmatpush1.bf16.msra.mxu0 0
        %1663 = vmatprep.subr.bf16.mxu0 0
        %1664 = vmatpush1.bf16.msra.mxu0 0
        %1665 = vmatprep.subr.bf16.mxu0 0
        %1666 = vmatpush1.bf16.msra.mxu0 0
        %1667 = vmatprep.subr.bf16.mxu0 0
        %1668 = vmatpush1.bf16.msra.mxu0 0
        %1669 = vmatprep.subr.bf16.mxu0 0
        %1670 = vmatpush1.bf16.msra.mxu0 %v1652
        %1671 = vmatprep.subr.bf16.mxu0 0
        %1672 = vmatpush1.bf16.msra.mxu0 %v1651
        %1673 = vmatprep.subr.bf16.mxu0 0
        %1674 = vmatpush1.bf16.msra.mxu0 %v1650
        %1675 = vmatprep.subr.bf16.mxu0 0
        %1676 = vmatpush1.bf16.msra.mxu0 %v1649
        %1677 = vmatprep.subr.bf16.mxu0 0
        %1678 = vmatpush2.bf16.msra.mxu0 0
        %1679 = vmatprep.subr.bf16.mxu0 0
        %1680 = vmatpush2.bf16.msra.mxu0 0
        %1681 = vmatprep.subr.bf16.mxu0 0
        %1682 = vmatpush2.bf16.msra.mxu0 0
        %1683 = vmatprep.subr.bf16.mxu0 0
        %1684 = vmatpush2.bf16.msra.mxu0 0
        %1685 = vmatprep.subr.bf16.mxu0 0
        %1686 = vmatpush2.bf16.msra.mxu0 0
        %1687 = vmatprep.subr.bf16.mxu0 0
        %1688 = vmatpush2.bf16.msra.mxu0 0
        %1689 = vmatprep.subr.bf16.mxu0 0
        %1690 = vmatpush2.bf16.msra.mxu0 0
        %1691 = vmatprep.subr.bf16.mxu0 0
        %1692 = vmatpush2.bf16.msra.mxu0 0
        %1693 = vmatprep.mubr.bf16.mxu0 0
        %1694 = vmatmul.mubr.bf16.gmra.mxu0 %v1659
        %v1695 = vpop.f32.mrf.mxu0
        %v1696 = vadd.f32 %v1631, %v1695
        %v1697 = vpop.f32.mrf.mxu0
        %v1698 = vpop.f32.mrf.mxu0
        %v1699 = vpop.f32.mrf.mxu0
        %1700 = vdwg.mxu0
        %v1701 = vadd.f32 %v1548, %v1696
        %v1702 = vld [vmem:[%s14] sm:$0x1]
        %v1703 = vld [vmem:[%s15] sm:$0x1]
        %v1704 = vsel %vm1520, %v1701, 0.0
        %1705 = vadd.xlane.f32.xlu0 %v1704
        %v1706 = vpop.xlane.xlu0 %1705
        %v1707 = vmul.f32 %v1706, %v1524
        %v1708 = vsub.f32 %v1701, %v1707
        %v1709 = vmul.f32 %v1708, %v1708
        %v1710 = vsel %vm1520, %v1709, 0.0
        %1711 = vadd.xlane.f32.xlu0 %v1710
        %v1712 = vpop.xlane.xlu0 %1711
        %v1713 = vmul.f32 %v1712, %v1524
        %v1714 = vadd.f32 %v1713, 1e-05
        %v1715 = vrsqrt.pop %v1714
        %v1716 = vmul.f32 %v1708, %v1715
        %v1718 = vlaneseq
        %v1719 = vshrl.u32 %v1718, 7
        %v1720 = vsub.s32 0, %v1719
        %v1721 = vrot.slane %v1702, %v1720
        %v1723 = vmul.f32 %v1716, %v1721
        %v1725 = vlaneseq
        %v1726 = vshrl.u32 %v1725, 7
        %v1727 = vsub.s32 0, %v1726
        %v1728 = vrot.slane %v1703, %v1727
        %v1730 = vadd.f32 %v1723, %v1728
        %1731 = vst.msk [vmem:[%s641] sm:$0xff] %vm1520, %v1730
        %v1732 = vmul.f32 %v1410, 0.25
        %1733 = vst.msk [vmem:[%s648] sm:$0xff] %vm875, %v1732
        %s1734 = sand.u32 %s406, 1
        %s1735 = scalar_lea.sflag [#allocation7], %s1734
        %s1736 = sand.u32 %s406, 1
        %s1737 = smul.addr %s1736, 8
        %s1738 = scalar_lea.vmem [#allocation14], %s1737
        %s1739 = sand.u32 %s434, 1
        %s1740 = scalar_lea.sflag [#allocation16], %s1739
        %s1741 = sand.u32 %s434, 1
        %s1742 = smul.addr %s1741, 8
        %s1743 = scalar_lea.vmem [#allocation15], %s1742
        // Predicated region
        $region109: #{tpu_custom_call.1} parent=83 // pred_check
          %p1744 = pneg %p416
        $region110: #{tpu_custom_call.1} parent=83 // pred_check_branch
          %1746 = sbr.rel (%p1744) target = $region112
        $region111: #{tpu_custom_call.1} parent=83 // pred_region
          %s1748 = ssub.s32 128, 128
          %1749 = vsyncadd %s1735, %s1748
          %s1750 = sadd.s32 %s43, %s42
          %s1751 = smul.addr %s1750, 128
          %s1752 = scalar_lea.hbm %s16, %s1751
          %s1754 = sshll.u32 %s1738, 4
          %s1755 = int_to_ptr.vmem [resolvable:$true] %s1754
          %1757 = dma.vmem_to_hbm [thread:$0]  %s1755, 128, %s1752, %s1735
        $region112: #{tpu_custom_call.1} parent=83 // pred_fallthru
          _
        // Predicated region
        $region113: #{tpu_custom_call.1} parent=83 // pred_check
          %p1758 = pneg %p444
        $region114: #{tpu_custom_call.1} parent=83 // pred_check_branch
          %1760 = sbr.rel (%p1758) target = $region116
        $region115: #{tpu_custom_call.1} parent=83 // pred_region
          %s1762 = ssub.s32 128, 128
          %1763 = vsyncadd %s1740, %s1762
          %s1764 = sadd.s32 %s43, %s42
          %s1765 = smul.addr %s1764, 128
          %s1766 = scalar_lea.hbm %s17, %s1765
          %s1768 = sshll.u32 %s1743, 4
          %s1769 = int_to_ptr.vmem [resolvable:$true] %s1768
          %1771 = dma.vmem_to_hbm [thread:$0]  %s1769, 128, %s1766, %s1740
        $region116: #{tpu_custom_call.1} parent=83 // pred_fallthru
          _
      $region84: #{tpu_custom_call.1} parent=5 // pred_fallthru
        _
      %p1772 = scmp.le.s32.totalorder 2, %s33
      // Predicated region
      $region117: #{tpu_custom_call.1} parent=5 // pred_check
        %p1773 = pneg %p1772
      $region118: #{tpu_custom_call.1} parent=5 // pred_check_branch
        %1775 = sbr.rel (%p1773) target = $region120
      $region119: #{tpu_custom_call.1} parent=5 // pred_region
        %s1776 = ssub.s32 %s33, 2
        // Predicated region
        $region121: #{tpu_custom_call.1} parent=119 // pred_check
          %p1777 = pneg %p422
        $region122: #{tpu_custom_call.1} parent=119 // pred_check_branch
          %1779 = sbr.rel (%p1777) target = $region124
        $region123: #{tpu_custom_call.1} parent=119 // pred_region
          %s1780 = sand.u32 %s407, 1
          %s1781 = scalar_lea.sflag [#allocation7], %s1780
          %s1782 = sand.u32 %s407, 1
          %s1783 = smul.addr %s1782, 8
          %s1784 = scalar_lea.vmem [#allocation14], %s1783
          %1785 = dma.done %s1781, 128
        $region124: #{tpu_custom_call.1} parent=119 // pred_fallthru
          _
        // Predicated region
        $region125: #{tpu_custom_call.1} parent=119 // pred_check
          %p1786 = pneg %p450
        $region126: #{tpu_custom_call.1} parent=119 // pred_check_branch
          %1788 = sbr.rel (%p1786) target = $region128
        $region127: #{tpu_custom_call.1} parent=119 // pred_region
          %s1789 = sand.u32 %s435, 1
          %s1790 = scalar_lea.sflag [#allocation16], %s1789
          %s1791 = sand.u32 %s435, 1
          %s1792 = smul.addr %s1791, 8
          %s1793 = scalar_lea.vmem [#allocation15], %s1792
          %1794 = dma.done %s1790, 128
        $region128: #{tpu_custom_call.1} parent=119 // pred_fallthru
          _
      $region120: #{tpu_custom_call.1} parent=5 // pred_fallthru
        _
    $region6: #{tpu_custom_call.1} parent=1 // loop_footer
      %s37 = sadd.s32 1, %s33
    $region7: #{tpu_custom_call.1} parent=1 // loop_footer_branch
      %32 = sbr.rel target = $region3
    $region8: #{tpu_custom_call.1} parent=1 // loop_exit
      _
    %1795 = vsyncpa [#allocation6], 1
    %s1796 = scalar_lea.sflag [#allocation6], 1
    %1797 = vsyncpa %s1796, 1
    %1798 = vsyncpa [#allocation9], 1
    %1799 = vsyncpa [#allocation12], 1
    %1800 = vsyncpa [#allocation7], 1
    %s1801 = scalar_lea.sflag [#allocation7], 1
    %1802 = vsyncpa %s1801, 1
    %1803 = vsyncpa [#allocation16], 1
    %s1804 = scalar_lea.sflag [#allocation16], 1
    %1805 = vsyncpa %s1804, 1

</llo_original>
